<compile_context>
chip_gen: v7x
topology: tpu7x:2x2x1
jax: 0.10.0
libtpu: 0.0.40
codegen_flags: <defaults>
</compile_context>

<pallas_src>
import functools

import jax
import jax.numpy as jnp
import numpy as np
from jax.experimental import pallas as pl
from jax.experimental.pallas import tpu as pltpu

CONV_K = 3      # 3x3x3 stem conv, stride 1, padding 1
CPAD = 4        # input channels zero-padded 3 -> 4
NTAPS = CONV_K * CONV_K * CONV_K          # 27
KPAD = 128      # im2col contraction dim: 27*CPAD = 108 -> 128 (MXU-native depth)
FPAD = 128      # feature_size (64) zero-padded to 128 lanes (lane-dense accumulator)
HPAD = 128      # head logits (10 / 5) zero-padded to 128 lanes (unmasked stores)


# -----------------------------------------------------------------------------
# Fused kernel, grid = (N, T):  per-time-step fused-im2col Conv3d(3x3x3,s1,p1)
# + folded BN + ReLU + global-average-pool accumulation; heads in the epilogue.
# -----------------------------------------------------------------------------
def fused_backbone_heads_kernel(
    xp0_ref,   # (1, 1, H+2, W+2, CPAD) bf16  time slab t   (padded input)
    xp1_ref,   # (1, 1, H+2, W+2, CPAD) bf16  time slab t+1
    xp2_ref,   # (1, 1, H+2, W+2, CPAD) bf16  time slab t+2
    wt_ref,    # (KPAD, FPAD)           bf16  conv weight (BN scale folded, im2col layout)
    cb_ref,    # (1, FPAD)              f32   folded BN shift
    gvf_ref,   # (1, 1, FPAD)           bf16  zero-padded global video feature
    w1_ref,    # (FPAD, HPAD)           bf16  head-1 weight (padded)
    b1_ref,    # (1, HPAD)              f32
    w2a_ref,   # (FPAD, HPAD)           bf16  head-2 weight, clip-feature part
    w2b_ref,   # (FPAD, HPAD)           bf16  head-2 weight, gvf part
    b2_ref,    # (1, HPAD)              f32
    feat_ref,  # (1, 1, FPAD)           f32   out: pooled clip features
    l1_ref,    # (1, 1, HPAD)           f32   out: head-1 logits
    l2_ref,    # (1, 1, HPAD)           f32   out: head-2 logits
    pool_acc,  # (1, FPAD)              f32   scratch: running pixel-sum over (t, h, w)
    patch_ref,  # (H*W, KPAD)           bf16  scratch: fused-im2col patch for this step
    *, T, H, W, cpad, kpad,
):
    t = pl.program_id(1)

    @pl.when(t == 0)
    def _():
        pool_acc[...] = jnp.zeros_like(pool_acc)

    # --- build the lane-dense (H*W, KPAD) bf16 patch in VMEM (no HBM im2col) ---
    # Zero the padded tail columns (the matching wt rows are zero, but scratch
    # VMEM is uninitialized and 0 * NaN would poison the matmul).
    n_used = NTAPS * cpad
    patch_ref[:, n_used:] = jnp.zeros((H * W, kpad - n_used), jnp.bfloat16)

    slabs = (xp0_ref[0, 0], xp1_ref[0, 0], xp2_ref[0, 0])   # (H+2, W+2, CPAD) bf16
    col = 0
    for dt in range(CONV_K):
        slab = slabs[dt]
        for dh in range(CONV_K):
            for dw in range(CONV_K):
                xs = slab[dh:dh + H, dw:dw + W, :]           # (H, W, CPAD) bf16
                patch_ref[:, col:col + cpad] = xs.reshape(H * W, cpad)
                col += cpad

    # --- single MXU matmul per time step (bf16 operands, f32 accumulation) ---
    y = jnp.dot(patch_ref[...], wt_ref[...],
                preferred_element_type=jnp.float32)          # (H*W, FPAD) f32
    y = jnp.maximum(y + cb_ref[...], 0.0)                    # folded BN shift + ReLU
    pool_acc[...] = pool_acc[...] + jnp.sum(y, axis=0, keepdims=True)

    # --- epilogue: global average pool + both FC heads (concat_gvf split) ---
    @pl.when(t == T - 1)
    def _():
        feats = pool_acc[...] * (1.0 / float(T * H * W))     # (1, FPAD) f32
        feat_ref[0] = feats
        fb = feats.astype(jnp.bfloat16)
        g = gvf_ref[0]                                       # (1, FPAD) bf16
        l1_ref[0] = (
            jnp.dot(fb, w1_ref[...], preferred_element_type=jnp.float32)
            + b1_ref[...])
        # concat([feats, gvf]) @ W2^T  ==  feats @ W2a + gvf @ W2b
        l2_ref[0] = (
            jnp.dot(fb, w2a_ref[...], preferred_element_type=jnp.float32)
            + jnp.dot(g, w2b_ref[...], preferred_element_type=jnp.float32)
            + b2_ref[...])


# -----------------------------------------------------------------------------
# Wrapper: replicates Model.forward(x, gvf, return_features=True)
# with num_heads=2, concat_gvf=True.
# -----------------------------------------------------------------------------
def model_forward(x, gvf, params, *, num_classes):
    N, Cin, T, H, W = x.shape
    F = gvf.shape[-1]
    c0, c1 = num_classes
    kpad, fpad = params["wt"].shape
    hpad = params["w1p"].shape[1]
    cpad = CPAD

    # NCDHW -> channels-last bf16, conv padding of 1 on (T,H,W), channels 3 -> CPAD.
    x_cl = jnp.transpose(x, (0, 2, 3, 4, 1)).astype(jnp.bfloat16)
    xp = jnp.pad(x_cl, ((0, 0), (1, 1), (1, 1), (1, 1), (0, cpad - Cin)))

    gvf_p = jnp.zeros((N, 1, fpad), jnp.bfloat16).at[:, 0, :F].set(
        gvf.astype(jnp.bfloat16))

    kernel = functools.partial(
        fused_backbone_heads_kernel, T=T, H=H, W=W, cpad=cpad, kpad=kpad)

    slab_block = (1, 1, H + 2, W + 2, cpad)
    out_shapes = (
        jax.ShapeDtypeStruct((N, 1, fpad), jnp.float32),
        jax.ShapeDtypeStruct((N, 1, hpad), jnp.float32),
        jax.ShapeDtypeStruct((N, 1, hpad), jnp.float32),
    )
    feat_p, l1_p, l2_p = pl.pallas_call(
        kernel,
        out_shape=out_shapes,
        grid=(N, T),
        in_specs=[
            # three 1-slab-shifted views of the same padded input = temporal halo
            pl.BlockSpec(slab_block, lambda n, t: (n, t, 0, 0, 0)),
            pl.BlockSpec(slab_block, lambda n, t: (n, t + 1, 0, 0, 0)),
            pl.BlockSpec(slab_block, lambda n, t: (n, t + 2, 0, 0, 0)),
            pl.BlockSpec((kpad, fpad), lambda n, t: (0, 0)),
            pl.BlockSpec((1, fpad), lambda n, t: (0, 0)),
            pl.BlockSpec((1, 1, fpad), lambda n, t: (n, 0, 0)),
            pl.BlockSpec((fpad, hpad), lambda n, t: (0, 0)),
            pl.BlockSpec((1, hpad), lambda n, t: (0, 0)),
            pl.BlockSpec((fpad, hpad), lambda n, t: (0, 0)),
            pl.BlockSpec((fpad, hpad), lambda n, t: (0, 0)),
            pl.BlockSpec((1, hpad), lambda n, t: (0, 0)),
        ],
        out_specs=(
            pl.BlockSpec((1, 1, fpad), lambda n, t: (n, 0, 0)),
            pl.BlockSpec((1, 1, hpad), lambda n, t: (n, 0, 0)),
            pl.BlockSpec((1, 1, hpad), lambda n, t: (n, 0, 0)),
        ),
        scratch_shapes=[
            pltpu.VMEM((1, fpad), jnp.float32),          # pooled-sum accumulator
            pltpu.VMEM((H * W, kpad), jnp.bfloat16),     # fused-im2col patch buffer
        ],
        compiler_params=pltpu.CompilerParams(
            dimension_semantics=("parallel", "arbitrary"),
            vmem_limit_bytes=32 * 1024 * 1024),
    )(xp, xp, xp, params["wt"], params["b"], gvf_p,
      params["w1p"], params["b1p"], params["w2ap"], params["w2bp"], params["b2p"])

    features = feat_p[:, 0, :F]
    logits = [l1_p[:, 0, :c0], l2_p[:, 0, :c1]]
    return logits, features


# -----------------------------------------------------------------------------
# Deterministic parameter construction (mirrors Model.__init__ shapes, synthetic)
# -----------------------------------------------------------------------------
def build_params(key, cin, feature_size, num_classes):
    k = CONV_K
    assert cin <= CPAD and feature_size <= FPAD and max(num_classes) <= HPAD
    assert NTAPS * CPAD <= KPAD
    ks = jax.random.split(key, 7)
    conv_w = 0.05 * jax.random.normal(ks[0], (feature_size, cin, k, k, k), jnp.float32)
    gamma = 1.0 + 0.1 * jax.random.normal(ks[1], (feature_size,), jnp.float32)
    beta = 0.1 * jax.random.normal(ks[2], (feature_size,), jnp.float32)
    mean = 0.1 * jax.random.normal(ks[3], (feature_size,), jnp.float32)
    var = jnp.abs(jax.random.normal(ks[4], (feature_size,), jnp.float32)) + 0.5
    scale = gamma / jnp.sqrt(var + 1e-5)

    # (Cout, Cin, kT, kH, kW) -> (kT, kH, kW, Cin, Cout), fold BN scale, round to bf16.
    w_fold = jnp.transpose(conv_w, (2, 3, 4, 1, 0)) * scale[None, None, None, None, :]
    w_fold_bf16 = w_fold.astype(jnp.bfloat16)
    b_fold = beta - mean * scale

    # im2col weight layout: row = ((dt*3+dh)*3+dw)*CPAD + c, padded to (KPAD, FPAD).
    wt_full = jnp.zeros((k, k, k, CPAD, FPAD), jnp.bfloat16)
    wt_full = wt_full.at[:, :, :, :cin, :feature_size].set(w_fold_bf16)
    wt = wt_full.reshape(NTAPS * CPAD, FPAD)
    wt = jnp.concatenate(
        [wt, jnp.zeros((KPAD - NTAPS * CPAD, FPAD), jnp.bfloat16)], axis=0)
    b_pad = jnp.zeros((1, FPAD), jnp.float32).at[0, :feature_size].set(b_fold)

    # nn.Linear heads: weight ~ N(0, 0.01), bias = 0 (as in Model._build_fc)
    c0, c1 = num_classes
    fc1_w = 0.01 * jax.random.normal(ks[5], (c0, feature_size), jnp.float32)
    fc2_w = 0.01 * jax.random.normal(ks[6], (c1, 2 * feature_size), jnp.float32)
    fc1_w_bf = fc1_w.astype(jnp.bfloat16)
    fc2_w_bf = fc2_w.astype(jnp.bfloat16)
    w1p = jnp.zeros((FPAD, HPAD), jnp.bfloat16).at[:feature_size, :c0].set(fc1_w_bf.T)
    w2ap = jnp.zeros((FPAD, HPAD), jnp.bfloat16).at[:feature_size, :c1].set(
        fc2_w_bf[:, :feature_size].T)
    w2bp = jnp.zeros((FPAD, HPAD), jnp.bfloat16).at[:feature_size, :c1].set(
        fc2_w_bf[:, feature_size:].T)

    return {
        # kernel-layout params
        "wt": wt, "b": b_pad,
        "w1p": w1p, "b1p": jnp.zeros((1, HPAD), jnp.float32),
        "w2ap": w2ap, "w2bp": w2bp, "b2p": jnp.zeros((1, HPAD), jnp.float32),
        # reference-layout copies (same bf16-rounded weights, back in f32)
        "w_fold_ref": w_fold_bf16.astype(jnp.float32).reshape(NTAPS * cin,
                                                              feature_size),
        "b_fold_ref": b_fold[None, :],
        "fc1_w_ref": fc1_w_bf.astype(jnp.float32),
        "fc2_w_ref": fc2_w_bf.astype(jnp.float32),
    }


# -----------------------------------------------------------------------------
# Pure-JAX reference (plain im2col conv) for verification
# -----------------------------------------------------------------------------
def im2col_3d(x_cl, k=CONV_K):
    N, T, H, W, C = x_cl.shape
    xpad = jnp.pad(x_cl, ((0, 0), (1, 1), (1, 1), (1, 1), (0, 0)))
    pieces = []
    for dt in range(k):
        for dh in range(k):
            for dw in range(k):
                pieces.append(xpad[:, dt:dt + T, dh:dh + H, dw:dw + W, :])
    p = jnp.stack(pieces, axis=-2)                # (N, T, H, W, 27, C)
    return p.reshape(N * T * H * W, k * k * k * C)


def reference_forward(x, gvf, params):
    N, Cin, T, H, W = x.shape
    F = params["w_fold_ref"].shape[1]
    # same bf16 rounding of the conv/head operands as the kernel uses
    x_cl = jnp.transpose(x, (0, 2, 3, 4, 1)).astype(jnp.bfloat16).astype(jnp.float32)
    patches = im2col_3d(x_cl)
    y = jnp.maximum(patches @ params["w_fold_ref"] + params["b_fold_ref"], 0.0)
    feats = y.reshape(N, T * H * W, F).mean(axis=1)
    gvf_b = gvf.astype(jnp.bfloat16).astype(jnp.float32)
    l1 = feats @ params["fc1_w_ref"].T
    l2 = jnp.concatenate([feats, gvf_b], axis=-1) @ params["fc2_w_ref"].T
    return [l1, l2], feats


if __name__ == "__main__":
    key = jax.random.PRNGKey(0)
    N, Cin, T, H, W = 2, 3, 4, 16, 16
    feature_size = 64
    num_classes = (10, 5)          # num_heads = 2, concat_gvf = True

    k_x, k_g, k_p = jax.random.split(key, 3)
    x = jax.random.normal(k_x, (N, Cin, T, H, W), jnp.float32)
    gvf = jax.random.normal(k_g, (N, feature_size), jnp.float32)
    params = build_params(k_p, Cin, feature_size, num_classes)

    fwd = jax.jit(functools.partial(model_forward, num_classes=num_classes))
    logits, features = fwd(x, gvf, params)
    jax.block_until_ready((logits, features))

    ref_logits, ref_features = reference_forward(x, gvf, params)
    np.testing.assert_allclose(np.asarray(features), np.asarray(ref_features),
                               rtol=1e-3, atol=1e-3)
    np.testing.assert_allclose(np.asarray(logits[0]), np.asarray(ref_logits[0]),
                               rtol=1e-3, atol=1e-3)
    np.testing.assert_allclose(np.asarray(logits[1]), np.asarray(ref_logits[1]),
                               rtol=1e-3, atol=1e-3)

    assert logits[0].shape == (N, num_classes[0])
    assert logits[1].shape == (N, num_classes[1])
    assert features.shape == (N, feature_size)
    print("KERNEL_OK")
</pallas_src>

<mosaic_0001>
module attributes {stable_mosaic.version = 11 : i64} {
  func.func @fused_backbone_heads_kernel(%arg0: i32, %arg1: i32, %arg2: memref<1x1x18x18x4xbf16, #tpu.memory_space<vmem>>, %arg3: memref<1x1x18x18x4xbf16, #tpu.memory_space<vmem>>, %arg4: memref<1x1x18x18x4xbf16, #tpu.memory_space<vmem>>, %arg5: memref<128x128xbf16, #tpu.memory_space<vmem>>, %arg6: memref<1x128xf32, #tpu.memory_space<vmem>>, %arg7: memref<1x1x128xbf16, #tpu.memory_space<vmem>>, %arg8: memref<128x128xbf16, #tpu.memory_space<vmem>>, %arg9: memref<1x128xf32, #tpu.memory_space<vmem>>, %arg10: memref<128x128xbf16, #tpu.memory_space<vmem>>, %arg11: memref<128x128xbf16, #tpu.memory_space<vmem>>, %arg12: memref<1x128xf32, #tpu.memory_space<vmem>>, %arg13: memref<1x1x128xf32, #tpu.memory_space<vmem>>, %arg14: memref<1x1x128xf32, #tpu.memory_space<vmem>>, %arg15: memref<1x1x128xf32, #tpu.memory_space<vmem>>, %arg16: memref<1x128xf32, #tpu.memory_space<vmem>>, %arg17: memref<256x128xbf16, #tpu.memory_space<vmem>>) attributes {dimension_semantics = [#tpu.dimension_semantics<parallel>, #tpu.dimension_semantics<arbitrary>], iteration_bounds = array<i64: 2, 4>, scalar_prefetch = 0 : i64, scratch_operands = 2 : i64, tpu.core_type = #tpu.core_type<tc>, window_params = [{transform_indices = @transform_0, window_bounds = array<i64: 1, 1, 18, 18, 4>}, {transform_indices = @transform_1, window_bounds = array<i64: 1, 1, 18, 18, 4>}, {transform_indices = @transform_2, window_bounds = array<i64: 1, 1, 18, 18, 4>}, {pipeline_mode = #tpu.pipeline_mode<synchronous>, transform_indices = @transform_3, window_bounds = array<i64: 128, 128>}, {pipeline_mode = #tpu.pipeline_mode<synchronous>, transform_indices = @transform_4, window_bounds = array<i64: 1, 128>}, {transform_indices = @transform_5, window_bounds = array<i64: 1, 1, 128>}, {pipeline_mode = #tpu.pipeline_mode<synchronous>, transform_indices = @transform_6, window_bounds = array<i64: 128, 128>}, {pipeline_mode = #tpu.pipeline_mode<synchronous>, transform_indices = @transform_7, window_bounds = array<i64: 1, 128>}, {pipeline_mode = #tpu.pipeline_mode<synchronous>, transform_indices = @transform_8, window_bounds = array<i64: 128, 128>}, {pipeline_mode = #tpu.pipeline_mode<synchronous>, transform_indices = @transform_9, window_bounds = array<i64: 128, 128>}, {pipeline_mode = #tpu.pipeline_mode<synchronous>, transform_indices = @transform_10, window_bounds = array<i64: 1, 128>}, {transform_indices = @transform_11, window_bounds = array<i64: 1, 1, 128>}, {transform_indices = @transform_12, window_bounds = array<i64: 1, 1, 128>}, {transform_indices = @transform_13, window_bounds = array<i64: 1, 1, 128>}]} {
    %c0_i32 = arith.constant 0 : i32
    %0 = arith.cmpi eq, %arg1, %c0_i32 : i32
    %1 = arith.extui %0 : i1 to i32
    %c0_i32_0 = arith.constant 0 : i32
    %2 = arith.cmpi ne, %1, %c0_i32_0 : i32
    scf.if %2 {
      %cst_58 = arith.constant 0.000000e+00 : f32
      %108 = vector.broadcast %cst_58 : f32 to vector<1x128xf32>
      %c0_59 = arith.constant 0 : index
      %c0_60 = arith.constant 0 : index
      %109 = vector.load %arg16[%c0_59, %c0_60] : memref<1x128xf32, #tpu.memory_space<vmem>>, vector<1x128xf32>
      tpu.vector_store %arg16[%c0_59, %c0_60], %108 {strides = array<i32>} : memref<1x128xf32, #tpu.memory_space<vmem>>, vector<1x128xf32>,
    } else {
    }
    %cst = arith.constant 0.000000e+00 : bf16
    %3 = vector.broadcast %cst : bf16 to vector<256x20xbf16>
    %c0 = arith.constant 0 : index
    %c108 = arith.constant 108 : index
    %4 = vector.load %arg17[%c0, %c108] : memref<256x128xbf16, #tpu.memory_space<vmem>>, vector<256x20xbf16>
    tpu.vector_store %arg17[%c0, %c108], %3 {strides = array<i32>} : memref<256x128xbf16, #tpu.memory_space<vmem>>, vector<256x20xbf16>,
    %c0_1 = arith.constant 0 : index
    %c0_2 = arith.constant 0 : index
    %c0_3 = arith.constant 0 : index
    %c0_4 = arith.constant 0 : index
    %c0_5 = arith.constant 0 : index
    %5 = vector.load %arg2[%c0_1, %c0_2, %c0_3, %c0_4, %c0_5] : memref<1x1x18x18x4xbf16, #tpu.memory_space<vmem>>, vector<1x1x18x18x4xbf16>
    %6 = vector.shape_cast %5 : vector<1x1x18x18x4xbf16> to vector<18x18x4xbf16>
    %c0_6 = arith.constant 0 : index
    %c0_7 = arith.constant 0 : index
    %c0_8 = arith.constant 0 : index
    %c0_9 = arith.constant 0 : index
    %c0_10 = arith.constant 0 : index
    %7 = vector.load %arg3[%c0_6, %c0_7, %c0_8, %c0_9, %c0_10] : memref<1x1x18x18x4xbf16, #tpu.memory_space<vmem>>, vector<1x1x18x18x4xbf16>
    %8 = vector.shape_cast %7 : vector<1x1x18x18x4xbf16> to vector<18x18x4xbf16>
    %c0_11 = arith.constant 0 : index
    %c0_12 = arith.constant 0 : index
    %c0_13 = arith.constant 0 : index
    %c0_14 = arith.constant 0 : index
    %c0_15 = arith.constant 0 : index
    %9 = vector.load %arg4[%c0_11, %c0_12, %c0_13, %c0_14, %c0_15] : memref<1x1x18x18x4xbf16, #tpu.memory_space<vmem>>, vector<1x1x18x18x4xbf16>
    %10 = vector.shape_cast %9 : vector<1x1x18x18x4xbf16> to vector<18x18x4xbf16>
    %11 = vector.extract_strided_slice %6 {offsets = [0, 0, 0], sizes = [16, 16, 4], strides = [1, 1, 1]} : vector<18x18x4xbf16> to vector<16x16x4xbf16>
    %12 = vector.shape_cast %11 : vector<16x16x4xbf16> to vector<256x4xbf16>
    %c0_16 = arith.constant 0 : index
    %c0_17 = arith.constant 0 : index
    %13 = vector.load %arg17[%c0_16, %c0_17] : memref<256x128xbf16, #tpu.memory_space<vmem>>, vector<256x4xbf16>
    tpu.vector_store %arg17[%c0_16, %c0_17], %12 {strides = array<i32>} : memref<256x128xbf16, #tpu.memory_space<vmem>>, vector<256x4xbf16>,
    %14 = vector.extract_strided_slice %6 {offsets = [0, 1, 0], sizes = [16, 16, 4], strides = [1, 1, 1]} : vector<18x18x4xbf16> to vector<16x16x4xbf16>
    %15 = vector.shape_cast %14 : vector<16x16x4xbf16> to vector<256x4xbf16>
    %c0_18 = arith.constant 0 : index
    %c4 = arith.constant 4 : index
    %16 = vector.load %arg17[%c0_18, %c4] : memref<256x128xbf16, #tpu.memory_space<vmem>>, vector<256x4xbf16>
    tpu.vector_store %arg17[%c0_18, %c4], %15 {strides = array<i32>} : memref<256x128xbf16, #tpu.memory_space<vmem>>, vector<256x4xbf16>,
    %17 = vector.extract_strided_slice %6 {offsets = [0, 2, 0], sizes = [16, 16, 4], strides = [1, 1, 1]} : vector<18x18x4xbf16> to vector<16x16x4xbf16>
    %18 = vector.shape_cast %17 : vector<16x16x4xbf16> to vector<256x4xbf16>
    %c0_19 = arith.constant 0 : index
    %c8 = arith.constant 8 : index
    %19 = vector.load %arg17[%c0_19, %c8] : memref<256x128xbf16, #tpu.memory_space<vmem>>, vector<256x4xbf16>
    tpu.vector_store %arg17[%c0_19, %c8], %18 {strides = array<i32>} : memref<256x128xbf16, #tpu.memory_space<vmem>>, vector<256x4xbf16>,
    %20 = vector.extract_strided_slice %6 {offsets = [1, 0, 0], sizes = [16, 16, 4], strides = [1, 1, 1]} : vector<18x18x4xbf16> to vector<16x16x4xbf16>
    %21 = vector.shape_cast %20 : vector<16x16x4xbf16> to vector<256x4xbf16>
    %c0_20 = arith.constant 0 : index
    %c12 = arith.constant 12 : index
    %22 = vector.load %arg17[%c0_20, %c12] : memref<256x128xbf16, #tpu.memory_space<vmem>>, vector<256x4xbf16>
    tpu.vector_store %arg17[%c0_20, %c12], %21 {strides = array<i32>} : memref<256x128xbf16, #tpu.memory_space<vmem>>, vector<256x4xbf16>,
    %23 = vector.extract_strided_slice %6 {offsets = [1, 1, 0], sizes = [16, 16, 4], strides = [1, 1, 1]} : vector<18x18x4xbf16> to vector<16x16x4xbf16>
    %24 = vector.shape_cast %23 : vector<16x16x4xbf16> to vector<256x4xbf16>
    %c0_21 = arith.constant 0 : index
    %c16 = arith.constant 16 : index
    %25 = vector.load %arg17[%c0_21, %c16] : memref<256x128xbf16, #tpu.memory_space<vmem>>, vector<256x4xbf16>
    tpu.vector_store %arg17[%c0_21, %c16], %24 {strides = array<i32>} : memref<256x128xbf16, #tpu.memory_space<vmem>>, vector<256x4xbf16>,
    %26 = vector.extract_strided_slice %6 {offsets = [1, 2, 0], sizes = [16, 16, 4], strides = [1, 1, 1]} : vector<18x18x4xbf16> to vector<16x16x4xbf16>
    %27 = vector.shape_cast %26 : vector<16x16x4xbf16> to vector<256x4xbf16>
    %c0_22 = arith.constant 0 : index
    %c20 = arith.constant 20 : index
    %28 = vector.load %arg17[%c0_22, %c20] : memref<256x128xbf16, #tpu.memory_space<vmem>>, vector<256x4xbf16>
    tpu.vector_store %arg17[%c0_22, %c20], %27 {strides = array<i32>} : memref<256x128xbf16, #tpu.memory_space<vmem>>, vector<256x4xbf16>,
    %29 = vector.extract_strided_slice %6 {offsets = [2, 0, 0], sizes = [16, 16, 4], strides = [1, 1, 1]} : vector<18x18x4xbf16> to vector<16x16x4xbf16>
    %30 = vector.shape_cast %29 : vector<16x16x4xbf16> to vector<256x4xbf16>
    %c0_23 = arith.constant 0 : index
    %c24 = arith.constant 24 : index
    %31 = vector.load %arg17[%c0_23, %c24] : memref<256x128xbf16, #tpu.memory_space<vmem>>, vector<256x4xbf16>
    tpu.vector_store %arg17[%c0_23, %c24], %30 {strides = array<i32>} : memref<256x128xbf16, #tpu.memory_space<vmem>>, vector<256x4xbf16>,
    %32 = vector.extract_strided_slice %6 {offsets = [2, 1, 0], sizes = [16, 16, 4], strides = [1, 1, 1]} : vector<18x18x4xbf16> to vector<16x16x4xbf16>
    %33 = vector.shape_cast %32 : vector<16x16x4xbf16> to vector<256x4xbf16>
    %c0_24 = arith.constant 0 : index
    %c28 = arith.constant 28 : index
    %34 = vector.load %arg17[%c0_24, %c28] : memref<256x128xbf16, #tpu.memory_space<vmem>>, vector<256x4xbf16>
    tpu.vector_store %arg17[%c0_24, %c28], %33 {strides = array<i32>} : memref<256x128xbf16, #tpu.memory_space<vmem>>, vector<256x4xbf16>,
    %35 = vector.extract_strided_slice %6 {offsets = [2, 2, 0], sizes = [16, 16, 4], strides = [1, 1, 1]} : vector<18x18x4xbf16> to vector<16x16x4xbf16>
    %36 = vector.shape_cast %35 : vector<16x16x4xbf16> to vector<256x4xbf16>
    %c0_25 = arith.constant 0 : index
    %c32 = arith.constant 32 : index
    %37 = vector.load %arg17[%c0_25, %c32] : memref<256x128xbf16, #tpu.memory_space<vmem>>, vector<256x4xbf16>
    tpu.vector_store %arg17[%c0_25, %c32], %36 {strides = array<i32>} : memref<256x128xbf16, #tpu.memory_space<vmem>>, vector<256x4xbf16>,
    %38 = vector.extract_strided_slice %8 {offsets = [0, 0, 0], sizes = [16, 16, 4], strides = [1, 1, 1]} : vector<18x18x4xbf16> to vector<16x16x4xbf16>
    %39 = vector.shape_cast %38 : vector<16x16x4xbf16> to vector<256x4xbf16>
    %c0_26 = arith.constant 0 : index
    %c36 = arith.constant 36 : index
    %40 = vector.load %arg17[%c0_26, %c36] : memref<256x128xbf16, #tpu.memory_space<vmem>>, vector<256x4xbf16>
    tpu.vector_store %arg17[%c0_26, %c36], %39 {strides = array<i32>} : memref<256x128xbf16, #tpu.memory_space<vmem>>, vector<256x4xbf16>,
    %41 = vector.extract_strided_slice %8 {offsets = [0, 1, 0], sizes = [16, 16, 4], strides = [1, 1, 1]} : vector<18x18x4xbf16> to vector<16x16x4xbf16>
    %42 = vector.shape_cast %41 : vector<16x16x4xbf16> to vector<256x4xbf16>
    %c0_27 = arith.constant 0 : index
    %c40 = arith.constant 40 : index
    %43 = vector.load %arg17[%c0_27, %c40] : memref<256x128xbf16, #tpu.memory_space<vmem>>, vector<256x4xbf16>
    tpu.vector_store %arg17[%c0_27, %c40], %42 {strides = array<i32>} : memref<256x128xbf16, #tpu.memory_space<vmem>>, vector<256x4xbf16>,
    %44 = vector.extract_strided_slice %8 {offsets = [0, 2, 0], sizes = [16, 16, 4], strides = [1, 1, 1]} : vector<18x18x4xbf16> to vector<16x16x4xbf16>
    %45 = vector.shape_cast %44 : vector<16x16x4xbf16> to vector<256x4xbf16>
    %c0_28 = arith.constant 0 : index
    %c44 = arith.constant 44 : index
    %46 = vector.load %arg17[%c0_28, %c44] : memref<256x128xbf16, #tpu.memory_space<vmem>>, vector<256x4xbf16>
    tpu.vector_store %arg17[%c0_28, %c44], %45 {strides = array<i32>} : memref<256x128xbf16, #tpu.memory_space<vmem>>, vector<256x4xbf16>,
    %47 = vector.extract_strided_slice %8 {offsets = [1, 0, 0], sizes = [16, 16, 4], strides = [1, 1, 1]} : vector<18x18x4xbf16> to vector<16x16x4xbf16>
    %48 = vector.shape_cast %47 : vector<16x16x4xbf16> to vector<256x4xbf16>
    %c0_29 = arith.constant 0 : index
    %c48 = arith.constant 48 : index
    %49 = vector.load %arg17[%c0_29, %c48] : memref<256x128xbf16, #tpu.memory_space<vmem>>, vector<256x4xbf16>
    tpu.vector_store %arg17[%c0_29, %c48], %48 {strides = array<i32>} : memref<256x128xbf16, #tpu.memory_space<vmem>>, vector<256x4xbf16>,
    %50 = vector.extract_strided_slice %8 {offsets = [1, 1, 0], sizes = [16, 16, 4], strides = [1, 1, 1]} : vector<18x18x4xbf16> to vector<16x16x4xbf16>
    %51 = vector.shape_cast %50 : vector<16x16x4xbf16> to vector<256x4xbf16>
    %c0_30 = arith.constant 0 : index
    %c52 = arith.constant 52 : index
    %52 = vector.load %arg17[%c0_30, %c52] : memref<256x128xbf16, #tpu.memory_space<vmem>>, vector<256x4xbf16>
    tpu.vector_store %arg17[%c0_30, %c52], %51 {strides = array<i32>} : memref<256x128xbf16, #tpu.memory_space<vmem>>, vector<256x4xbf16>,
    %53 = vector.extract_strided_slice %8 {offsets = [1, 2, 0], sizes = [16, 16, 4], strides = [1, 1, 1]} : vector<18x18x4xbf16> to vector<16x16x4xbf16>
    %54 = vector.shape_cast %53 : vector<16x16x4xbf16> to vector<256x4xbf16>
    %c0_31 = arith.constant 0 : index
    %c56 = arith.constant 56 : index
    %55 = vector.load %arg17[%c0_31, %c56] : memref<256x128xbf16, #tpu.memory_space<vmem>>, vector<256x4xbf16>
    tpu.vector_store %arg17[%c0_31, %c56], %54 {strides = array<i32>} : memref<256x128xbf16, #tpu.memory_space<vmem>>, vector<256x4xbf16>,
    %56 = vector.extract_strided_slice %8 {offsets = [2, 0, 0], sizes = [16, 16, 4], strides = [1, 1, 1]} : vector<18x18x4xbf16> to vector<16x16x4xbf16>
    %57 = vector.shape_cast %56 : vector<16x16x4xbf16> to vector<256x4xbf16>
    %c0_32 = arith.constant 0 : index
    %c60 = arith.constant 60 : index
    %58 = vector.load %arg17[%c0_32, %c60] : memref<256x128xbf16, #tpu.memory_space<vmem>>, vector<256x4xbf16>
    tpu.vector_store %arg17[%c0_32, %c60], %57 {strides = array<i32>} : memref<256x128xbf16, #tpu.memory_space<vmem>>, vector<256x4xbf16>,
    %59 = vector.extract_strided_slice %8 {offsets = [2, 1, 0], sizes = [16, 16, 4], strides = [1, 1, 1]} : vector<18x18x4xbf16> to vector<16x16x4xbf16>
    %60 = vector.shape_cast %59 : vector<16x16x4xbf16> to vector<256x4xbf16>
    %c0_33 = arith.constant 0 : index
    %c64 = arith.constant 64 : index
    %61 = vector.load %arg17[%c0_33, %c64] : memref<256x128xbf16, #tpu.memory_space<vmem>>, vector<256x4xbf16>
    tpu.vector_store %arg17[%c0_33, %c64], %60 {strides = array<i32>} : memref<256x128xbf16, #tpu.memory_space<vmem>>, vector<256x4xbf16>,
    %62 = vector.extract_strided_slice %8 {offsets = [2, 2, 0], sizes = [16, 16, 4], strides = [1, 1, 1]} : vector<18x18x4xbf16> to vector<16x16x4xbf16>
    %63 = vector.shape_cast %62 : vector<16x16x4xbf16> to vector<256x4xbf16>
    %c0_34 = arith.constant 0 : index
    %c68 = arith.constant 68 : index
    %64 = vector.load %arg17[%c0_34, %c68] : memref<256x128xbf16, #tpu.memory_space<vmem>>, vector<256x4xbf16>
    tpu.vector_store %arg17[%c0_34, %c68], %63 {strides = array<i32>} : memref<256x128xbf16, #tpu.memory_space<vmem>>, vector<256x4xbf16>,
    %65 = vector.extract_strided_slice %10 {offsets = [0, 0, 0], sizes = [16, 16, 4], strides = [1, 1, 1]} : vector<18x18x4xbf16> to vector<16x16x4xbf16>
    %66 = vector.shape_cast %65 : vector<16x16x4xbf16> to vector<256x4xbf16>
    %c0_35 = arith.constant 0 : index
    %c72 = arith.constant 72 : index
    %67 = vector.load %arg17[%c0_35, %c72] : memref<256x128xbf16, #tpu.memory_space<vmem>>, vector<256x4xbf16>
    tpu.vector_store %arg17[%c0_35, %c72], %66 {strides = array<i32>} : memref<256x128xbf16, #tpu.memory_space<vmem>>, vector<256x4xbf16>,
    %68 = vector.extract_strided_slice %10 {offsets = [0, 1, 0], sizes = [16, 16, 4], strides = [1, 1, 1]} : vector<18x18x4xbf16> to vector<16x16x4xbf16>
    %69 = vector.shape_cast %68 : vector<16x16x4xbf16> to vector<256x4xbf16>
    %c0_36 = arith.constant 0 : index
    %c76 = arith.constant 76 : index
    %70 = vector.load %arg17[%c0_36, %c76] : memref<256x128xbf16, #tpu.memory_space<vmem>>, vector<256x4xbf16>
    tpu.vector_store %arg17[%c0_36, %c76], %69 {strides = array<i32>} : memref<256x128xbf16, #tpu.memory_space<vmem>>, vector<256x4xbf16>,
    %71 = vector.extract_strided_slice %10 {offsets = [0, 2, 0], sizes = [16, 16, 4], strides = [1, 1, 1]} : vector<18x18x4xbf16> to vector<16x16x4xbf16>
    %72 = vector.shape_cast %71 : vector<16x16x4xbf16> to vector<256x4xbf16>
    %c0_37 = arith.constant 0 : index
    %c80 = arith.constant 80 : index
    %73 = vector.load %arg17[%c0_37, %c80] : memref<256x128xbf16, #tpu.memory_space<vmem>>, vector<256x4xbf16>
    tpu.vector_store %arg17[%c0_37, %c80], %72 {strides = array<i32>} : memref<256x128xbf16, #tpu.memory_space<vmem>>, vector<256x4xbf16>,
    %74 = vector.extract_strided_slice %10 {offsets = [1, 0, 0], sizes = [16, 16, 4], strides = [1, 1, 1]} : vector<18x18x4xbf16> to vector<16x16x4xbf16>
    %75 = vector.shape_cast %74 : vector<16x16x4xbf16> to vector<256x4xbf16>
    %c0_38 = arith.constant 0 : index
    %c84 = arith.constant 84 : index
    %76 = vector.load %arg17[%c0_38, %c84] : memref<256x128xbf16, #tpu.memory_space<vmem>>, vector<256x4xbf16>
    tpu.vector_store %arg17[%c0_38, %c84], %75 {strides = array<i32>} : memref<256x128xbf16, #tpu.memory_space<vmem>>, vector<256x4xbf16>,
    %77 = vector.extract_strided_slice %10 {offsets = [1, 1, 0], sizes = [16, 16, 4], strides = [1, 1, 1]} : vector<18x18x4xbf16> to vector<16x16x4xbf16>
    %78 = vector.shape_cast %77 : vector<16x16x4xbf16> to vector<256x4xbf16>
    %c0_39 = arith.constant 0 : index
    %c88 = arith.constant 88 : index
    %79 = vector.load %arg17[%c0_39, %c88] : memref<256x128xbf16, #tpu.memory_space<vmem>>, vector<256x4xbf16>
    tpu.vector_store %arg17[%c0_39, %c88], %78 {strides = array<i32>} : memref<256x128xbf16, #tpu.memory_space<vmem>>, vector<256x4xbf16>,
    %80 = vector.extract_strided_slice %10 {offsets = [1, 2, 0], sizes = [16, 16, 4], strides = [1, 1, 1]} : vector<18x18x4xbf16> to vector<16x16x4xbf16>
    %81 = vector.shape_cast %80 : vector<16x16x4xbf16> to vector<256x4xbf16>
    %c0_40 = arith.constant 0 : index
    %c92 = arith.constant 92 : index
    %82 = vector.load %arg17[%c0_40, %c92] : memref<256x128xbf16, #tpu.memory_space<vmem>>, vector<256x4xbf16>
    tpu.vector_store %arg17[%c0_40, %c92], %81 {strides = array<i32>} : memref<256x128xbf16, #tpu.memory_space<vmem>>, vector<256x4xbf16>,
    %83 = vector.extract_strided_slice %10 {offsets = [2, 0, 0], sizes = [16, 16, 4], strides = [1, 1, 1]} : vector<18x18x4xbf16> to vector<16x16x4xbf16>
    %84 = vector.shape_cast %83 : vector<16x16x4xbf16> to vector<256x4xbf16>
    %c0_41 = arith.constant 0 : index
    %c96 = arith.constant 96 : index
    %85 = vector.load %arg17[%c0_41, %c96] : memref<256x128xbf16, #tpu.memory_space<vmem>>, vector<256x4xbf16>
    tpu.vector_store %arg17[%c0_41, %c96], %84 {strides = array<i32>} : memref<256x128xbf16, #tpu.memory_space<vmem>>, vector<256x4xbf16>,
    %86 = vector.extract_strided_slice %10 {offsets = [2, 1, 0], sizes = [16, 16, 4], strides = [1, 1, 1]} : vector<18x18x4xbf16> to vector<16x16x4xbf16>
    %87 = vector.shape_cast %86 : vector<16x16x4xbf16> to vector<256x4xbf16>
    %c0_42 = arith.constant 0 : index
    %c100 = arith.constant 100 : index
    %88 = vector.load %arg17[%c0_42, %c100] : memref<256x128xbf16, #tpu.memory_space<vmem>>, vector<256x4xbf16>
    tpu.vector_store %arg17[%c0_42, %c100], %87 {strides = array<i32>} : memref<256x128xbf16, #tpu.memory_space<vmem>>, vector<256x4xbf16>,
    %89 = vector.extract_strided_slice %10 {offsets = [2, 2, 0], sizes = [16, 16, 4], strides = [1, 1, 1]} : vector<18x18x4xbf16> to vector<16x16x4xbf16>
    %90 = vector.shape_cast %89 : vector<16x16x4xbf16> to vector<256x4xbf16>
    %c0_43 = arith.constant 0 : index
    %c104 = arith.constant 104 : index
    %91 = vector.load %arg17[%c0_43, %c104] : memref<256x128xbf16, #tpu.memory_space<vmem>>, vector<256x4xbf16>
    tpu.vector_store %arg17[%c0_43, %c104], %90 {strides = array<i32>} : memref<256x128xbf16, #tpu.memory_space<vmem>>, vector<256x4xbf16>,
    %c0_44 = arith.constant 0 : index
    %c0_45 = arith.constant 0 : index
    %92 = vector.load %arg17[%c0_44, %c0_45] : memref<256x128xbf16, #tpu.memory_space<vmem>>, vector<256x128xbf16>
    %c0_46 = arith.constant 0 : index
    %c0_47 = arith.constant 0 : index
    %93 = vector.load %arg5[%c0_46, %c0_47] : memref<128x128xbf16, #tpu.memory_space<vmem>>, vector<128x128xbf16>
    %cst_48 = arith.constant dense<0.000000e+00> : vector<256x128xf32>
    %94 = tpu.matmul %92, %93, %cst_48 {dimension_numbers = #tpu.dot_dimension_numbers<[1], [0], [0], [1], [0, 0, 1, 1], [], []>} : vector<256x128xbf16>, vector<128x128xbf16>, vector<256x128xf32> -> vector<256x128xf32>
    %c0_49 = arith.constant 0 : index
    %c0_50 = arith.constant 0 : index
    %95 = vector.load %arg6[%c0_49, %c0_50] : memref<1x128xf32, #tpu.memory_space<vmem>>, vector<1x128xf32>
    %96 = vector.broadcast %95 : vector<1x128xf32> to vector<256x128xf32>
    %97 = arith.addf %94, %96 : vector<256x128xf32>
    %cst_51 = arith.constant 0.000000e+00 : f32
    %98 = vector.broadcast %cst_51 : f32 to vector<256x128xf32>
    %99 = arith.maximumf %97, %98 : vector<256x128xf32>
    %c0_52 = arith.constant 0 : index
    %c0_53 = arith.constant 0 : index
    %100 = vector.load %arg16[%c0_52, %c0_53] : memref<1x128xf32, #tpu.memory_space<vmem>>, vector<1x128xf32>
    %cst_54 = arith.constant dense<0.000000e+00> : vector<128xf32>
    %101 = vector.multi_reduction <add>, %99, %cst_54 [0] : vector<256x128xf32> to vector<128xf32>
    %102 = vector.shape_cast %101 : vector<128xf32> to vector<1x128xf32>
    %103 = arith.addf %100, %102 : vector<1x128xf32>
    %c0_55 = arith.constant 0 : index
    %c0_56 = arith.constant 0 : index
    %104 = vector.load %arg16[%c0_55, %c0_56] : memref<1x128xf32, #tpu.memory_space<vmem>>, vector<1x128xf32>
    tpu.vector_store %arg16[%c0_55, %c0_56], %103 {strides = array<i32>} : memref<1x128xf32, #tpu.memory_space<vmem>>, vector<1x128xf32>,
    %c3_i32 = arith.constant 3 : i32
    %105 = arith.cmpi eq, %arg1, %c3_i32 : i32
    %106 = arith.extui %105 : i1 to i32
    %c0_i32_57 = arith.constant 0 : i32
    %107 = arith.cmpi ne, %106, %c0_i32_57 : i32
    scf.if %107 {
      %c0_58 = arith.constant 0 : index
      %c0_59 = arith.constant 0 : index
      %108 = vector.load %arg16[%c0_58, %c0_59] : memref<1x128xf32, #tpu.memory_space<vmem>>, vector<1x128xf32>
      %cst_60 = arith.constant 9.765625E-4 : f32
      %109 = vector.broadcast %cst_60 : f32 to vector<1x128xf32>
      %110 = arith.mulf %108, %109 : vector<1x128xf32>
      %c0_61 = arith.constant 0 : index
      %c0_62 = arith.constant 0 : index
      %c0_63 = arith.constant 0 : index
      %111 = vector.load %arg13[%c0_61, %c0_62, %c0_63] : memref<1x1x128xf32, #tpu.memory_space<vmem>>, vector<1x1x128xf32>
      %112 = vector.shape_cast %111 : vector<1x1x128xf32> to vector<1x128xf32>
      %113 = vector.shape_cast %110 : vector<1x128xf32> to vector<1x1x128xf32>
      tpu.vector_store %arg13[%c0_61, %c0_62, %c0_63], %113 {strides = array<i32>} : memref<1x1x128xf32, #tpu.memory_space<vmem>>, vector<1x1x128xf32>,
      %114 = arith.truncf %110 : vector<1x128xf32> to vector<1x128xbf16>
      %c0_64 = arith.constant 0 : index
      %c0_65 = arith.constant 0 : index
      %c0_66 = arith.constant 0 : index
      %115 = vector.load %arg7[%c0_64, %c0_65, %c0_66] : memref<1x1x128xbf16, #tpu.memory_space<vmem>>, vector<1x1x128xbf16>
      %116 = vector.shape_cast %115 : vector<1x1x128xbf16> to vector<1x128xbf16>
      %c0_67 = arith.constant 0 : index
      %c0_68 = arith.constant 0 : index
      %117 = vector.load %arg8[%c0_67, %c0_68] : memref<128x128xbf16, #tpu.memory_space<vmem>>, vector<128x128xbf16>
      %cst_69 = arith.constant dense<0.000000e+00> : vector<1x128xf32>
      %118 = tpu.matmul %114, %117, %cst_69 {dimension_numbers = #tpu.dot_dimension_numbers<[1], [0], [0], [1], [0, 0, 1, 1], [], []>} : vector<1x128xbf16>, vector<128x128xbf16>, vector<1x128xf32> -> vector<1x128xf32>
      %c0_70 = arith.constant 0 : index
      %c0_71 = arith.constant 0 : index
      %119 = vector.load %arg9[%c0_70, %c0_71] : memref<1x128xf32, #tpu.memory_space<vmem>>, vector<1x128xf32>
      %120 = arith.addf %118, %119 : vector<1x128xf32>
      %c0_72 = arith.constant 0 : index
      %c0_73 = arith.constant 0 : index
      %c0_74 = arith.constant 0 : index
      %121 = vector.load %arg14[%c0_72, %c0_73, %c0_74] : memref<1x1x128xf32, #tpu.memory_space<vmem>>, vector<1x1x128xf32>
      %122 = vector.shape_cast %121 : vector<1x1x128xf32> to vector<1x128xf32>
      %123 = vector.shape_cast %120 : vector<1x128xf32> to vector<1x1x128xf32>
      tpu.vector_store %arg14[%c0_72, %c0_73, %c0_74], %123 {strides = array<i32>} : memref<1x1x128xf32, #tpu.memory_space<vmem>>, vector<1x1x128xf32>,
      %c0_75 = arith.constant 0 : index
      %c0_76 = arith.constant 0 : index
      %124 = vector.load %arg10[%c0_75, %c0_76] : memref<128x128xbf16, #tpu.memory_space<vmem>>, vector<128x128xbf16>
      %cst_77 = arith.constant dense<0.000000e+00> : vector<1x128xf32>
      %125 = tpu.matmul %114, %124, %cst_77 {dimension_numbers = #tpu.dot_dimension_numbers<[1], [0], [0], [1], [0, 0, 1, 1], [], []>} : vector<1x128xbf16>, vector<128x128xbf16>, vector<1x128xf32> -> vector<1x128xf32>
      %c0_78 = arith.constant 0 : index
      %c0_79 = arith.constant 0 : index
      %126 = vector.load %arg11[%c0_78, %c0_79] : memref<128x128xbf16, #tpu.memory_space<vmem>>, vector<128x128xbf16>
      %cst_80 = arith.constant dense<0.000000e+00> : vector<1x128xf32>
      %127 = tpu.matmul %116, %126, %cst_80 {dimension_numbers = #tpu.dot_dimension_numbers<[1], [0], [0], [1], [0, 0, 1, 1], [], []>} : vector<1x128xbf16>, vector<128x128xbf16>, vector<1x128xf32> -> vector<1x128xf32>
      %128 = arith.addf %125, %127 : vector<1x128xf32>
      %c0_81 = arith.constant 0 : index
      %c0_82 = arith.constant 0 : index
      %129 = vector.load %arg12[%c0_81, %c0_82] : memref<1x128xf32, #tpu.memory_space<vmem>>, vector<1x128xf32>
      %130 = arith.addf %128, %129 : vector<1x128xf32>
      %c0_83 = arith.constant 0 : index
      %c0_84 = arith.constant 0 : index
      %c0_85 = arith.constant 0 : index
      %131 = vector.load %arg15[%c0_83, %c0_84, %c0_85] : memref<1x1x128xf32, #tpu.memory_space<vmem>>, vector<1x1x128xf32>
      %132 = vector.shape_cast %131 : vector<1x1x128xf32> to vector<1x128xf32>
      %133 = vector.shape_cast %130 : vector<1x128xf32> to vector<1x1x128xf32>
      tpu.vector_store %arg15[%c0_83, %c0_84, %c0_85], %133 {strides = array<i32>} : memref<1x1x128xf32, #tpu.memory_space<vmem>>, vector<1x1x128xf32>,
    } else {
    }
    return
  }
  func.func @transform_0(%arg0: i32, %arg1: i32) -> (i32, i32, i32, i32, i32) {
    %c0_i32 = arith.constant 0 : i32
    %c0_i32_0 = arith.constant 0 : i32
    %c0_i32_1 = arith.constant 0 : i32
    %c0_i32_2 = arith.constant 0 : i32
    return %arg0, %arg1, %c0_i32, %c0_i32_0, %c0_i32_1 : i32, i32, i32, i32, i32
  }
  func.func @transform_1(%arg0: i32, %arg1: i32) -> (i32, i32, i32, i32, i32) {
    %c1_i32 = arith.constant 1 : i32
    %0 = arith.addi %arg1, %c1_i32 : i32
    %c0_i32 = arith.constant 0 : i32
    %c0_i32_0 = arith.constant 0 : i32
    %c0_i32_1 = arith.constant 0 : i32
    %c0_i32_2 = arith.constant 0 : i32
    return %arg0, %0, %c0_i32, %c0_i32_0, %c0_i32_1 : i32, i32, i32, i32, i32
  }
  func.func @transform_2(%arg0: i32, %arg1: i32) -> (i32, i32, i32, i32, i32) {
    %c2_i32 = arith.constant 2 : i32
    %0 = arith.addi %arg1, %c2_i32 : i32
    %c0_i32 = arith.constant 0 : i32
    %c0_i32_0 = arith.constant 0 : i32
    %c0_i32_1 = arith.constant 0 : i32
    %c0_i32_2 = arith.constant 0 : i32
    return %arg0, %0, %c0_i32, %c0_i32_0, %c0_i32_1 : i32, i32, i32, i32, i32
  }
  func.func @transform_3(%arg0: i32, %arg1: i32) -> (i32, i32) {
    %c0_i32 = arith.constant 0 : i32
    %c0_i32_0 = arith.constant 0 : i32
    %c0_i32_1 = arith.constant 0 : i32
    return %c0_i32, %c0_i32_0 : i32, i32
  }
  func.func @transform_4(%arg0: i32, %arg1: i32) -> (i32, i32) {
    %c0_i32 = arith.constant 0 : i32
    %c0_i32_0 = arith.constant 0 : i32
    %c0_i32_1 = arith.constant 0 : i32
    return %c0_i32, %c0_i32_0 : i32, i32
  }
  func.func @transform_5(%arg0: i32, %arg1: i32) -> (i32, i32, i32) {
    %c0_i32 = arith.constant 0 : i32
    %c0_i32_0 = arith.constant 0 : i32
    %c0_i32_1 = arith.constant 0 : i32
    return %arg0, %c0_i32, %c0_i32_0 : i32, i32, i32
  }
  func.func @transform_6(%arg0: i32, %arg1: i32) -> (i32, i32) {
    %c0_i32 = arith.constant 0 : i32
    %c0_i32_0 = arith.constant 0 : i32
    %c0_i32_1 = arith.constant 0 : i32
    return %c0_i32, %c0_i32_0 : i32, i32
  }
  func.func @transform_7(%arg0: i32, %arg1: i32) -> (i32, i32) {
    %c0_i32 = arith.constant 0 : i32
    %c0_i32_0 = arith.constant 0 : i32
    %c0_i32_1 = arith.constant 0 : i32
    return %c0_i32, %c0_i32_0 : i32, i32
  }
  func.func @transform_8(%arg0: i32, %arg1: i32) -> (i32, i32) {
    %c0_i32 = arith.constant 0 : i32
    %c0_i32_0 = arith.constant 0 : i32
    %c0_i32_1 = arith.constant 0 : i32
    return %c0_i32, %c0_i32_0 : i32, i32
  }
  func.func @transform_9(%arg0: i32, %arg1: i32) -> (i32, i32) {
    %c0_i32 = arith.constant 0 : i32
    %c0_i32_0 = arith.constant 0 : i32
    %c0_i32_1 = arith.constant 0 : i32
    return %c0_i32, %c0_i32_0 : i32, i32
  }
  func.func @transform_10(%arg0: i32, %arg1: i32) -> (i32, i32) {
    %c0_i32 = arith.constant 0 : i32
    %c0_i32_0 = arith.constant 0 : i32
    %c0_i32_1 = arith.constant 0 : i32
    return %c0_i32, %c0_i32_0 : i32, i32
  }
  func.func @transform_11(%arg0: i32, %arg1: i32) -> (i32, i32, i32) {
    %c0_i32 = arith.constant 0 : i32
    %c0_i32_0 = arith.constant 0 : i32
    %c0_i32_1 = arith.constant 0 : i32
    return %arg0, %c0_i32, %c0_i32_0 : i32, i32, i32
  }
  func.func @transform_12(%arg0: i32, %arg1: i32) -> (i32, i32, i32) {
    %c0_i32 = arith.constant 0 : i32
    %c0_i32_0 = arith.constant 0 : i32
    %c0_i32_1 = arith.constant 0 : i32
    return %arg0, %c0_i32, %c0_i32_0 : i32, i32, i32
  }
  func.func @transform_13(%arg0: i32, %arg1: i32) -> (i32, i32, i32) {
    %c0_i32 = arith.constant 0 : i32
    %c0_i32_0 = arith.constant 0 : i32
    %c0_i32_1 = arith.constant 0 : i32
    return %arg0, %c0_i32, %c0_i32_0 : i32, i32, i32
  }
}

</mosaic_0001>

<llo_original>
// kernel: model_forward.1
$region0: #{model_forward.1}
  #allocation0 [shape = 'u32[]', space=smem, size = 0x4, offset = 0x4, fixed_abs, tag = 'smem constant byte address 0x4 - core index']
  #allocation1 [shape = 'u32[144,128]{1,0:T(1,128)}', space=vmem, size = 0x12000, scoped, tag = 'internal scratch']
  #allocation2 [shape = 'f32[1,128]{1,0:T(1,128)}', space=vmem, size = 0x200, scoped, tag = 'scratch operand']
  #allocation3 [shape = 'bf16[256,128]{1,0:T(16,128)(2,1)}', space=vmem, size = 0x10000, scoped, tag = 'scratch operand']
  %s0 = inlined_call_operand.vmem [shape: bf16[2,6,18,18,4], index: 0, kind: input, shape index: {}, may-alias: {0,1,2}]
  %s1 = inlined_call_operand.vmem [shape: bf16[2,6,18,18,4], index: 1, kind: input, shape index: {}, may-alias: {0,1,2}]
  %s2 = inlined_call_operand.vmem [shape: bf16[2,6,18,18,4], index: 2, kind: input, shape index: {}, may-alias: {0,1,2}]
  %s3 = inlined_call_operand.vmem [shape: bf16[128,128], index: 3, kind: input, shape index: {}]
  %s4 = inlined_call_operand.vmem [shape: f32[1,128], index: 4, kind: input, shape index: {}]
  %s5 = inlined_call_operand.vmem [shape: bf16[2,1,128], index: 5, kind: input, shape index: {}]
  %s6 = inlined_call_operand.vmem [shape: bf16[128,128], index: 6, kind: input, shape index: {}]
  %s7 = inlined_call_operand.vmem [shape: f32[1,128], index: 7, kind: input, shape index: {}]
  %s8 = inlined_call_operand.vmem [shape: bf16[128,128], index: 8, kind: input, shape index: {}]
  %s9 = inlined_call_operand.vmem [shape: bf16[128,128], index: 9, kind: input, shape index: {}]
  %s10 = inlined_call_operand.vmem [shape: f32[1,128], index: 10, kind: input, shape index: {}]
  %s11 = inlined_call_operand.hbm [shape: f32[2,1,128], index: 11, kind: output, shape index: {0}]
  %s12 = inlined_call_operand.hbm [shape: f32[2,1,128], index: 12, kind: output, shape index: {1}]
  %s13 = inlined_call_operand.hbm [shape: f32[2,1,128], index: 13, kind: output, shape index: {2}]
  %14 = xla_tuple %s11, %s12, %s13
  %s15 = sld [smem:[#allocation0]]
  $region101: #{model_forward.1} parent=0
    _
  %s17 = ssub.s32 1, %s15
  %s18 = scalar_select 0, %s17, %s15
  $region1: #{model_forward.1} parent=0
    #allocation4 [shape = 'u8[1024]{0}', space=vmem, size = 0x400, scoped, tag = 'output window, operand 0']
    #allocation5 [shape = 's32[2]{0}', space=sflag, size = 0x8, scoped, tag = 'scoped memory for model_forward.1']
    #allocation6 [shape = 'u8[1024]{0}', space=vmem, size = 0x400, scoped, tag = 'output window, operand 1']
    #allocation7 [shape = 's32[2]{0}', space=sflag, size = 0x8, scoped, tag = 'scoped memory for model_forward.1']
    #allocation8 [shape = 'u8[1024]{0}', space=vmem, size = 0x400, scoped, tag = 'output window, operand 2']
    %19 = vsyncpa [#allocation5], 0
    %s20 = scalar_lea.sflag [#allocation5], 1
    %21 = vsyncpa %s20, 0
    %22 = vsyncpa [#allocation7], 0
    %s23 = scalar_lea.sflag [#allocation7], 1
    %24 = vsyncpa %s23, 0
    loop: start=0, step=1, limit=10
    $region2: #{model_forward.1} parent=1 // loop_pre_header
      _
    $region3: #{model_forward.1} parent=1 // loop_header
      %s26 = sphi 0, %s30
      %p27 = scmp.ge.s32.totalorder %s26, 10
      %s33 = sphi 0, %s45
      %s34 = sphi 0, %s41
      %s35 = sphi 0, %s33
      %s36 = sphi 0, %s34
      %s37 = sphi 0, %s35
      %s38 = sphi 0, %s36
      %s50 = sphi 0, %s52
      %s53 = sphi 0, %s50
      %s54 = sphi 0, %s53
      %s70 = sphi 0, %s54
      %s80 = sphi 0, %s82
      %s83 = sphi 0, %s80
      %s84 = sphi 0, %s83
      %s100 = sphi 0, %s84
      %s110 = sphi 0, %s112
      %s113 = sphi 0, %s110
      %s114 = sphi 0, %s113
      %s130 = sphi 0, %s114
      %s134 = sphi 0, %s134
      %s136 = sphi 0, %s134
      %s137 = sphi 0, %s136
      %s151 = sphi 0, %s137
      %s155 = sphi 0, %s155
      %s157 = sphi 0, %s155
      %s158 = sphi 0, %s157
      %s172 = sphi 0, %s158
      %s178 = sphi 0, %s180
      %s181 = sphi 0, %s178
      %s182 = sphi 0, %s181
      %s198 = sphi 0, %s182
      %s202 = sphi 0, %s202
      %s204 = sphi 0, %s202
      %s205 = sphi 0, %s204
      %s219 = sphi 0, %s205
      %s223 = sphi 0, %s223
      %s225 = sphi 0, %s223
      %s226 = sphi 0, %s225
      %s240 = sphi 0, %s226
      %s244 = sphi 0, %s244
      %s246 = sphi 0, %s244
      %s247 = sphi 0, %s246
      %s261 = sphi 0, %s247
      %s265 = sphi 0, %s265
      %s267 = sphi 0, %s265
      %s268 = sphi 0, %s267
      %s282 = sphi 0, %s268
      %s286 = sphi 0, %s286
      %s288 = sphi 0, %s286
      %s289 = sphi 0, %s288
      %s303 = sphi 0, %s289
      %s309 = sphi 0, %s311
      %s312 = sphi 0, %s309
      %s313 = sphi 0, %s312
      %s329 = sphi 0, %s313
      %s335 = sphi 0, %s337
      %s338 = sphi 0, %s335
      %s339 = sphi 0, %s338
      %s355 = sphi 0, %s339
      %s361 = sphi 0, %s363
      %s364 = sphi 0, %s361
      %s365 = sphi 0, %s364
      %s381 = sphi 0, %s365
    $region4: #{model_forward.1} parent=1 // loop_header_branch
      %29 = sbr.rel (%p27) target = $region8
    $region5: #{model_forward.1} parent=1 // loop_body
      %s31 = ssub.s32 %s26, 1
      %s32 = ssub.s32 %s26, 2
      %s39 = sadd.s32 1, %s34
      %p40 = scmp.ge.s32.totalorder %s39, 4
      %s41 = scalar_select %p40, 0, %s39
      %s42 = sadd.s32 1, %s33
      %s43 = scalar_select %p40, %s42, %s33
      %p44 = scmp.ge.s32.totalorder %s43, 2
      %s45 = scalar_select %p44, 0, %s43
      %s46 = ssub.s32 %s33, %s45
      %s47 = ssub.s32 %s34, %s41
      %s48 = sor.u32 %s46, %s47
      %p49 = scmp.eq.s32.totalorder %s48, 0
      %s51 = sadd.s32 %s50, 1
      %s52 = scalar_select %p49, %s50, %s51
      %p55 = pneg %p49
      %p56 = scmp.eq.s32.totalorder %s26, 7
      %p57 = por %p55, %p56
      %p58 = scmp.ne.s32.totalorder %s50, %s53
      %p59 = scmp.eq.s32.totalorder %s26, 0
      %p60 = por %p58, %p59
      %p61 = scmp.ne.s32.totalorder %s50, %s53
      %p62 = scmp.eq.s32.totalorder %s31, 7
      %p63 = por %p61, %p62
      %p64 = scmp.ne.s32.totalorder %s53, %s54
      %p65 = scmp.eq.s32.totalorder %s31, 0
      %p66 = por %p64, %p65
      %p67 = scmp.ne.s32.totalorder %s53, %s54
      %p68 = scmp.eq.s32.totalorder %s32, 7
      %p69 = por %p67, %p68
      %p71 = scmp.ne.s32.totalorder %s54, %s70
      %p72 = scmp.eq.s32.totalorder %s32, 0
      %p73 = por %p71, %p72
      %s74 = sadd.s32 %s34, 1
      %s75 = sadd.s32 %s41, 1
      %s76 = ssub.s32 %s33, %s45
      %s77 = ssub.s32 %s74, %s75
      %s78 = sor.u32 %s76, %s77
      %p79 = scmp.eq.s32.totalorder %s78, 0
      %s81 = sadd.s32 %s80, 1
      %s82 = scalar_select %p79, %s80, %s81
      %p85 = pneg %p79
      %p86 = scmp.eq.s32.totalorder %s26, 7
      %p87 = por %p85, %p86
      %p88 = scmp.ne.s32.totalorder %s80, %s83
      %p89 = scmp.eq.s32.totalorder %s26, 0
      %p90 = por %p88, %p89
      %p91 = scmp.ne.s32.totalorder %s80, %s83
      %p92 = scmp.eq.s32.totalorder %s31, 7
      %p93 = por %p91, %p92
      %p94 = scmp.ne.s32.totalorder %s83, %s84
      %p95 = scmp.eq.s32.totalorder %s31, 0
      %p96 = por %p94, %p95
      %p97 = scmp.ne.s32.totalorder %s83, %s84
      %p98 = scmp.eq.s32.totalorder %s32, 7
      %p99 = por %p97, %p98
      %p101 = scmp.ne.s32.totalorder %s84, %s100
      %p102 = scmp.eq.s32.totalorder %s32, 0
      %p103 = por %p101, %p102
      %s104 = sadd.s32 %s34, 2
      %s105 = sadd.s32 %s41, 2
      %s106 = ssub.s32 %s33, %s45
      %s107 = ssub.s32 %s104, %s105
      %s108 = sor.u32 %s106, %s107
      %p109 = scmp.eq.s32.totalorder %s108, 0
      %s111 = sadd.s32 %s110, 1
      %s112 = scalar_select %p109, %s110, %s111
      %p115 = pneg %p109
      %p116 = scmp.eq.s32.totalorder %s26, 7
      %p117 = por %p115, %p116
      %p118 = scmp.ne.s32.totalorder %s110, %s113
      %p119 = scmp.eq.s32.totalorder %s26, 0
      %p120 = por %p118, %p119
      %p121 = scmp.ne.s32.totalorder %s110, %s113
      %p122 = scmp.eq.s32.totalorder %s31, 7
      %p123 = por %p121, %p122
      %p124 = scmp.ne.s32.totalorder %s113, %s114
      %p125 = scmp.eq.s32.totalorder %s31, 0
      %p126 = por %p124, %p125
      %p127 = scmp.ne.s32.totalorder %s113, %s114
      %p128 = scmp.eq.s32.totalorder %s32, 7
      %p129 = por %p127, %p128
      %p131 = scmp.ne.s32.totalorder %s114, %s130
      %p132 = scmp.eq.s32.totalorder %s32, 0
      %p133 = por %p131, %p132
      %s135 = sadd.s32 %s134, 1
      %p138 = scmp.eq.s32.totalorder %s26, 7
      %p139 = scmp.ne.s32.totalorder %s134, %s136
      %p140 = scmp.eq.s32.totalorder %s26, 0
      %p141 = por %p139, %p140
      %p142 = scmp.ne.s32.totalorder %s134, %s136
      %p143 = scmp.eq.s32.totalorder %s31, 7
      %p144 = por %p142, %p143
      %p145 = scmp.ne.s32.totalorder %s136, %s137
      %p146 = scmp.eq.s32.totalorder %s31, 0
      %p147 = por %p145, %p146
      %p148 = scmp.ne.s32.totalorder %s136, %s137
      %p149 = scmp.eq.s32.totalorder %s32, 7
      %p150 = por %p148, %p149
      %p152 = scmp.ne.s32.totalorder %s137, %s151
      %p153 = scmp.eq.s32.totalorder %s32, 0
      %p154 = por %p152, %p153
      %s156 = sadd.s32 %s155, 1
      %p159 = scmp.eq.s32.totalorder %s26, 7
      %p160 = scmp.ne.s32.totalorder %s155, %s157
      %p161 = scmp.eq.s32.totalorder %s26, 0
      %p162 = por %p160, %p161
      %p163 = scmp.ne.s32.totalorder %s155, %s157
      %p164 = scmp.eq.s32.totalorder %s31, 7
      %p165 = por %p163, %p164
      %p166 = scmp.ne.s32.totalorder %s157, %s158
      %p167 = scmp.eq.s32.totalorder %s31, 0
      %p168 = por %p166, %p167
      %p169 = scmp.ne.s32.totalorder %s157, %s158
      %p170 = scmp.eq.s32.totalorder %s32, 7
      %p171 = por %p169, %p170
      %p173 = scmp.ne.s32.totalorder %s158, %s172
      %p174 = scmp.eq.s32.totalorder %s32, 0
      %p175 = por %p173, %p174
      %s176 = ssub.s32 %s33, %s45
      %p177 = scmp.eq.s32.totalorder %s176, 0
      %s179 = sadd.s32 %s178, 1
      %s180 = scalar_select %p177, %s178, %s179
      %p183 = pneg %p177
      %p184 = scmp.eq.s32.totalorder %s26, 7
      %p185 = por %p183, %p184
      %p186 = scmp.ne.s32.totalorder %s178, %s181
      %p187 = scmp.eq.s32.totalorder %s26, 0
      %p188 = por %p186, %p187
      %p189 = scmp.ne.s32.totalorder %s178, %s181
      %p190 = scmp.eq.s32.totalorder %s31, 7
      %p191 = por %p189, %p190
      %p192 = scmp.ne.s32.totalorder %s181, %s182
      %p193 = scmp.eq.s32.totalorder %s31, 0
      %p194 = por %p192, %p193
      %p195 = scmp.ne.s32.totalorder %s181, %s182
      %p196 = scmp.eq.s32.totalorder %s32, 7
      %p197 = por %p195, %p196
      %p199 = scmp.ne.s32.totalorder %s182, %s198
      %p200 = scmp.eq.s32.totalorder %s32, 0
      %p201 = por %p199, %p200
      %s203 = sadd.s32 %s202, 1
      %p206 = scmp.eq.s32.totalorder %s26, 7
      %p207 = scmp.ne.s32.totalorder %s202, %s204
      %p208 = scmp.eq.s32.totalorder %s26, 0
      %p209 = por %p207, %p208
      %p210 = scmp.ne.s32.totalorder %s202, %s204
      %p211 = scmp.eq.s32.totalorder %s31, 7
      %p212 = por %p210, %p211
      %p213 = scmp.ne.s32.totalorder %s204, %s205
      %p214 = scmp.eq.s32.totalorder %s31, 0
      %p215 = por %p213, %p214
      %p216 = scmp.ne.s32.totalorder %s204, %s205
      %p217 = scmp.eq.s32.totalorder %s32, 7
      %p218 = por %p216, %p217
      %p220 = scmp.ne.s32.totalorder %s205, %s219
      %p221 = scmp.eq.s32.totalorder %s32, 0
      %p222 = por %p220, %p221
      %s224 = sadd.s32 %s223, 1
      %p227 = scmp.eq.s32.totalorder %s26, 7
      %p228 = scmp.ne.s32.totalorder %s223, %s225
      %p229 = scmp.eq.s32.totalorder %s26, 0
      %p230 = por %p228, %p229
      %p231 = scmp.ne.s32.totalorder %s223, %s225
      %p232 = scmp.eq.s32.totalorder %s31, 7
      %p233 = por %p231, %p232
      %p234 = scmp.ne.s32.totalorder %s225, %s226
      %p235 = scmp.eq.s32.totalorder %s31, 0
      %p236 = por %p234, %p235
      %p237 = scmp.ne.s32.totalorder %s225, %s226
      %p238 = scmp.eq.s32.totalorder %s32, 7
      %p239 = por %p237, %p238
      %p241 = scmp.ne.s32.totalorder %s226, %s240
      %p242 = scmp.eq.s32.totalorder %s32, 0
      %p243 = por %p241, %p242
      %s245 = sadd.s32 %s244, 1
      %p248 = scmp.eq.s32.totalorder %s26, 7
      %p249 = scmp.ne.s32.totalorder %s244, %s246
      %p250 = scmp.eq.s32.totalorder %s26, 0
      %p251 = por %p249, %p250
      %p252 = scmp.ne.s32.totalorder %s244, %s246
      %p253 = scmp.eq.s32.totalorder %s31, 7
      %p254 = por %p252, %p253
      %p255 = scmp.ne.s32.totalorder %s246, %s247
      %p256 = scmp.eq.s32.totalorder %s31, 0
      %p257 = por %p255, %p256
      %p258 = scmp.ne.s32.totalorder %s246, %s247
      %p259 = scmp.eq.s32.totalorder %s32, 7
      %p260 = por %p258, %p259
      %p262 = scmp.ne.s32.totalorder %s247, %s261
      %p263 = scmp.eq.s32.totalorder %s32, 0
      %p264 = por %p262, %p263
      %s266 = sadd.s32 %s265, 1
      %p269 = scmp.eq.s32.totalorder %s26, 7
      %p270 = scmp.ne.s32.totalorder %s265, %s267
      %p271 = scmp.eq.s32.totalorder %s26, 0
      %p272 = por %p270, %p271
      %p273 = scmp.ne.s32.totalorder %s265, %s267
      %p274 = scmp.eq.s32.totalorder %s31, 7
      %p275 = por %p273, %p274
      %p276 = scmp.ne.s32.totalorder %s267, %s268
      %p277 = scmp.eq.s32.totalorder %s31, 0
      %p278 = por %p276, %p277
      %p279 = scmp.ne.s32.totalorder %s267, %s268
      %p280 = scmp.eq.s32.totalorder %s32, 7
      %p281 = por %p279, %p280
      %p283 = scmp.ne.s32.totalorder %s268, %s282
      %p284 = scmp.eq.s32.totalorder %s32, 0
      %p285 = por %p283, %p284
      %s287 = sadd.s32 %s286, 1
      %p290 = scmp.eq.s32.totalorder %s26, 7
      %p291 = scmp.ne.s32.totalorder %s286, %s288
      %p292 = scmp.eq.s32.totalorder %s26, 0
      %p293 = por %p291, %p292
      %p294 = scmp.ne.s32.totalorder %s286, %s288
      %p295 = scmp.eq.s32.totalorder %s31, 7
      %p296 = por %p294, %p295
      %p297 = scmp.ne.s32.totalorder %s288, %s289
      %p298 = scmp.eq.s32.totalorder %s31, 0
      %p299 = por %p297, %p298
      %p300 = scmp.ne.s32.totalorder %s288, %s289
      %p301 = scmp.eq.s32.totalorder %s32, 7
      %p302 = por %p300, %p301
      %p304 = scmp.ne.s32.totalorder %s289, %s303
      %p305 = scmp.eq.s32.totalorder %s32, 0
      %p306 = por %p304, %p305
      %s307 = ssub.s32 %s33, %s45
      %p308 = scmp.eq.s32.totalorder %s307, 0
      %s310 = sadd.s32 %s309, 1
      %s311 = scalar_select %p308, %s309, %s310
      %p314 = pneg %p308
      %p315 = scmp.eq.s32.totalorder %s26, 7
      %p316 = por %p314, %p315
      %p317 = scmp.ne.s32.totalorder %s309, %s312
      %p318 = scmp.eq.s32.totalorder %s26, 0
      %p319 = por %p317, %p318
      %p320 = scmp.ne.s32.totalorder %s309, %s312
      %p321 = scmp.eq.s32.totalorder %s31, 7
      %p322 = por %p320, %p321
      %p323 = scmp.ne.s32.totalorder %s312, %s313
      %p324 = scmp.eq.s32.totalorder %s31, 0
      %p325 = por %p323, %p324
      %p326 = scmp.ne.s32.totalorder %s312, %s313
      %p327 = scmp.eq.s32.totalorder %s32, 7
      %p328 = por %p326, %p327
      %p330 = scmp.ne.s32.totalorder %s313, %s329
      %p331 = scmp.eq.s32.totalorder %s32, 0
      %p332 = por %p330, %p331
      %s333 = ssub.s32 %s33, %s45
      %p334 = scmp.eq.s32.totalorder %s333, 0
      %s336 = sadd.s32 %s335, 1
      %s337 = scalar_select %p334, %s335, %s336
      %p340 = pneg %p334
      %p341 = scmp.eq.s32.totalorder %s26, 7
      %p342 = por %p340, %p341
      %p343 = scmp.ne.s32.totalorder %s335, %s338
      %p344 = scmp.eq.s32.totalorder %s26, 0
      %p345 = por %p343, %p344
      %p346 = scmp.ne.s32.totalorder %s335, %s338
      %p347 = scmp.eq.s32.totalorder %s31, 7
      %p348 = por %p346, %p347
      %p349 = scmp.ne.s32.totalorder %s338, %s339
      %p350 = scmp.eq.s32.totalorder %s31, 0
      %p351 = por %p349, %p350
      %p352 = scmp.ne.s32.totalorder %s338, %s339
      %p353 = scmp.eq.s32.totalorder %s32, 7
      %p354 = por %p352, %p353
      %p356 = scmp.ne.s32.totalorder %s339, %s355
      %p357 = scmp.eq.s32.totalorder %s32, 0
      %p358 = por %p356, %p357
      %s359 = ssub.s32 %s33, %s45
      %p360 = scmp.eq.s32.totalorder %s359, 0
      %s362 = sadd.s32 %s361, 1
      %s363 = scalar_select %p360, %s361, %s362
      %p366 = pneg %p360
      %p367 = scmp.eq.s32.totalorder %s26, 7
      %p368 = por %p366, %p367
      %p369 = scmp.ne.s32.totalorder %s361, %s364
      %p370 = scmp.eq.s32.totalorder %s26, 0
      %p371 = por %p369, %p370
      %p372 = scmp.ne.s32.totalorder %s361, %s364
      %p373 = scmp.eq.s32.totalorder %s31, 7
      %p374 = por %p372, %p373
      %p375 = scmp.ne.s32.totalorder %s364, %s365
      %p376 = scmp.eq.s32.totalorder %s31, 0
      %p377 = por %p375, %p376
      %p378 = scmp.ne.s32.totalorder %s364, %s365
      %p379 = scmp.eq.s32.totalorder %s32, 7
      %p380 = por %p378, %p379
      %p382 = scmp.ne.s32.totalorder %s365, %s381
      %p383 = scmp.eq.s32.totalorder %s32, 0
      %p384 = por %p382, %p383
      %p385 = scmp.le.s32.totalorder 1, %s26
      %p386 = scmp.lt.s32.totalorder %s26, 9
      %p387 = pnand %p385, %p386
      %p388 = pneg %p387
      // Predicated region
      $region9: #{model_forward.1} parent=5 // pred_check
        _
      $region10: #{model_forward.1} parent=5 // pred_check_branch
        %390 = sbr.rel (%p387) target = $region12
      $region11: #{model_forward.1} parent=5 // pred_region
        %s391 = ssub.s32 %s26, 1
        // Predicated region
        $region13: #{model_forward.1} parent=11 // pred_check
          %p392 = pneg %p147
        $region14: #{model_forward.1} parent=11 // pred_check_branch
          %394 = sbr.rel (%p392) target = $region16
        $region15: #{model_forward.1} parent=11 // pred_region
          _
        $region16: #{model_forward.1} parent=11 // pred_fallthru
          _
        // Predicated region
        $region17: #{model_forward.1} parent=11 // pred_check
          %p395 = pneg %p168
        $region18: #{model_forward.1} parent=11 // pred_check_branch
          %397 = sbr.rel (%p395) target = $region20
        $region19: #{model_forward.1} parent=11 // pred_region
          _
        $region20: #{model_forward.1} parent=11 // pred_fallthru
          _
        // Predicated region
        $region21: #{model_forward.1} parent=11 // pred_check
          %p398 = pneg %p215
        $region22: #{model_forward.1} parent=11 // pred_check_branch
          %400 = sbr.rel (%p398) target = $region24
        $region23: #{model_forward.1} parent=11 // pred_region
          _
        $region24: #{model_forward.1} parent=11 // pred_fallthru
          _
        // Predicated region
        $region25: #{model_forward.1} parent=11 // pred_check
          %p401 = pneg %p236
        $region26: #{model_forward.1} parent=11 // pred_check_branch
          %403 = sbr.rel (%p401) target = $region28
        $region27: #{model_forward.1} parent=11 // pred_region
          _
        $region28: #{model_forward.1} parent=11 // pred_fallthru
          _
        // Predicated region
        $region29: #{model_forward.1} parent=11 // pred_check
          %p404 = pneg %p257
        $region30: #{model_forward.1} parent=11 // pred_check_branch
          %406 = sbr.rel (%p404) target = $region32
        $region31: #{model_forward.1} parent=11 // pred_region
          _
        $region32: #{model_forward.1} parent=11 // pred_fallthru
          _
        // Predicated region
        $region33: #{model_forward.1} parent=11 // pred_check
          %p407 = pneg %p278
        $region34: #{model_forward.1} parent=11 // pred_check_branch
          %409 = sbr.rel (%p407) target = $region36
        $region35: #{model_forward.1} parent=11 // pred_region
          _
        $region36: #{model_forward.1} parent=11 // pred_fallthru
          _
        // Predicated region
        $region37: #{model_forward.1} parent=11 // pred_check
          %p410 = pneg %p299
        $region38: #{model_forward.1} parent=11 // pred_check_branch
          %412 = sbr.rel (%p410) target = $region40
        $region39: #{model_forward.1} parent=11 // pred_region
          _
        $region40: #{model_forward.1} parent=11 // pred_fallthru
          _
      $region12: #{model_forward.1} parent=5 // pred_fallthru
        _
      %p413 = scmp.lt.s32.totalorder %s26, 8
      // Predicated region
      $region41: #{model_forward.1} parent=5 // pred_check
        %p414 = pneg %p413
      $region42: #{model_forward.1} parent=5 // pred_check_branch
        %416 = sbr.rel (%p414) target = $region44
      $region43: #{model_forward.1} parent=5 // pred_region
        // Predicated region
        $region45: #{model_forward.1} parent=43 // pred_check
          %p417 = pneg %p60
        $region46: #{model_forward.1} parent=43 // pred_check_branch
          %419 = sbr.rel (%p417) target = $region48
        $region47: #{model_forward.1} parent=43 // pred_region
          %p420 = scmp.lt.s32.totalorder %s33, 1
          %s421 = scalar_select %p420, %s33, 1
          %p422 = scmp.lt.s32.totalorder %s34, 5
          %s423 = scalar_select %p422, %s34, 5
          %s424 = smul.addr %s423, 54
          %s425 = smul.addr %s421, 324
          %s426 = sadd.s32 %s424, %s425
          %s427 = smul.addr %s426, 4
          %s428 = scalar_lea.vmem %s0, %s427
        $region48: #{model_forward.1} parent=43 // pred_fallthru
          _
        // Predicated region
        $region49: #{model_forward.1} parent=43 // pred_check
          %p429 = pneg %p90
        $region50: #{model_forward.1} parent=43 // pred_check_branch
          %431 = sbr.rel (%p429) target = $region52
        $region51: #{model_forward.1} parent=43 // pred_region
          %s432 = sadd.s32 %s34, 1
          %p433 = scmp.lt.s32.totalorder %s33, 1
          %s434 = scalar_select %p433, %s33, 1
          %p435 = scmp.lt.s32.totalorder %s432, 5
          %s436 = scalar_select %p435, %s432, 5
          %s437 = smul.addr %s436, 54
          %s438 = smul.addr %s434, 324
          %s439 = sadd.s32 %s437, %s438
          %s440 = smul.addr %s439, 4
          %s441 = scalar_lea.vmem %s1, %s440
          %s442 = sadd.s32 %s34, 1
        $region52: #{model_forward.1} parent=43 // pred_fallthru
          _
        // Predicated region
        $region53: #{model_forward.1} parent=43 // pred_check
          %p443 = pneg %p120
        $region54: #{model_forward.1} parent=43 // pred_check_branch
          %445 = sbr.rel (%p443) target = $region56
        $region55: #{model_forward.1} parent=43 // pred_region
          %s446 = sadd.s32 %s34, 2
          %p447 = scmp.lt.s32.totalorder %s33, 1
          %s448 = scalar_select %p447, %s33, 1
          %p449 = scmp.lt.s32.totalorder %s446, 5
          %s450 = scalar_select %p449, %s446, 5
          %s451 = smul.addr %s450, 54
          %s452 = smul.addr %s448, 324
          %s453 = sadd.s32 %s451, %s452
          %s454 = smul.addr %s453, 4
          %s455 = scalar_lea.vmem %s2, %s454
          %s456 = sadd.s32 %s34, 2
        $region56: #{model_forward.1} parent=43 // pred_fallthru
          _
        // Predicated region
        $region57: #{model_forward.1} parent=43 // pred_check
          %p457 = pneg %p188
        $region58: #{model_forward.1} parent=43 // pred_check_branch
          %459 = sbr.rel (%p457) target = $region60
        $region59: #{model_forward.1} parent=43 // pred_region
          %p460 = scmp.lt.s32.totalorder %s33, 1
          %s461 = scalar_select %p460, %s33, 1
          %s462 = scalar_lea.vmem %s5, %s461
        $region60: #{model_forward.1} parent=43 // pred_fallthru
          _
      $region44: #{model_forward.1} parent=5 // pred_fallthru
        _
      %p463 = scmp.le.s32.totalorder 1, %s26
      %p464 = scmp.lt.s32.totalorder %s26, 9
      %p465 = pnand %p463, %p464
      %p466 = pneg %p465
      // Predicated region
      $region61: #{model_forward.1} parent=5 // pred_check
        _
      $region62: #{model_forward.1} parent=5 // pred_check_branch
        %468 = sbr.rel (%p465) target = $region64
      $region63: #{model_forward.1} parent=5 // pred_region
        %s469 = ssub.s32 %s26, 1
        %p470 = scmp.lt.s32.totalorder %s35, 1
        %s471 = scalar_select %p470, %s35, 1
        %p472 = scmp.lt.s32.totalorder %s36, 5
        %s473 = scalar_select %p472, %s36, 5
        %s474 = smul.addr %s473, 54
        %s475 = smul.addr %s471, 324
        %s476 = sadd.s32 %s474, %s475
        %s477 = smul.addr %s476, 4
        %s478 = scalar_lea.vmem %s0, %s477
        %p479 = pneg %p66
        %p480 = pneg %p63
        %s481 = sadd.s32 %s36, 1
        %p482 = scmp.lt.s32.totalorder %s35, 1
        %s483 = scalar_select %p482, %s35, 1
        %p484 = scmp.lt.s32.totalorder %s481, 5
        %s485 = scalar_select %p484, %s481, 5
        %s486 = smul.addr %s485, 54
        %s487 = smul.addr %s483, 324
        %s488 = sadd.s32 %s486, %s487
        %s489 = smul.addr %s488, 4
        %s490 = scalar_lea.vmem %s1, %s489
        %p491 = pneg %p96
        %p492 = pneg %p93
        %s493 = sadd.s32 %s36, 2
        %p494 = scmp.lt.s32.totalorder %s35, 1
        %s495 = scalar_select %p494, %s35, 1
        %p496 = scmp.lt.s32.totalorder %s493, 5
        %s497 = scalar_select %p496, %s493, 5
        %s498 = smul.addr %s497, 54
        %s499 = smul.addr %s495, 324
        %s500 = sadd.s32 %s498, %s499
        %s501 = smul.addr %s500, 4
        %s502 = scalar_lea.vmem %s2, %s501
        %p503 = pneg %p126
        %p504 = pneg %p123
        %p505 = pneg %p147
        %p506 = pneg %p144
        %p507 = pneg %p168
        %p508 = pneg %p165
        %p509 = scmp.lt.s32.totalorder %s35, 1
        %s510 = scalar_select %p509, %s35, 1
        %s511 = scalar_lea.vmem %s5, %s510
        %p512 = pneg %p194
        %p513 = pneg %p191
        %p514 = pneg %p215
        %p515 = pneg %p212
        %p516 = pneg %p236
        %p517 = pneg %p233
        %p518 = pneg %p257
        %p519 = pneg %p254
        %p520 = pneg %p278
        %p521 = pneg %p275
        %p522 = pneg %p299
        %p523 = pneg %p296
        %p524 = pneg %p325
        %p525 = pneg %p322
        %s526 = sand.u32 %s312, 1
        %s527 = scalar_lea.sflag [#allocation5], %s526
        %s528 = sand.u32 %s312, 1
        %s529 = scalar_lea.vmem [#allocation4], %s528
        %p530 = pneg %p351
        %p531 = pneg %p348
        %s532 = sand.u32 %s31, 1
        %s533 = scalar_lea.sflag [#allocation7], %s532
        %s534 = sand.u32 %s338, 1
        %s535 = scalar_lea.vmem [#allocation6], %s534
        %p536 = pneg %p377
        %p537 = pneg %p374
        %s538 = sand.u32 %s31, 1
        %s539 = scalar_lea.sflag [#allocation7], %s538
        %s540 = sand.u32 %s364, 1
        %s541 = scalar_lea.vmem [#allocation8], %s540
        %p542 = scmp.lt.s32.totalorder %s35, 1
        %s543 = scalar_select %p542, %s35, 1
        %p544 = scmp.lt.s32.totalorder %s36, 5
        %s545 = scalar_select %p544, %s36, 5
        %s546 = smul.addr %s545, 54
        %s547 = smul.addr %s543, 324
        %s548 = sadd.s32 %s546, %s547
        %s549 = smul.addr %s548, 4
        %s550 = scalar_lea.vmem %s0, %s549
        %s551 = sadd.s32 %s36, 1
        %p552 = scmp.lt.s32.totalorder %s35, 1
        %s553 = scalar_select %p552, %s35, 1
        %p554 = scmp.lt.s32.totalorder %s551, 5
        %s555 = scalar_select %p554, %s551, 5
        %s556 = smul.addr %s555, 54
        %s557 = smul.addr %s553, 324
        %s558 = sadd.s32 %s556, %s557
        %s559 = smul.addr %s558, 4
        %s560 = scalar_lea.vmem %s1, %s559
        %s561 = sadd.s32 %s36, 1
        %s562 = sadd.s32 %s36, 2
        %p563 = scmp.lt.s32.totalorder %s35, 1
        %s564 = scalar_select %p563, %s35, 1
        %p565 = scmp.lt.s32.totalorder %s562, 5
        %s566 = scalar_select %p565, %s562, 5
        %s567 = smul.addr %s566, 54
        %s568 = smul.addr %s564, 324
        %s569 = sadd.s32 %s567, %s568
        %s570 = smul.addr %s569, 4
        %s571 = scalar_lea.vmem %s2, %s570
        %s572 = sadd.s32 %s36, 2
        %p573 = scmp.lt.s32.totalorder %s35, 1
        %s574 = scalar_select %p573, %s35, 1
        %s575 = scalar_lea.vmem %s5, %s574
        %p577 = scmp.eq.s32.totalorder %s36, 0
        // Predicated region
        $region65: #{model_forward.1} parent=63 // pred_check
          %p578 = pneg %p577
        $region66: #{model_forward.1} parent=63 // pred_check_branch
          %580 = sbr.rel (%p578) target = $region68
        $region67: #{model_forward.1} parent=63 // pred_region
          %581 = vst [vmem:[#allocation2] sm:$0x1] 0.0
        $region68: #{model_forward.1} parent=63 // pred_fallthru
          _
        %vm582 = vcmask 1048416
        %583 = vst.msk [vmem:[#allocation3] sm:$0xff] %vm582, 0
        %584 = vst.msk [vmem:[#allocation3 + $0x8] sm:$0xff] %vm582, 0
        %585 = vst.msk [vmem:[#allocation3 + $0x10] sm:$0xff] %vm582, 0
        %586 = vst.msk [vmem:[#allocation3 + $0x18] sm:$0xff] %vm582, 0
        %587 = vst.msk [vmem:[#allocation3 + $0x20] sm:$0xff] %vm582, 0
        %588 = vst.msk [vmem:[#allocation3 + $0x28] sm:$0xff] %vm582, 0
        %589 = vst.msk [vmem:[#allocation3 + $0x30] sm:$0xff] %vm582, 0
        %590 = vst.msk [vmem:[#allocation3 + $0x38] sm:$0xff] %vm582, 0
        %591 = vst.msk [vmem:[#allocation3 + $0x40] sm:$0xff] %vm582, 0
        %592 = vst.msk [vmem:[#allocation3 + $0x48] sm:$0xff] %vm582, 0
        %593 = vst.msk [vmem:[#allocation3 + $0x50] sm:$0xff] %vm582, 0
        %594 = vst.msk [vmem:[#allocation3 + $0x58] sm:$0xff] %vm582, 0
        %595 = vst.msk [vmem:[#allocation3 + $0x60] sm:$0xff] %vm582, 0
        %596 = vst.msk [vmem:[#allocation3 + $0x68] sm:$0xff] %vm582, 0
        %597 = vst.msk [vmem:[#allocation3 + $0x70] sm:$0xff] %vm582, 0
        %598 = vst.msk [vmem:[#allocation3 + $0x78] sm:$0xff] %vm582, 0
        %v599 = vld [vmem:[%s550] sm:$0xf]
        %v600 = vld [vmem:[%s550 + $0x4] sm:$0xf]
        %v601 = vld [vmem:[%s550 + $0x8] sm:$0x1]
        %v602 = vld [vmem:[%s550 + $0xc] sm:$0xf]
        %v603 = vld [vmem:[%s550 + $0x10] sm:$0xf]
        %v604 = vld [vmem:[%s550 + $0x14] sm:$0x1]
        %v605 = vld [vmem:[%s550 + $0x18] sm:$0xf]
        %v606 = vld [vmem:[%s550 + $0x1c] sm:$0xf]
        %v607 = vld [vmem:[%s550 + $0x20] sm:$0x1]
        %v608 = vld [vmem:[%s550 + $0x24] sm:$0xf]
        %v609 = vld [vmem:[%s550 + $0x28] sm:$0xf]
        %v610 = vld [vmem:[%s550 + $0x2c] sm:$0x1]
        %v611 = vld [vmem:[%s550 + $0x30] sm:$0xf]
        %v612 = vld [vmem:[%s550 + $0x34] sm:$0xf]
        %v613 = vld [vmem:[%s550 + $0x38] sm:$0x1]
        %v614 = vld [vmem:[%s550 + $0x3c] sm:$0xf]
        %v615 = vld [vmem:[%s550 + $0x40] sm:$0xf]
        %v616 = vld [vmem:[%s550 + $0x44] sm:$0x1]
        %v617 = vld [vmem:[%s550 + $0x48] sm:$0xf]
        %v618 = vld [vmem:[%s550 + $0x4c] sm:$0xf]
        %v619 = vld [vmem:[%s550 + $0x50] sm:$0x1]
        %v620 = vld [vmem:[%s550 + $0x54] sm:$0xf]
        %v621 = vld [vmem:[%s550 + $0x58] sm:$0xf]
        %v622 = vld [vmem:[%s550 + $0x5c] sm:$0x1]
        %v623 = vld [vmem:[%s550 + $0x60] sm:$0xf]
        %v624 = vld [vmem:[%s550 + $0x64] sm:$0xf]
        %v625 = vld [vmem:[%s550 + $0x68] sm:$0x1]
        %v626 = vld [vmem:[%s550 + $0x6c] sm:$0xf]
        %v627 = vld [vmem:[%s550 + $0x70] sm:$0xf]
        %v628 = vld [vmem:[%s550 + $0x74] sm:$0x1]
        %v629 = vld [vmem:[%s550 + $0x78] sm:$0xf]
        %v630 = vld [vmem:[%s550 + $0x7c] sm:$0xf]
        %v631 = vld [vmem:[%s550 + $0x80] sm:$0x1]
        %v632 = vld [vmem:[%s550 + $0x84] sm:$0xf]
        %v633 = vld [vmem:[%s550 + $0x88] sm:$0xf]
        %v634 = vld [vmem:[%s550 + $0x8c] sm:$0x1]
        %v635 = vld [vmem:[%s550 + $0x90] sm:$0xf]
        %v636 = vld [vmem:[%s550 + $0x94] sm:$0xf]
        %v637 = vld [vmem:[%s550 + $0x98] sm:$0x1]
        %v638 = vld [vmem:[%s550 + $0x9c] sm:$0xf]
        %v639 = vld [vmem:[%s550 + $0xa0] sm:$0xf]
        %v640 = vld [vmem:[%s550 + $0xa4] sm:$0x1]
        %v641 = vld [vmem:[%s550 + $0xa8] sm:$0xf]
        %v642 = vld [vmem:[%s550 + $0xac] sm:$0xf]
        %v643 = vld [vmem:[%s550 + $0xb0] sm:$0x1]
        %v644 = vld [vmem:[%s550 + $0xb4] sm:$0xf]
        %v645 = vld [vmem:[%s550 + $0xb8] sm:$0xf]
        %v646 = vld [vmem:[%s550 + $0xbc] sm:$0x1]
        %v647 = vld [vmem:[%s550 + $0xc0] sm:$0xf]
        %v648 = vld [vmem:[%s550 + $0xc4] sm:$0xf]
        %v649 = vld [vmem:[%s550 + $0xc8] sm:$0x1]
        %v650 = vld [vmem:[%s550 + $0xcc] sm:$0xf]
        %v651 = vld [vmem:[%s550 + $0xd0] sm:$0xf]
        %v652 = vld [vmem:[%s550 + $0xd4] sm:$0x1]
        %v653 = vld [vmem:[%s560] sm:$0xf]
        %v654 = vld [vmem:[%s560 + $0x4] sm:$0xf]
        %v655 = vld [vmem:[%s560 + $0x8] sm:$0x1]
        %v656 = vld [vmem:[%s560 + $0xc] sm:$0xf]
        %v657 = vld [vmem:[%s560 + $0x10] sm:$0xf]
        %v658 = vld [vmem:[%s560 + $0x14] sm:$0x1]
        %v659 = vld [vmem:[%s560 + $0x18] sm:$0xf]
        %v660 = vld [vmem:[%s560 + $0x1c] sm:$0xf]
        %v661 = vld [vmem:[%s560 + $0x20] sm:$0x1]
        %v662 = vld [vmem:[%s560 + $0x24] sm:$0xf]
        %v663 = vld [vmem:[%s560 + $0x28] sm:$0xf]
        %v664 = vld [vmem:[%s560 + $0x2c] sm:$0x1]
        %v665 = vld [vmem:[%s560 + $0x30] sm:$0xf]
        %v666 = vld [vmem:[%s560 + $0x34] sm:$0xf]
        %v667 = vld [vmem:[%s560 + $0x38] sm:$0x1]
        %v668 = vld [vmem:[%s560 + $0x3c] sm:$0xf]
        %v669 = vld [vmem:[%s560 + $0x40] sm:$0xf]
        %v670 = vld [vmem:[%s560 + $0x44] sm:$0x1]
        %v671 = vld [vmem:[%s560 + $0x48] sm:$0xf]
        %v672 = vld [vmem:[%s560 + $0x4c] sm:$0xf]
        %v673 = vld [vmem:[%s560 + $0x50] sm:$0x1]
        %v674 = vld [vmem:[%s560 + $0x54] sm:$0xf]
        %v675 = vld [vmem:[%s560 + $0x58] sm:$0xf]
        %v676 = vld [vmem:[%s560 + $0x5c] sm:$0x1]
        %v677 = vld [vmem:[%s560 + $0x60] sm:$0xf]
        %v678 = vld [vmem:[%s560 + $0x64] sm:$0xf]
        %v679 = vld [vmem:[%s560 + $0x68] sm:$0x1]
        %v680 = vld [vmem:[%s560 + $0x6c] sm:$0xf]
        %v681 = vld [vmem:[%s560 + $0x70] sm:$0xf]
        %v682 = vld [vmem:[%s560 + $0x74] sm:$0x1]
        %v683 = vld [vmem:[%s560 + $0x78] sm:$0xf]
        %v684 = vld [vmem:[%s560 + $0x7c] sm:$0xf]
        %v685 = vld [vmem:[%s560 + $0x80] sm:$0x1]
        %v686 = vld [vmem:[%s560 + $0x84] sm:$0xf]
        %v687 = vld [vmem:[%s560 + $0x88] sm:$0xf]
        %v688 = vld [vmem:[%s560 + $0x8c] sm:$0x1]
        %v689 = vld [vmem:[%s560 + $0x90] sm:$0xf]
        %v690 = vld [vmem:[%s560 + $0x94] sm:$0xf]
        %v691 = vld [vmem:[%s560 + $0x98] sm:$0x1]
        %v692 = vld [vmem:[%s560 + $0x9c] sm:$0xf]
        %v693 = vld [vmem:[%s560 + $0xa0] sm:$0xf]
        %v694 = vld [vmem:[%s560 + $0xa4] sm:$0x1]
        %v695 = vld [vmem:[%s560 + $0xa8] sm:$0xf]
        %v696 = vld [vmem:[%s560 + $0xac] sm:$0xf]
        %v697 = vld [vmem:[%s560 + $0xb0] sm:$0x1]
        %v698 = vld [vmem:[%s560 + $0xb4] sm:$0xf]
        %v699 = vld [vmem:[%s560 + $0xb8] sm:$0xf]
        %v700 = vld [vmem:[%s560 + $0xbc] sm:$0x1]
        %v701 = vld [vmem:[%s560 + $0xc0] sm:$0xf]
        %v702 = vld [vmem:[%s560 + $0xc4] sm:$0xf]
        %v703 = vld [vmem:[%s560 + $0xc8] sm:$0x1]
        %v704 = vld [vmem:[%s560 + $0xcc] sm:$0xf]
        %v705 = vld [vmem:[%s560 + $0xd0] sm:$0xf]
        %v706 = vld [vmem:[%s560 + $0xd4] sm:$0x1]
        %v707 = vld [vmem:[%s571] sm:$0xf]
        %v708 = vld [vmem:[%s571 + $0x4] sm:$0xf]
        %v709 = vld [vmem:[%s571 + $0x8] sm:$0x1]
        %v710 = vld [vmem:[%s571 + $0xc] sm:$0xf]
        %v711 = vld [vmem:[%s571 + $0x10] sm:$0xf]
        %v712 = vld [vmem:[%s571 + $0x14] sm:$0x1]
        %v713 = vld [vmem:[%s571 + $0x18] sm:$0xf]
        %v714 = vld [vmem:[%s571 + $0x1c] sm:$0xf]
        %v715 = vld [vmem:[%s571 + $0x20] sm:$0x1]
        %v716 = vld [vmem:[%s571 + $0x24] sm:$0xf]
        %v717 = vld [vmem:[%s571 + $0x28] sm:$0xf]
        %v718 = vld [vmem:[%s571 + $0x2c] sm:$0x1]
        %v719 = vld [vmem:[%s571 + $0x30] sm:$0xf]
        %v720 = vld [vmem:[%s571 + $0x34] sm:$0xf]
        %v721 = vld [vmem:[%s571 + $0x38] sm:$0x1]
        %v722 = vld [vmem:[%s571 + $0x3c] sm:$0xf]
        %v723 = vld [vmem:[%s571 + $0x40] sm:$0xf]
        %v724 = vld [vmem:[%s571 + $0x44] sm:$0x1]
        %v725 = vld [vmem:[%s571 + $0x48] sm:$0xf]
        %v726 = vld [vmem:[%s571 + $0x4c] sm:$0xf]
        %v727 = vld [vmem:[%s571 + $0x50] sm:$0x1]
        %v728 = vld [vmem:[%s571 + $0x54] sm:$0xf]
        %v729 = vld [vmem:[%s571 + $0x58] sm:$0xf]
        %v730 = vld [vmem:[%s571 + $0x5c] sm:$0x1]
        %v731 = vld [vmem:[%s571 + $0x60] sm:$0xf]
        %v732 = vld [vmem:[%s571 + $0x64] sm:$0xf]
        %v733 = vld [vmem:[%s571 + $0x68] sm:$0x1]
        %v734 = vld [vmem:[%s571 + $0x6c] sm:$0xf]
        %v735 = vld [vmem:[%s571 + $0x70] sm:$0xf]
        %v736 = vld [vmem:[%s571 + $0x74] sm:$0x1]
        %v737 = vld [vmem:[%s571 + $0x78] sm:$0xf]
        %v738 = vld [vmem:[%s571 + $0x7c] sm:$0xf]
        %v739 = vld [vmem:[%s571 + $0x80] sm:$0x1]
        %v740 = vld [vmem:[%s571 + $0x84] sm:$0xf]
        %v741 = vld [vmem:[%s571 + $0x88] sm:$0xf]
        %v742 = vld [vmem:[%s571 + $0x8c] sm:$0x1]
        %v743 = vld [vmem:[%s571 + $0x90] sm:$0xf]
        %v744 = vld [vmem:[%s571 + $0x94] sm:$0xf]
        %v745 = vld [vmem:[%s571 + $0x98] sm:$0x1]
        %v746 = vld [vmem:[%s571 + $0x9c] sm:$0xf]
        %v747 = vld [vmem:[%s571 + $0xa0] sm:$0xf]
        %v748 = vld [vmem:[%s571 + $0xa4] sm:$0x1]
        %v749 = vld [vmem:[%s571 + $0xa8] sm:$0xf]
        %v750 = vld [vmem:[%s571 + $0xac] sm:$0xf]
        %v751 = vld [vmem:[%s571 + $0xb0] sm:$0x1]
        %v752 = vld [vmem:[%s571 + $0xb4] sm:$0xf]
        %v753 = vld [vmem:[%s571 + $0xb8] sm:$0xf]
        %v754 = vld [vmem:[%s571 + $0xbc] sm:$0x1]
        %v755 = vld [vmem:[%s571 + $0xc0] sm:$0xf]
        %v756 = vld [vmem:[%s571 + $0xc4] sm:$0xf]
        %v757 = vld [vmem:[%s571 + $0xc8] sm:$0x1]
        %v758 = vld [vmem:[%s571 + $0xcc] sm:$0xf]
        %v759 = vld [vmem:[%s571 + $0xd0] sm:$0xf]
        %v760 = vld [vmem:[%s571 + $0xd4] sm:$0x1]
        %v793 = vunpack.c.l.b16 %v599
        %v794 = vunpack.c.l.b16 %v600
        %v795 = vunpack.c.l.b16 %v602
        %v796 = vunpack.c.l.b16 %v603
        %v797 = vunpack.c.l.b16 %v605
        %v798 = vunpack.c.l.b16 %v606
        %v799 = vunpack.c.l.b16 %v608
        %v800 = vunpack.c.l.b16 %v609
        %v801 = vunpack.c.l.b16 %v611
        %v802 = vunpack.c.l.b16 %v612
        %v803 = vunpack.c.l.b16 %v614
        %v804 = vunpack.c.l.b16 %v615
        %v805 = vunpack.c.l.b16 %v617
        %v806 = vunpack.c.l.b16 %v618
        %v807 = vunpack.c.l.b16 %v620
        %v808 = vunpack.c.l.b16 %v621
        %v809 = vunpack.c.l.b16 %v623
        %v810 = vunpack.c.l.b16 %v624
        %v811 = vunpack.c.l.b16 %v626
        %v812 = vunpack.c.l.b16 %v627
        %v813 = vunpack.c.l.b16 %v629
        %v814 = vunpack.c.l.b16 %v630
        %v815 = vunpack.c.l.b16 %v632
        %v816 = vunpack.c.l.b16 %v633
        %v817 = vunpack.c.l.b16 %v635
        %v818 = vunpack.c.l.b16 %v636
        %v819 = vunpack.c.l.b16 %v638
        %v820 = vunpack.c.l.b16 %v639
        %v821 = vunpack.c.l.b16 %v641
        %v822 = vunpack.c.l.b16 %v642
        %v823 = vunpack.c.l.b16 %v644
        %v824 = vunpack.c.l.b16 %v645
        %v825 = vpack.c.b16 %v794, %v793
        %v826 = vpack.c.b16 %v796, %v795
        %v827 = vpack.c.b16 %v798, %v797
        %v828 = vpack.c.b16 %v800, %v799
        %v829 = vpack.c.b16 %v802, %v801
        %v830 = vpack.c.b16 %v804, %v803
        %v831 = vpack.c.b16 %v806, %v805
        %v832 = vpack.c.b16 %v808, %v807
        %v833 = vpack.c.b16 %v810, %v809
        %v834 = vpack.c.b16 %v812, %v811
        %v835 = vpack.c.b16 %v814, %v813
        %v836 = vpack.c.b16 %v816, %v815
        %v837 = vpack.c.b16 %v818, %v817
        %v838 = vpack.c.b16 %v820, %v819
        %v839 = vpack.c.b16 %v822, %v821
        %v840 = vpack.c.b16 %v824, %v823
        %vm857 = vcmask 31744
        %858 = vst.msk [vmem:[#allocation3] sm:$0xff] %vm857, %v825
        %859 = vst.msk [vmem:[#allocation3 + $0x8] sm:$0xff] %vm857, %v826
        %860 = vst.msk [vmem:[#allocation3 + $0x10] sm:$0xff] %vm857, %v827
        %861 = vst.msk [vmem:[#allocation3 + $0x18] sm:$0xff] %vm857, %v828
        %862 = vst.msk [vmem:[#allocation3 + $0x20] sm:$0xff] %vm857, %v829
        %863 = vst.msk [vmem:[#allocation3 + $0x28] sm:$0xff] %vm857, %v830
        %864 = vst.msk [vmem:[#allocation3 + $0x30] sm:$0xff] %vm857, %v831
        %865 = vst.msk [vmem:[#allocation3 + $0x38] sm:$0xff] %vm857, %v832
        %866 = vst.msk [vmem:[#allocation3 + $0x40] sm:$0xff] %vm857, %v833
        %867 = vst.msk [vmem:[#allocation3 + $0x48] sm:$0xff] %vm857, %v834
        %868 = vst.msk [vmem:[#allocation3 + $0x50] sm:$0xff] %vm857, %v835
        %869 = vst.msk [vmem:[#allocation3 + $0x58] sm:$0xff] %vm857, %v836
        %870 = vst.msk [vmem:[#allocation3 + $0x60] sm:$0xff] %vm857, %v837
        %871 = vst.msk [vmem:[#allocation3 + $0x68] sm:$0xff] %vm857, %v838
        %872 = vst.msk [vmem:[#allocation3 + $0x70] sm:$0xff] %vm857, %v839
        %873 = vst.msk [vmem:[#allocation3 + $0x78] sm:$0xff] %vm857, %v840
        %vm874 = vsmask.f32 3328
        %vm875 = vsmask.f32 7440
        %vm876 = vmor %vm874, %vm875
        %v878 = vshrl.u32 %v599, 16
        %v880 = vrot.slane %v878, 4
        %v881 = vshll.u32 %v599, 16
        %v883 = vrot.slane %v881, 5
        %v884 = vor.u32 %v880, %v883
        %v885 = vrot.slane %v884, 4
        %v887 = vshll.u32 %v600, 16
        %v889 = vrot.slane %v887, 5
        %v890 = vsel %vm876, %v885, %v889
        %v891 = vshrl.u32 %v600, 16
        %v893 = vrot.slane %v891, 4
        %v894 = vor.u32 %v893, %v889
        %v895 = vrot.slane %v894, 4
        %v897 = vshll.u32 %v601, 16
        %v899 = vrot.slane %v897, 5
        %v900 = vsel %vm876, %v895, %v899
        %v902 = vshrl.u32 %v602, 16
        %v904 = vrot.slane %v902, 4
        %v905 = vshll.u32 %v602, 16
        %v907 = vrot.slane %v905, 5
        %v908 = vor.u32 %v904, %v907
        %v909 = vrot.slane %v908, 4
        %v911 = vshll.u32 %v603, 16
        %v913 = vrot.slane %v911, 5
        %v914 = vsel %vm876, %v909, %v913
        %v915 = vshrl.u32 %v603, 16
        %v917 = vrot.slane %v915, 4
        %v918 = vor.u32 %v917, %v913
        %v919 = vrot.slane %v918, 4
        %v921 = vshll.u32 %v604, 16
        %v923 = vrot.slane %v921, 5
        %v924 = vsel %vm876, %v919, %v923
        %v926 = vshrl.u32 %v605, 16
        %v928 = vrot.slane %v926, 4
        %v929 = vshll.u32 %v605, 16
        %v931 = vrot.slane %v929, 5
        %v932 = vor.u32 %v928, %v931
        %v933 = vrot.slane %v932, 4
        %v935 = vshll.u32 %v606, 16
        %v937 = vrot.slane %v935, 5
        %v938 = vsel %vm876, %v933, %v937
        %v939 = vshrl.u32 %v606, 16
        %v941 = vrot.slane %v939, 4
        %v942 = vor.u32 %v941, %v937
        %v943 = vrot.slane %v942, 4
        %v945 = vshll.u32 %v607, 16
        %v947 = vrot.slane %v945, 5
        %v948 = vsel %vm876, %v943, %v947
        %v950 = vshrl.u32 %v608, 16
        %v952 = vrot.slane %v950, 4
        %v953 = vshll.u32 %v608, 16
        %v955 = vrot.slane %v953, 5
        %v956 = vor.u32 %v952, %v955
        %v957 = vrot.slane %v956, 4
        %v959 = vshll.u32 %v609, 16
        %v961 = vrot.slane %v959, 5
        %v962 = vsel %vm876, %v957, %v961
        %v963 = vshrl.u32 %v609, 16
        %v965 = vrot.slane %v963, 4
        %v966 = vor.u32 %v965, %v961
        %v967 = vrot.slane %v966, 4
        %v969 = vshll.u32 %v610, 16
        %v971 = vrot.slane %v969, 5
        %v972 = vsel %vm876, %v967, %v971
        %v974 = vshrl.u32 %v611, 16
        %v976 = vrot.slane %v974, 4
        %v977 = vshll.u32 %v611, 16
        %v979 = vrot.slane %v977, 5
        %v980 = vor.u32 %v976, %v979
        %v981 = vrot.slane %v980, 4
        %v983 = vshll.u32 %v612, 16
        %v985 = vrot.slane %v983, 5
        %v986 = vsel %vm876, %v981, %v985
        %v987 = vshrl.u32 %v612, 16
        %v989 = vrot.slane %v987, 4
        %v990 = vor.u32 %v989, %v985
        %v991 = vrot.slane %v990, 4
        %v993 = vshll.u32 %v613, 16
        %v995 = vrot.slane %v993, 5
        %v996 = vsel %vm876, %v991, %v995
        %v998 = vshrl.u32 %v614, 16
        %v1000 = vrot.slane %v998, 4
        %v1001 = vshll.u32 %v614, 16
        %v1003 = vrot.slane %v1001, 5
        %v1004 = vor.u32 %v1000, %v1003
        %v1005 = vrot.slane %v1004, 4
        %v1007 = vshll.u32 %v615, 16
        %v1009 = vrot.slane %v1007, 5
        %v1010 = vsel %vm876, %v1005, %v1009
        %v1011 = vshrl.u32 %v615, 16
        %v1013 = vrot.slane %v1011, 4
        %v1014 = vor.u32 %v1013, %v1009
        %v1015 = vrot.slane %v1014, 4
        %v1017 = vshll.u32 %v616, 16
        %v1019 = vrot.slane %v1017, 5
        %v1020 = vsel %vm876, %v1015, %v1019
        %v1022 = vshrl.u32 %v617, 16
        %v1024 = vrot.slane %v1022, 4
        %v1025 = vshll.u32 %v617, 16
        %v1027 = vrot.slane %v1025, 5
        %v1028 = vor.u32 %v1024, %v1027
        %v1029 = vrot.slane %v1028, 4
        %v1031 = vshll.u32 %v618, 16
        %v1033 = vrot.slane %v1031, 5
        %v1034 = vsel %vm876, %v1029, %v1033
        %v1035 = vshrl.u32 %v618, 16
        %v1037 = vrot.slane %v1035, 4
        %v1038 = vor.u32 %v1037, %v1033
        %v1039 = vrot.slane %v1038, 4
        %v1041 = vshll.u32 %v619, 16
        %v1043 = vrot.slane %v1041, 5
        %v1044 = vsel %vm876, %v1039, %v1043
        %v1046 = vshrl.u32 %v620, 16
        %v1048 = vrot.slane %v1046, 4
        %v1049 = vshll.u32 %v620, 16
        %v1051 = vrot.slane %v1049, 5
        %v1052 = vor.u32 %v1048, %v1051
        %v1053 = vrot.slane %v1052, 4
        %v1055 = vshll.u32 %v621, 16
        %v1057 = vrot.slane %v1055, 5
        %v1058 = vsel %vm876, %v1053, %v1057
        %v1059 = vshrl.u32 %v621, 16
        %v1061 = vrot.slane %v1059, 4
        %v1062 = vor.u32 %v1061, %v1057
        %v1063 = vrot.slane %v1062, 4
        %v1065 = vshll.u32 %v622, 16
        %v1067 = vrot.slane %v1065, 5
        %v1068 = vsel %vm876, %v1063, %v1067
        %v1070 = vshrl.u32 %v623, 16
        %v1072 = vrot.slane %v1070, 4
        %v1073 = vshll.u32 %v623, 16
        %v1075 = vrot.slane %v1073, 5
        %v1076 = vor.u32 %v1072, %v1075
        %v1077 = vrot.slane %v1076, 4
        %v1079 = vshll.u32 %v624, 16
        %v1081 = vrot.slane %v1079, 5
        %v1082 = vsel %vm876, %v1077, %v1081
        %v1083 = vshrl.u32 %v624, 16
        %v1085 = vrot.slane %v1083, 4
        %v1086 = vor.u32 %v1085, %v1081
        %v1087 = vrot.slane %v1086, 4
        %v1089 = vshll.u32 %v625, 16
        %v1091 = vrot.slane %v1089, 5
        %v1092 = vsel %vm876, %v1087, %v1091
        %v1094 = vshrl.u32 %v626, 16
        %v1096 = vrot.slane %v1094, 4
        %v1097 = vshll.u32 %v626, 16
        %v1099 = vrot.slane %v1097, 5
        %v1100 = vor.u32 %v1096, %v1099
        %v1101 = vrot.slane %v1100, 4
        %v1103 = vshll.u32 %v627, 16
        %v1105 = vrot.slane %v1103, 5
        %v1106 = vsel %vm876, %v1101, %v1105
        %v1107 = vshrl.u32 %v627, 16
        %v1109 = vrot.slane %v1107, 4
        %v1110 = vor.u32 %v1109, %v1105
        %v1111 = vrot.slane %v1110, 4
        %v1113 = vshll.u32 %v628, 16
        %v1115 = vrot.slane %v1113, 5
        %v1116 = vsel %vm876, %v1111, %v1115
        %v1118 = vshrl.u32 %v629, 16
        %v1120 = vrot.slane %v1118, 4
        %v1121 = vshll.u32 %v629, 16
        %v1123 = vrot.slane %v1121, 5
        %v1124 = vor.u32 %v1120, %v1123
        %v1125 = vrot.slane %v1124, 4
        %v1127 = vshll.u32 %v630, 16
        %v1129 = vrot.slane %v1127, 5
        %v1130 = vsel %vm876, %v1125, %v1129
        %v1131 = vshrl.u32 %v630, 16
        %v1133 = vrot.slane %v1131, 4
        %v1134 = vor.u32 %v1133, %v1129
        %v1135 = vrot.slane %v1134, 4
        %v1137 = vshll.u32 %v631, 16
        %v1139 = vrot.slane %v1137, 5
        %v1140 = vsel %vm876, %v1135, %v1139
        %v1142 = vshrl.u32 %v632, 16
        %v1144 = vrot.slane %v1142, 4
        %v1145 = vshll.u32 %v632, 16
        %v1147 = vrot.slane %v1145, 5
        %v1148 = vor.u32 %v1144, %v1147
        %v1149 = vrot.slane %v1148, 4
        %v1151 = vshll.u32 %v633, 16
        %v1153 = vrot.slane %v1151, 5
        %v1154 = vsel %vm876, %v1149, %v1153
        %v1155 = vshrl.u32 %v633, 16
        %v1157 = vrot.slane %v1155, 4
        %v1158 = vor.u32 %v1157, %v1153
        %v1159 = vrot.slane %v1158, 4
        %v1161 = vshll.u32 %v634, 16
        %v1163 = vrot.slane %v1161, 5
        %v1164 = vsel %vm876, %v1159, %v1163
        %v1166 = vshrl.u32 %v635, 16
        %v1168 = vrot.slane %v1166, 4
        %v1169 = vshll.u32 %v635, 16
        %v1171 = vrot.slane %v1169, 5
        %v1172 = vor.u32 %v1168, %v1171
        %v1173 = vrot.slane %v1172, 4
        %v1175 = vshll.u32 %v636, 16
        %v1177 = vrot.slane %v1175, 5
        %v1178 = vsel %vm876, %v1173, %v1177
        %v1179 = vshrl.u32 %v636, 16
        %v1181 = vrot.slane %v1179, 4
        %v1182 = vor.u32 %v1181, %v1177
        %v1183 = vrot.slane %v1182, 4
        %v1185 = vshll.u32 %v637, 16
        %v1187 = vrot.slane %v1185, 5
        %v1188 = vsel %vm876, %v1183, %v1187
        %v1190 = vshrl.u32 %v638, 16
        %v1192 = vrot.slane %v1190, 4
        %v1193 = vshll.u32 %v638, 16
        %v1195 = vrot.slane %v1193, 5
        %v1196 = vor.u32 %v1192, %v1195
        %v1197 = vrot.slane %v1196, 4
        %v1199 = vshll.u32 %v639, 16
        %v1201 = vrot.slane %v1199, 5
        %v1202 = vsel %vm876, %v1197, %v1201
        %v1203 = vshrl.u32 %v639, 16
        %v1205 = vrot.slane %v1203, 4
        %v1206 = vor.u32 %v1205, %v1201
        %v1207 = vrot.slane %v1206, 4
        %v1209 = vshll.u32 %v640, 16
        %v1211 = vrot.slane %v1209, 5
        %v1212 = vsel %vm876, %v1207, %v1211
        %v1214 = vshrl.u32 %v641, 16
        %v1216 = vrot.slane %v1214, 4
        %v1217 = vshll.u32 %v641, 16
        %v1219 = vrot.slane %v1217, 5
        %v1220 = vor.u32 %v1216, %v1219
        %v1221 = vrot.slane %v1220, 4
        %v1223 = vshll.u32 %v642, 16
        %v1225 = vrot.slane %v1223, 5
        %v1226 = vsel %vm876, %v1221, %v1225
        %v1227 = vshrl.u32 %v642, 16
        %v1229 = vrot.slane %v1227, 4
        %v1230 = vor.u32 %v1229, %v1225
        %v1231 = vrot.slane %v1230, 4
        %v1233 = vshll.u32 %v643, 16
        %v1235 = vrot.slane %v1233, 5
        %v1236 = vsel %vm876, %v1231, %v1235
        %v1238 = vshrl.u32 %v644, 16
        %v1240 = vrot.slane %v1238, 4
        %v1241 = vshll.u32 %v644, 16
        %v1243 = vrot.slane %v1241, 5
        %v1244 = vor.u32 %v1240, %v1243
        %v1245 = vrot.slane %v1244, 4
        %v1247 = vshll.u32 %v645, 16
        %v1249 = vrot.slane %v1247, 5
        %v1250 = vsel %vm876, %v1245, %v1249
        %v1251 = vshrl.u32 %v645, 16
        %v1253 = vrot.slane %v1251, 4
        %v1254 = vor.u32 %v1253, %v1249
        %v1255 = vrot.slane %v1254, 4
        %v1257 = vshll.u32 %v646, 16
        %v1259 = vrot.slane %v1257, 5
        %v1260 = vsel %vm876, %v1255, %v1259
        %v1261 = vunpack.c.l.b16 %v890
        %v1262 = vunpack.c.l.b16 %v900
        %v1263 = vunpack.c.l.b16 %v914
        %v1264 = vunpack.c.l.b16 %v924
        %v1265 = vunpack.c.l.b16 %v938
        %v1266 = vunpack.c.l.b16 %v948
        %v1267 = vunpack.c.l.b16 %v962
        %v1268 = vunpack.c.l.b16 %v972
        %v1269 = vunpack.c.l.b16 %v986
        %v1270 = vunpack.c.l.b16 %v996
        %v1271 = vunpack.c.l.b16 %v1010
        %v1272 = vunpack.c.l.b16 %v1020
        %v1273 = vunpack.c.l.b16 %v1034
        %v1274 = vunpack.c.l.b16 %v1044
        %v1275 = vunpack.c.l.b16 %v1058
        %v1276 = vunpack.c.l.b16 %v1068
        %v1277 = vunpack.c.l.b16 %v1082
        %v1278 = vunpack.c.l.b16 %v1092
        %v1279 = vunpack.c.l.b16 %v1106
        %v1280 = vunpack.c.l.b16 %v1116
        %v1281 = vunpack.c.l.b16 %v1130
        %v1282 = vunpack.c.l.b16 %v1140
        %v1283 = vunpack.c.l.b16 %v1154
        %v1284 = vunpack.c.l.b16 %v1164
        %v1285 = vunpack.c.l.b16 %v1178
        %v1286 = vunpack.c.l.b16 %v1188
        %v1287 = vunpack.c.l.b16 %v1202
        %v1288 = vunpack.c.l.b16 %v1212
        %v1289 = vunpack.c.l.b16 %v1226
        %v1290 = vunpack.c.l.b16 %v1236
        %v1291 = vunpack.c.l.b16 %v1250
        %v1292 = vunpack.c.l.b16 %v1260
        %v1293 = vpack.c.b16 %v1262, %v1261
        %v1294 = vpack.c.b16 %v1264, %v1263
        %v1295 = vpack.c.b16 %v1266, %v1265
        %v1296 = vpack.c.b16 %v1268, %v1267
        %v1297 = vpack.c.b16 %v1270, %v1269
        %v1298 = vpack.c.b16 %v1272, %v1271
        %v1299 = vpack.c.b16 %v1274, %v1273
        %v1300 = vpack.c.b16 %v1276, %v1275
        %v1301 = vpack.c.b16 %v1278, %v1277
        %v1302 = vpack.c.b16 %v1280, %v1279
        %v1303 = vpack.c.b16 %v1282, %v1281
        %v1304 = vpack.c.b16 %v1284, %v1283
        %v1305 = vpack.c.b16 %v1286, %v1285
        %v1306 = vpack.c.b16 %v1288, %v1287
        %v1307 = vpack.c.b16 %v1290, %v1289
        %v1308 = vpack.c.b16 %v1292, %v1291
        %1309 = vrot.lane.b32.xlu0 %v1293, 4
        %v1310 = vpop.permute.xlu0 %1309
        %1311 = vrot.lane.b32.xlu0 %v1294, 4
        %v1312 = vpop.permute.xlu0 %1311
        %1313 = vrot.lane.b32.xlu0 %v1295, 4
        %v1314 = vpop.permute.xlu0 %1313
        %1315 = vrot.lane.b32.xlu0 %v1296, 4
        %v1316 = vpop.permute.xlu0 %1315
        %1317 = vrot.lane.b32.xlu0 %v1297, 4
        %v1318 = vpop.permute.xlu0 %1317
        %1319 = vrot.lane.b32.xlu0 %v1298, 4
        %v1320 = vpop.permute.xlu0 %1319
        %1321 = vrot.lane.b32.xlu0 %v1299, 4
        %v1322 = vpop.permute.xlu0 %1321
        %1323 = vrot.lane.b32.xlu0 %v1300, 4
        %v1324 = vpop.permute.xlu0 %1323
        %1325 = vrot.lane.b32.xlu0 %v1301, 4
        %v1326 = vpop.permute.xlu0 %1325
        %1327 = vrot.lane.b32.xlu0 %v1302, 4
        %v1328 = vpop.permute.xlu0 %1327
        %1329 = vrot.lane.b32.xlu0 %v1303, 4
        %v1330 = vpop.permute.xlu0 %1329
        %1331 = vrot.lane.b32.xlu0 %v1304, 4
        %v1332 = vpop.permute.xlu0 %1331
        %1333 = vrot.lane.b32.xlu0 %v1305, 4
        %v1334 = vpop.permute.xlu0 %1333
        %1335 = vrot.lane.b32.xlu0 %v1306, 4
        %v1336 = vpop.permute.xlu0 %1335
        %1337 = vrot.lane.b32.xlu0 %v1307, 4
        %v1338 = vpop.permute.xlu0 %1337
        %1339 = vrot.lane.b32.xlu0 %v1308, 4
        %v1340 = vpop.permute.xlu0 %1339
        %vm1357 = vcmask 64544
        %1358 = vst.msk [vmem:[#allocation3] sm:$0xff] %vm1357, %v1310
        %1359 = vst.msk [vmem:[#allocation3 + $0x8] sm:$0xff] %vm1357, %v1312
        %1360 = vst.msk [vmem:[#allocation3 + $0x10] sm:$0xff] %vm1357, %v1314
        %1361 = vst.msk [vmem:[#allocation3 + $0x18] sm:$0xff] %vm1357, %v1316
        %1362 = vst.msk [vmem:[#allocation3 + $0x20] sm:$0xff] %vm1357, %v1318
        %1363 = vst.msk [vmem:[#allocation3 + $0x28] sm:$0xff] %vm1357, %v1320
        %1364 = vst.msk [vmem:[#allocation3 + $0x30] sm:$0xff] %vm1357, %v1322
        %1365 = vst.msk [vmem:[#allocation3 + $0x38] sm:$0xff] %vm1357, %v1324
        %1366 = vst.msk [vmem:[#allocation3 + $0x40] sm:$0xff] %vm1357, %v1326
        %1367 = vst.msk [vmem:[#allocation3 + $0x48] sm:$0xff] %vm1357, %v1328
        %1368 = vst.msk [vmem:[#allocation3 + $0x50] sm:$0xff] %vm1357, %v1330
        %1369 = vst.msk [vmem:[#allocation3 + $0x58] sm:$0xff] %vm1357, %v1332
        %1370 = vst.msk [vmem:[#allocation3 + $0x60] sm:$0xff] %vm1357, %v1334
        %1371 = vst.msk [vmem:[#allocation3 + $0x68] sm:$0xff] %vm1357, %v1336
        %1372 = vst.msk [vmem:[#allocation3 + $0x70] sm:$0xff] %vm1357, %v1338
        %1373 = vst.msk [vmem:[#allocation3 + $0x78] sm:$0xff] %vm1357, %v1340
        %vm1390 = vcmask 1042432
        %vm1391 = vcmask 1046532
        %vm1392 = vmor %vm1390, %vm1391
        %v1393 = vrot.slane %v599, 5
        %v1394 = vrot.slane %v1393, 4
        %v1395 = vrot.slane %v600, 5
        %v1396 = vsel %vm1392, %v1394, %v1395
        %v1397 = vrot.slane %v1395, 4
        %v1398 = vrot.slane %v601, 5
        %v1399 = vsel %vm1392, %v1397, %v1398
        %v1400 = vrot.slane %v602, 5
        %v1401 = vrot.slane %v1400, 4
        %v1402 = vrot.slane %v603, 5
        %v1403 = vsel %vm1392, %v1401, %v1402
        %v1404 = vrot.slane %v1402, 4
        %v1405 = vrot.slane %v604, 5
        %v1406 = vsel %vm1392, %v1404, %v1405
        %v1407 = vrot.slane %v605, 5
        %v1408 = vrot.slane %v1407, 4
        %v1409 = vrot.slane %v606, 5
        %v1410 = vsel %vm1392, %v1408, %v1409
        %v1411 = vrot.slane %v1409, 4
        %v1412 = vrot.slane %v607, 5
        %v1413 = vsel %vm1392, %v1411, %v1412
        %v1414 = vrot.slane %v608, 5
        %v1415 = vrot.slane %v1414, 4
        %v1416 = vrot.slane %v609, 5
        %v1417 = vsel %vm1392, %v1415, %v1416
        %v1418 = vrot.slane %v1416, 4
        %v1419 = vrot.slane %v610, 5
        %v1420 = vsel %vm1392, %v1418, %v1419
        %v1421 = vrot.slane %v611, 5
        %v1422 = vrot.slane %v1421, 4
        %v1423 = vrot.slane %v612, 5
        %v1424 = vsel %vm1392, %v1422, %v1423
        %v1425 = vrot.slane %v1423, 4
        %v1426 = vrot.slane %v613, 5
        %v1427 = vsel %vm1392, %v1425, %v1426
        %v1428 = vrot.slane %v614, 5
        %v1429 = vrot.slane %v1428, 4
        %v1430 = vrot.slane %v615, 5
        %v1431 = vsel %vm1392, %v1429, %v1430
        %v1432 = vrot.slane %v1430, 4
        %v1433 = vrot.slane %v616, 5
        %v1434 = vsel %vm1392, %v1432, %v1433
        %v1435 = vrot.slane %v617, 5
        %v1436 = vrot.slane %v1435, 4
        %v1437 = vrot.slane %v618, 5
        %v1438 = vsel %vm1392, %v1436, %v1437
        %v1439 = vrot.slane %v1437, 4
        %v1440 = vrot.slane %v619, 5
        %v1441 = vsel %vm1392, %v1439, %v1440
        %v1442 = vrot.slane %v620, 5
        %v1443 = vrot.slane %v1442, 4
        %v1444 = vrot.slane %v621, 5
        %v1445 = vsel %vm1392, %v1443, %v1444
        %v1446 = vrot.slane %v1444, 4
        %v1447 = vrot.slane %v622, 5
        %v1448 = vsel %vm1392, %v1446, %v1447
        %v1449 = vrot.slane %v623, 5
        %v1450 = vrot.slane %v1449, 4
        %v1451 = vrot.slane %v624, 5
        %v1452 = vsel %vm1392, %v1450, %v1451
        %v1453 = vrot.slane %v1451, 4
        %v1454 = vrot.slane %v625, 5
        %v1455 = vsel %vm1392, %v1453, %v1454
        %v1456 = vrot.slane %v626, 5
        %v1457 = vrot.slane %v1456, 4
        %v1458 = vrot.slane %v627, 5
        %v1459 = vsel %vm1392, %v1457, %v1458
        %v1460 = vrot.slane %v1458, 4
        %v1461 = vrot.slane %v628, 5
        %v1462 = vsel %vm1392, %v1460, %v1461
        %v1463 = vrot.slane %v629, 5
        %v1464 = vrot.slane %v1463, 4
        %v1465 = vrot.slane %v630, 5
        %v1466 = vsel %vm1392, %v1464, %v1465
        %v1467 = vrot.slane %v1465, 4
        %v1468 = vrot.slane %v631, 5
        %v1469 = vsel %vm1392, %v1467, %v1468
        %v1470 = vrot.slane %v632, 5
        %v1471 = vrot.slane %v1470, 4
        %v1472 = vrot.slane %v633, 5
        %v1473 = vsel %vm1392, %v1471, %v1472
        %v1474 = vrot.slane %v1472, 4
        %v1475 = vrot.slane %v634, 5
        %v1476 = vsel %vm1392, %v1474, %v1475
        %v1477 = vrot.slane %v635, 5
        %v1478 = vrot.slane %v1477, 4
        %v1479 = vrot.slane %v636, 5
        %v1480 = vsel %vm1392, %v1478, %v1479
        %v1481 = vrot.slane %v1479, 4
        %v1482 = vrot.slane %v637, 5
        %v1483 = vsel %vm1392, %v1481, %v1482
        %v1484 = vrot.slane %v638, 5
        %v1485 = vrot.slane %v1484, 4
        %v1486 = vrot.slane %v639, 5
        %v1487 = vsel %vm1392, %v1485, %v1486
        %v1488 = vrot.slane %v1486, 4
        %v1489 = vrot.slane %v640, 5
        %v1490 = vsel %vm1392, %v1488, %v1489
        %v1491 = vrot.slane %v641, 5
        %v1492 = vrot.slane %v1491, 4
        %v1493 = vrot.slane %v642, 5
        %v1494 = vsel %vm1392, %v1492, %v1493
        %v1495 = vrot.slane %v1493, 4
        %v1496 = vrot.slane %v643, 5
        %v1497 = vsel %vm1392, %v1495, %v1496
        %v1498 = vrot.slane %v644, 5
        %v1499 = vrot.slane %v1498, 4
        %v1500 = vrot.slane %v645, 5
        %v1501 = vsel %vm1392, %v1499, %v1500
        %v1502 = vrot.slane %v1500, 4
        %v1503 = vrot.slane %v646, 5
        %v1504 = vsel %vm1392, %v1502, %v1503
        %v1505 = vunpack.c.l.b16 %v1396
        %v1506 = vunpack.c.l.b16 %v1399
        %v1507 = vunpack.c.l.b16 %v1403
        %v1508 = vunpack.c.l.b16 %v1406
        %v1509 = vunpack.c.l.b16 %v1410
        %v1510 = vunpack.c.l.b16 %v1413
        %v1511 = vunpack.c.l.b16 %v1417
        %v1512 = vunpack.c.l.b16 %v1420
        %v1513 = vunpack.c.l.b16 %v1424
        %v1514 = vunpack.c.l.b16 %v1427
        %v1515 = vunpack.c.l.b16 %v1431
        %v1516 = vunpack.c.l.b16 %v1434
        %v1517 = vunpack.c.l.b16 %v1438
        %v1518 = vunpack.c.l.b16 %v1441
        %v1519 = vunpack.c.l.b16 %v1445
        %v1520 = vunpack.c.l.b16 %v1448
        %v1521 = vunpack.c.l.b16 %v1452
        %v1522 = vunpack.c.l.b16 %v1455
        %v1523 = vunpack.c.l.b16 %v1459
        %v1524 = vunpack.c.l.b16 %v1462
        %v1525 = vunpack.c.l.b16 %v1466
        %v1526 = vunpack.c.l.b16 %v1469
        %v1527 = vunpack.c.l.b16 %v1473
        %v1528 = vunpack.c.l.b16 %v1476
        %v1529 = vunpack.c.l.b16 %v1480
        %v1530 = vunpack.c.l.b16 %v1483
        %v1531 = vunpack.c.l.b16 %v1487
        %v1532 = vunpack.c.l.b16 %v1490
        %v1533 = vunpack.c.l.b16 %v1494
        %v1534 = vunpack.c.l.b16 %v1497
        %v1535 = vunpack.c.l.b16 %v1501
        %v1536 = vunpack.c.l.b16 %v1504
        %v1537 = vpack.c.b16 %v1506, %v1505
        %v1538 = vpack.c.b16 %v1508, %v1507
        %v1539 = vpack.c.b16 %v1510, %v1509
        %v1540 = vpack.c.b16 %v1512, %v1511
        %v1541 = vpack.c.b16 %v1514, %v1513
        %v1542 = vpack.c.b16 %v1516, %v1515
        %v1543 = vpack.c.b16 %v1518, %v1517
        %v1544 = vpack.c.b16 %v1520, %v1519
        %v1545 = vpack.c.b16 %v1522, %v1521
        %v1546 = vpack.c.b16 %v1524, %v1523
        %v1547 = vpack.c.b16 %v1526, %v1525
        %v1548 = vpack.c.b16 %v1528, %v1527
        %v1549 = vpack.c.b16 %v1530, %v1529
        %v1550 = vpack.c.b16 %v1532, %v1531
        %v1551 = vpack.c.b16 %v1534, %v1533
        %v1552 = vpack.c.b16 %v1536, %v1535
        %1553 = vrot.lane.b32.xlu0 %v1537, 8
        %v1554 = vpop.permute.xlu0 %1553
        %1555 = vrot.lane.b32.xlu0 %v1538, 8
        %v1556 = vpop.permute.xlu0 %1555
        %1557 = vrot.lane.b32.xlu0 %v1539, 8
        %v1558 = vpop.permute.xlu0 %1557
        %1559 = vrot.lane.b32.xlu0 %v1540, 8
        %v1560 = vpop.permute.xlu0 %1559
        %1561 = vrot.lane.b32.xlu0 %v1541, 8
        %v1562 = vpop.permute.xlu0 %1561
        %1563 = vrot.lane.b32.xlu0 %v1542, 8
        %v1564 = vpop.permute.xlu0 %1563
        %1565 = vrot.lane.b32.xlu0 %v1543, 8
        %v1566 = vpop.permute.xlu0 %1565
        %1567 = vrot.lane.b32.xlu0 %v1544, 8
        %v1568 = vpop.permute.xlu0 %1567
        %1569 = vrot.lane.b32.xlu0 %v1545, 8
        %v1570 = vpop.permute.xlu0 %1569
        %1571 = vrot.lane.b32.xlu0 %v1546, 8
        %v1572 = vpop.permute.xlu0 %1571
        %1573 = vrot.lane.b32.xlu0 %v1547, 8
        %v1574 = vpop.permute.xlu0 %1573
        %1575 = vrot.lane.b32.xlu0 %v1548, 8
        %v1576 = vpop.permute.xlu0 %1575
        %1577 = vrot.lane.b32.xlu0 %v1549, 8
        %v1578 = vpop.permute.xlu0 %1577
        %1579 = vrot.lane.b32.xlu0 %v1550, 8
        %v1580 = vpop.permute.xlu0 %1579
        %1581 = vrot.lane.b32.xlu0 %v1551, 8
        %v1582 = vpop.permute.xlu0 %1581
        %1583 = vrot.lane.b32.xlu0 %v1552, 8
        %v1584 = vpop.permute.xlu0 %1583
        %vm1601 = vcmask 97344
        %1602 = vst.msk [vmem:[#allocation3] sm:$0xff] %vm1601, %v1554
        %1603 = vst.msk [vmem:[#allocation3 + $0x8] sm:$0xff] %vm1601, %v1556
        %1604 = vst.msk [vmem:[#allocation3 + $0x10] sm:$0xff] %vm1601, %v1558
        %1605 = vst.msk [vmem:[#allocation3 + $0x18] sm:$0xff] %vm1601, %v1560
        %1606 = vst.msk [vmem:[#allocation3 + $0x20] sm:$0xff] %vm1601, %v1562
        %1607 = vst.msk [vmem:[#allocation3 + $0x28] sm:$0xff] %vm1601, %v1564
        %1608 = vst.msk [vmem:[#allocation3 + $0x30] sm:$0xff] %vm1601, %v1566
        %1609 = vst.msk [vmem:[#allocation3 + $0x38] sm:$0xff] %vm1601, %v1568
        %1610 = vst.msk [vmem:[#allocation3 + $0x40] sm:$0xff] %vm1601, %v1570
        %1611 = vst.msk [vmem:[#allocation3 + $0x48] sm:$0xff] %vm1601, %v1572
        %1612 = vst.msk [vmem:[#allocation3 + $0x50] sm:$0xff] %vm1601, %v1574
        %1613 = vst.msk [vmem:[#allocation3 + $0x58] sm:$0xff] %vm1601, %v1576
        %1614 = vst.msk [vmem:[#allocation3 + $0x60] sm:$0xff] %vm1601, %v1578
        %1615 = vst.msk [vmem:[#allocation3 + $0x68] sm:$0xff] %vm1601, %v1580
        %1616 = vst.msk [vmem:[#allocation3 + $0x70] sm:$0xff] %vm1601, %v1582
        %1617 = vst.msk [vmem:[#allocation3 + $0x78] sm:$0xff] %vm1601, %v1584
        %v1620 = vunpack.c.l.b16 %v647
        %v1621 = vunpack.c.l.b16 %v648
        %v1622 = vpack.c.b16 %v1621, %v1620
        %1623 = vrot.lane.b32.xlu0 %v826, 12
        %v1624 = vpop.permute.xlu0 %1623
        %1625 = vrot.lane.b32.xlu0 %v827, 12
        %v1626 = vpop.permute.xlu0 %1625
        %1627 = vrot.lane.b32.xlu0 %v828, 12
        %v1628 = vpop.permute.xlu0 %1627
        %1629 = vrot.lane.b32.xlu0 %v829, 12
        %v1630 = vpop.permute.xlu0 %1629
        %1631 = vrot.lane.b32.xlu0 %v830, 12
        %v1632 = vpop.permute.xlu0 %1631
        %1633 = vrot.lane.b32.xlu0 %v831, 12
        %v1634 = vpop.permute.xlu0 %1633
        %1635 = vrot.lane.b32.xlu0 %v832, 12
        %v1636 = vpop.permute.xlu0 %1635
        %1637 = vrot.lane.b32.xlu0 %v833, 12
        %v1638 = vpop.permute.xlu0 %1637
        %1639 = vrot.lane.b32.xlu0 %v834, 12
        %v1640 = vpop.permute.xlu0 %1639
        %1641 = vrot.lane.b32.xlu0 %v835, 12
        %v1642 = vpop.permute.xlu0 %1641
        %1643 = vrot.lane.b32.xlu0 %v836, 12
        %v1644 = vpop.permute.xlu0 %1643
        %1645 = vrot.lane.b32.xlu0 %v837, 12
        %v1646 = vpop.permute.xlu0 %1645
        %1647 = vrot.lane.b32.xlu0 %v838, 12
        %v1648 = vpop.permute.xlu0 %1647
        %1649 = vrot.lane.b32.xlu0 %v839, 12
        %v1650 = vpop.permute.xlu0 %1649
        %1651 = vrot.lane.b32.xlu0 %v840, 12
        %v1652 = vpop.permute.xlu0 %1651
        %1653 = vrot.lane.b32.xlu0 %v1622, 12
        %v1654 = vpop.permute.xlu0 %1653
        %vm1671 = vcmask 130144
        %1672 = vst.msk [vmem:[#allocation3] sm:$0xff] %vm1671, %v1624
        %1673 = vst.msk [vmem:[#allocation3 + $0x8] sm:$0xff] %vm1671, %v1626
        %1674 = vst.msk [vmem:[#allocation3 + $0x10] sm:$0xff] %vm1671, %v1628
        %1675 = vst.msk [vmem:[#allocation3 + $0x18] sm:$0xff] %vm1671, %v1630
        %1676 = vst.msk [vmem:[#allocation3 + $0x20] sm:$0xff] %vm1671, %v1632
        %1677 = vst.msk [vmem:[#allocation3 + $0x28] sm:$0xff] %vm1671, %v1634
        %1678 = vst.msk [vmem:[#allocation3 + $0x30] sm:$0xff] %vm1671, %v1636
        %1679 = vst.msk [vmem:[#allocation3 + $0x38] sm:$0xff] %vm1671, %v1638
        %1680 = vst.msk [vmem:[#allocation3 + $0x40] sm:$0xff] %vm1671, %v1640
        %1681 = vst.msk [vmem:[#allocation3 + $0x48] sm:$0xff] %vm1671, %v1642
        %1682 = vst.msk [vmem:[#allocation3 + $0x50] sm:$0xff] %vm1671, %v1644
        %1683 = vst.msk [vmem:[#allocation3 + $0x58] sm:$0xff] %vm1671, %v1646
        %1684 = vst.msk [vmem:[#allocation3 + $0x60] sm:$0xff] %vm1671, %v1648
        %1685 = vst.msk [vmem:[#allocation3 + $0x68] sm:$0xff] %vm1671, %v1650
        %1686 = vst.msk [vmem:[#allocation3 + $0x70] sm:$0xff] %vm1671, %v1652
        %1687 = vst.msk [vmem:[#allocation3 + $0x78] sm:$0xff] %vm1671, %v1654
        %v1689 = vshrl.u32 %v647, 16
        %v1691 = vrot.slane %v1689, 4
        %v1692 = vshll.u32 %v647, 16
        %v1694 = vrot.slane %v1692, 5
        %v1695 = vor.u32 %v1691, %v1694
        %v1696 = vrot.slane %v1695, 4
        %v1698 = vshll.u32 %v648, 16
        %v1700 = vrot.slane %v1698, 5
        %v1701 = vsel %vm876, %v1696, %v1700
        %v1702 = vshrl.u32 %v648, 16
        %v1704 = vrot.slane %v1702, 4
        %v1705 = vor.u32 %v1704, %v1700
        %v1706 = vrot.slane %v1705, 4
        %v1708 = vshll.u32 %v649, 16
        %v1710 = vrot.slane %v1708, 5
        %v1711 = vsel %vm876, %v1706, %v1710
        %v1712 = vunpack.c.l.b16 %v1701
        %v1713 = vunpack.c.l.b16 %v1711
        %v1714 = vpack.c.b16 %v1713, %v1712
        %1715 = vrot.lane.b32.xlu0 %v1294, 16
        %v1716 = vpop.permute.xlu0 %1715
        %1717 = vrot.lane.b32.xlu0 %v1295, 16
        %v1718 = vpop.permute.xlu0 %1717
        %1719 = vrot.lane.b32.xlu0 %v1296, 16
        %v1720 = vpop.permute.xlu0 %1719
        %1721 = vrot.lane.b32.xlu0 %v1297, 16
        %v1722 = vpop.permute.xlu0 %1721
        %1723 = vrot.lane.b32.xlu0 %v1298, 16
        %v1724 = vpop.permute.xlu0 %1723
        %1725 = vrot.lane.b32.xlu0 %v1299, 16
        %v1726 = vpop.permute.xlu0 %1725
        %1727 = vrot.lane.b32.xlu0 %v1300, 16
        %v1728 = vpop.permute.xlu0 %1727
        %1729 = vrot.lane.b32.xlu0 %v1301, 16
        %v1730 = vpop.permute.xlu0 %1729
        %1731 = vrot.lane.b32.xlu0 %v1302, 16
        %v1732 = vpop.permute.xlu0 %1731
        %1733 = vrot.lane.b32.xlu0 %v1303, 16
        %v1734 = vpop.permute.xlu0 %1733
        %1735 = vrot.lane.b32.xlu0 %v1304, 16
        %v1736 = vpop.permute.xlu0 %1735
        %1737 = vrot.lane.b32.xlu0 %v1305, 16
        %v1738 = vpop.permute.xlu0 %1737
        %1739 = vrot.lane.b32.xlu0 %v1306, 16
        %v1740 = vpop.permute.xlu0 %1739
        %1741 = vrot.lane.b32.xlu0 %v1307, 16
        %v1742 = vpop.permute.xlu0 %1741
        %1743 = vrot.lane.b32.xlu0 %v1308, 16
        %v1744 = vpop.permute.xlu0 %1743
        %1745 = vrot.lane.b32.xlu0 %v1714, 16
        %v1746 = vpop.permute.xlu0 %1745
        %vm1763 = vcmask 162944
        %1764 = vst.msk [vmem:[#allocation3] sm:$0xff] %vm1763, %v1716
        %1765 = vst.msk [vmem:[#allocation3 + $0x8] sm:$0xff] %vm1763, %v1718
        %1766 = vst.msk [vmem:[#allocation3 + $0x10] sm:$0xff] %vm1763, %v1720
        %1767 = vst.msk [vmem:[#allocation3 + $0x18] sm:$0xff] %vm1763, %v1722
        %1768 = vst.msk [vmem:[#allocation3 + $0x20] sm:$0xff] %vm1763, %v1724
        %1769 = vst.msk [vmem:[#allocation3 + $0x28] sm:$0xff] %vm1763, %v1726
        %1770 = vst.msk [vmem:[#allocation3 + $0x30] sm:$0xff] %vm1763, %v1728
        %1771 = vst.msk [vmem:[#allocation3 + $0x38] sm:$0xff] %vm1763, %v1730
        %1772 = vst.msk [vmem:[#allocation3 + $0x40] sm:$0xff] %vm1763, %v1732
        %1773 = vst.msk [vmem:[#allocation3 + $0x48] sm:$0xff] %vm1763, %v1734
        %1774 = vst.msk [vmem:[#allocation3 + $0x50] sm:$0xff] %vm1763, %v1736
        %1775 = vst.msk [vmem:[#allocation3 + $0x58] sm:$0xff] %vm1763, %v1738
        %1776 = vst.msk [vmem:[#allocation3 + $0x60] sm:$0xff] %vm1763, %v1740
        %1777 = vst.msk [vmem:[#allocation3 + $0x68] sm:$0xff] %vm1763, %v1742
        %1778 = vst.msk [vmem:[#allocation3 + $0x70] sm:$0xff] %vm1763, %v1744
        %1779 = vst.msk [vmem:[#allocation3 + $0x78] sm:$0xff] %vm1763, %v1746
        %v1781 = vrot.slane %v647, 5
        %v1782 = vrot.slane %v1781, 4
        %v1783 = vrot.slane %v648, 5
        %v1784 = vsel %vm1392, %v1782, %v1783
        %v1785 = vrot.slane %v1783, 4
        %v1786 = vrot.slane %v649, 5
        %v1787 = vsel %vm1392, %v1785, %v1786
        %v1788 = vunpack.c.l.b16 %v1784
        %v1789 = vunpack.c.l.b16 %v1787
        %v1790 = vpack.c.b16 %v1789, %v1788
        %1791 = vrot.lane.b32.xlu0 %v1538, 20
        %v1792 = vpop.permute.xlu0 %1791
        %1793 = vrot.lane.b32.xlu0 %v1539, 20
        %v1794 = vpop.permute.xlu0 %1793
        %1795 = vrot.lane.b32.xlu0 %v1540, 20
        %v1796 = vpop.permute.xlu0 %1795
        %1797 = vrot.lane.b32.xlu0 %v1541, 20
        %v1798 = vpop.permute.xlu0 %1797
        %1799 = vrot.lane.b32.xlu0 %v1542, 20
        %v1800 = vpop.permute.xlu0 %1799
        %1801 = vrot.lane.b32.xlu0 %v1543, 20
        %v1802 = vpop.permute.xlu0 %1801
        %1803 = vrot.lane.b32.xlu0 %v1544, 20
        %v1804 = vpop.permute.xlu0 %1803
        %1805 = vrot.lane.b32.xlu0 %v1545, 20
        %v1806 = vpop.permute.xlu0 %1805
        %1807 = vrot.lane.b32.xlu0 %v1546, 20
        %v1808 = vpop.permute.xlu0 %1807
        %1809 = vrot.lane.b32.xlu0 %v1547, 20
        %v1810 = vpop.permute.xlu0 %1809
        %1811 = vrot.lane.b32.xlu0 %v1548, 20
        %v1812 = vpop.permute.xlu0 %1811
        %1813 = vrot.lane.b32.xlu0 %v1549, 20
        %v1814 = vpop.permute.xlu0 %1813
        %1815 = vrot.lane.b32.xlu0 %v1550, 20
        %v1816 = vpop.permute.xlu0 %1815
        %1817 = vrot.lane.b32.xlu0 %v1551, 20
        %v1818 = vpop.permute.xlu0 %1817
        %1819 = vrot.lane.b32.xlu0 %v1552, 20
        %v1820 = vpop.permute.xlu0 %1819
        %1821 = vrot.lane.b32.xlu0 %v1790, 20
        %v1822 = vpop.permute.xlu0 %1821
        %vm1839 = vcmask 195744
        %1840 = vst.msk [vmem:[#allocation3] sm:$0xff] %vm1839, %v1792
        %1841 = vst.msk [vmem:[#allocation3 + $0x8] sm:$0xff] %vm1839, %v1794
        %1842 = vst.msk [vmem:[#allocation3 + $0x10] sm:$0xff] %vm1839, %v1796
        %1843 = vst.msk [vmem:[#allocation3 + $0x18] sm:$0xff] %vm1839, %v1798
        %1844 = vst.msk [vmem:[#allocation3 + $0x20] sm:$0xff] %vm1839, %v1800
        %1845 = vst.msk [vmem:[#allocation3 + $0x28] sm:$0xff] %vm1839, %v1802
        %1846 = vst.msk [vmem:[#allocation3 + $0x30] sm:$0xff] %vm1839, %v1804
        %1847 = vst.msk [vmem:[#allocation3 + $0x38] sm:$0xff] %vm1839, %v1806
        %1848 = vst.msk [vmem:[#allocation3 + $0x40] sm:$0xff] %vm1839, %v1808
        %1849 = vst.msk [vmem:[#allocation3 + $0x48] sm:$0xff] %vm1839, %v1810
        %1850 = vst.msk [vmem:[#allocation3 + $0x50] sm:$0xff] %vm1839, %v1812
        %1851 = vst.msk [vmem:[#allocation3 + $0x58] sm:$0xff] %vm1839, %v1814
        %1852 = vst.msk [vmem:[#allocation3 + $0x60] sm:$0xff] %vm1839, %v1816
        %1853 = vst.msk [vmem:[#allocation3 + $0x68] sm:$0xff] %vm1839, %v1818
        %1854 = vst.msk [vmem:[#allocation3 + $0x70] sm:$0xff] %vm1839, %v1820
        %1855 = vst.msk [vmem:[#allocation3 + $0x78] sm:$0xff] %vm1839, %v1822
        %v1858 = vunpack.c.l.b16 %v650
        %v1859 = vunpack.c.l.b16 %v651
        %v1860 = vpack.c.b16 %v1859, %v1858
        %1861 = vrot.lane.b32.xlu0 %v827, 24
        %v1862 = vpop.permute.xlu0 %1861
        %1863 = vrot.lane.b32.xlu0 %v828, 24
        %v1864 = vpop.permute.xlu0 %1863
        %1865 = vrot.lane.b32.xlu0 %v829, 24
        %v1866 = vpop.permute.xlu0 %1865
        %1867 = vrot.lane.b32.xlu0 %v830, 24
        %v1868 = vpop.permute.xlu0 %1867
        %1869 = vrot.lane.b32.xlu0 %v831, 24
        %v1870 = vpop.permute.xlu0 %1869
        %1871 = vrot.lane.b32.xlu0 %v832, 24
        %v1872 = vpop.permute.xlu0 %1871
        %1873 = vrot.lane.b32.xlu0 %v833, 24
        %v1874 = vpop.permute.xlu0 %1873
        %1875 = vrot.lane.b32.xlu0 %v834, 24
        %v1876 = vpop.permute.xlu0 %1875
        %1877 = vrot.lane.b32.xlu0 %v835, 24
        %v1878 = vpop.permute.xlu0 %1877
        %1879 = vrot.lane.b32.xlu0 %v836, 24
        %v1880 = vpop.permute.xlu0 %1879
        %1881 = vrot.lane.b32.xlu0 %v837, 24
        %v1882 = vpop.permute.xlu0 %1881
        %1883 = vrot.lane.b32.xlu0 %v838, 24
        %v1884 = vpop.permute.xlu0 %1883
        %1885 = vrot.lane.b32.xlu0 %v839, 24
        %v1886 = vpop.permute.xlu0 %1885
        %1887 = vrot.lane.b32.xlu0 %v840, 24
        %v1888 = vpop.permute.xlu0 %1887
        %1889 = vrot.lane.b32.xlu0 %v1622, 24
        %v1890 = vpop.permute.xlu0 %1889
        %1891 = vrot.lane.b32.xlu0 %v1860, 24
        %v1892 = vpop.permute.xlu0 %1891
        %vm1909 = vcmask 228544
        %1910 = vst.msk [vmem:[#allocation3] sm:$0xff] %vm1909, %v1862
        %1911 = vst.msk [vmem:[#allocation3 + $0x8] sm:$0xff] %vm1909, %v1864
        %1912 = vst.msk [vmem:[#allocation3 + $0x10] sm:$0xff] %vm1909, %v1866
        %1913 = vst.msk [vmem:[#allocation3 + $0x18] sm:$0xff] %vm1909, %v1868
        %1914 = vst.msk [vmem:[#allocation3 + $0x20] sm:$0xff] %vm1909, %v1870
        %1915 = vst.msk [vmem:[#allocation3 + $0x28] sm:$0xff] %vm1909, %v1872
        %1916 = vst.msk [vmem:[#allocation3 + $0x30] sm:$0xff] %vm1909, %v1874
        %1917 = vst.msk [vmem:[#allocation3 + $0x38] sm:$0xff] %vm1909, %v1876
        %1918 = vst.msk [vmem:[#allocation3 + $0x40] sm:$0xff] %vm1909, %v1878
        %1919 = vst.msk [vmem:[#allocation3 + $0x48] sm:$0xff] %vm1909, %v1880
        %1920 = vst.msk [vmem:[#allocation3 + $0x50] sm:$0xff] %vm1909, %v1882
        %1921 = vst.msk [vmem:[#allocation3 + $0x58] sm:$0xff] %vm1909, %v1884
        %1922 = vst.msk [vmem:[#allocation3 + $0x60] sm:$0xff] %vm1909, %v1886
        %1923 = vst.msk [vmem:[#allocation3 + $0x68] sm:$0xff] %vm1909, %v1888
        %1924 = vst.msk [vmem:[#allocation3 + $0x70] sm:$0xff] %vm1909, %v1890
        %1925 = vst.msk [vmem:[#allocation3 + $0x78] sm:$0xff] %vm1909, %v1892
        %v1927 = vshrl.u32 %v650, 16
        %v1929 = vrot.slane %v1927, 4
        %v1930 = vshll.u32 %v650, 16
        %v1932 = vrot.slane %v1930, 5
        %v1933 = vor.u32 %v1929, %v1932
        %v1934 = vrot.slane %v1933, 4
        %v1936 = vshll.u32 %v651, 16
        %v1938 = vrot.slane %v1936, 5
        %v1939 = vsel %vm876, %v1934, %v1938
        %v1940 = vshrl.u32 %v651, 16
        %v1942 = vrot.slane %v1940, 4
        %v1943 = vor.u32 %v1942, %v1938
        %v1944 = vrot.slane %v1943, 4
        %v1946 = vshll.u32 %v652, 16
        %v1948 = vrot.slane %v1946, 5
        %v1949 = vsel %vm876, %v1944, %v1948
        %v1950 = vunpack.c.l.b16 %v1939
        %v1951 = vunpack.c.l.b16 %v1949
        %v1952 = vpack.c.b16 %v1951, %v1950
        %1953 = vrot.lane.b32.xlu0 %v1295, 28
        %v1954 = vpop.permute.xlu0 %1953
        %1955 = vrot.lane.b32.xlu0 %v1296, 28
        %v1956 = vpop.permute.xlu0 %1955
        %1957 = vrot.lane.b32.xlu0 %v1297, 28
        %v1958 = vpop.permute.xlu0 %1957
        %1959 = vrot.lane.b32.xlu0 %v1298, 28
        %v1960 = vpop.permute.xlu0 %1959
        %1961 = vrot.lane.b32.xlu0 %v1299, 28
        %v1962 = vpop.permute.xlu0 %1961
        %1963 = vrot.lane.b32.xlu0 %v1300, 28
        %v1964 = vpop.permute.xlu0 %1963
        %1965 = vrot.lane.b32.xlu0 %v1301, 28
        %v1966 = vpop.permute.xlu0 %1965
        %1967 = vrot.lane.b32.xlu0 %v1302, 28
        %v1968 = vpop.permute.xlu0 %1967
        %1969 = vrot.lane.b32.xlu0 %v1303, 28
        %v1970 = vpop.permute.xlu0 %1969
        %1971 = vrot.lane.b32.xlu0 %v1304, 28
        %v1972 = vpop.permute.xlu0 %1971
        %1973 = vrot.lane.b32.xlu0 %v1305, 28
        %v1974 = vpop.permute.xlu0 %1973
        %1975 = vrot.lane.b32.xlu0 %v1306, 28
        %v1976 = vpop.permute.xlu0 %1975
        %1977 = vrot.lane.b32.xlu0 %v1307, 28
        %v1978 = vpop.permute.xlu0 %1977
        %1979 = vrot.lane.b32.xlu0 %v1308, 28
        %v1980 = vpop.permute.xlu0 %1979
        %1981 = vrot.lane.b32.xlu0 %v1714, 28
        %v1982 = vpop.permute.xlu0 %1981
        %1983 = vrot.lane.b32.xlu0 %v1952, 28
        %v1984 = vpop.permute.xlu0 %1983
        %vm2001 = vcmask 261344
        %2002 = vst.msk [vmem:[#allocation3] sm:$0xff] %vm2001, %v1954
        %2003 = vst.msk [vmem:[#allocation3 + $0x8] sm:$0xff] %vm2001, %v1956
        %2004 = vst.msk [vmem:[#allocation3 + $0x10] sm:$0xff] %vm2001, %v1958
        %2005 = vst.msk [vmem:[#allocation3 + $0x18] sm:$0xff] %vm2001, %v1960
        %2006 = vst.msk [vmem:[#allocation3 + $0x20] sm:$0xff] %vm2001, %v1962
        %2007 = vst.msk [vmem:[#allocation3 + $0x28] sm:$0xff] %vm2001, %v1964
        %2008 = vst.msk [vmem:[#allocation3 + $0x30] sm:$0xff] %vm2001, %v1966
        %2009 = vst.msk [vmem:[#allocation3 + $0x38] sm:$0xff] %vm2001, %v1968
        %2010 = vst.msk [vmem:[#allocation3 + $0x40] sm:$0xff] %vm2001, %v1970
        %2011 = vst.msk [vmem:[#allocation3 + $0x48] sm:$0xff] %vm2001, %v1972
        %2012 = vst.msk [vmem:[#allocation3 + $0x50] sm:$0xff] %vm2001, %v1974
        %2013 = vst.msk [vmem:[#allocation3 + $0x58] sm:$0xff] %vm2001, %v1976
        %2014 = vst.msk [vmem:[#allocation3 + $0x60] sm:$0xff] %vm2001, %v1978
        %2015 = vst.msk [vmem:[#allocation3 + $0x68] sm:$0xff] %vm2001, %v1980
        %2016 = vst.msk [vmem:[#allocation3 + $0x70] sm:$0xff] %vm2001, %v1982
        %2017 = vst.msk [vmem:[#allocation3 + $0x78] sm:$0xff] %vm2001, %v1984
        %v2019 = vrot.slane %v650, 5
        %v2020 = vrot.slane %v2019, 4
        %v2021 = vrot.slane %v651, 5
        %v2022 = vsel %vm1392, %v2020, %v2021
        %v2023 = vrot.slane %v2021, 4
        %v2024 = vrot.slane %v652, 5
        %v2025 = vsel %vm1392, %v2023, %v2024
        %v2026 = vunpack.c.l.b16 %v2022
        %v2027 = vunpack.c.l.b16 %v2025
        %v2028 = vpack.c.b16 %v2027, %v2026
        %2029 = vrot.lane.b32.xlu0 %v1539, 32
        %v2030 = vpop.permute.xlu0 %2029
        %2031 = vrot.lane.b32.xlu0 %v1540, 32
        %v2032 = vpop.permute.xlu0 %2031
        %2033 = vrot.lane.b32.xlu0 %v1541, 32
        %v2034 = vpop.permute.xlu0 %2033
        %2035 = vrot.lane.b32.xlu0 %v1542, 32
        %v2036 = vpop.permute.xlu0 %2035
        %2037 = vrot.lane.b32.xlu0 %v1543, 32
        %v2038 = vpop.permute.xlu0 %2037
        %2039 = vrot.lane.b32.xlu0 %v1544, 32
        %v2040 = vpop.permute.xlu0 %2039
        %2041 = vrot.lane.b32.xlu0 %v1545, 32
        %v2042 = vpop.permute.xlu0 %2041
        %2043 = vrot.lane.b32.xlu0 %v1546, 32
        %v2044 = vpop.permute.xlu0 %2043
        %2045 = vrot.lane.b32.xlu0 %v1547, 32
        %v2046 = vpop.permute.xlu0 %2045
        %2047 = vrot.lane.b32.xlu0 %v1548, 32
        %v2048 = vpop.permute.xlu0 %2047
        %2049 = vrot.lane.b32.xlu0 %v1549, 32
        %v2050 = vpop.permute.xlu0 %2049
        %2051 = vrot.lane.b32.xlu0 %v1550, 32
        %v2052 = vpop.permute.xlu0 %2051
        %2053 = vrot.lane.b32.xlu0 %v1551, 32
        %v2054 = vpop.permute.xlu0 %2053
        %2055 = vrot.lane.b32.xlu0 %v1552, 32
        %v2056 = vpop.permute.xlu0 %2055
        %2057 = vrot.lane.b32.xlu0 %v1790, 32
        %v2058 = vpop.permute.xlu0 %2057
        %2059 = vrot.lane.b32.xlu0 %v2028, 32
        %v2060 = vpop.permute.xlu0 %2059
        %vm2077 = vcmask 294144
        %2078 = vst.msk [vmem:[#allocation3] sm:$0xff] %vm2077, %v2030
        %2079 = vst.msk [vmem:[#allocation3 + $0x8] sm:$0xff] %vm2077, %v2032
        %2080 = vst.msk [vmem:[#allocation3 + $0x10] sm:$0xff] %vm2077, %v2034
        %2081 = vst.msk [vmem:[#allocation3 + $0x18] sm:$0xff] %vm2077, %v2036
        %2082 = vst.msk [vmem:[#allocation3 + $0x20] sm:$0xff] %vm2077, %v2038
        %2083 = vst.msk [vmem:[#allocation3 + $0x28] sm:$0xff] %vm2077, %v2040
        %2084 = vst.msk [vmem:[#allocation3 + $0x30] sm:$0xff] %vm2077, %v2042
        %2085 = vst.msk [vmem:[#allocation3 + $0x38] sm:$0xff] %vm2077, %v2044
        %2086 = vst.msk [vmem:[#allocation3 + $0x40] sm:$0xff] %vm2077, %v2046
        %2087 = vst.msk [vmem:[#allocation3 + $0x48] sm:$0xff] %vm2077, %v2048
        %2088 = vst.msk [vmem:[#allocation3 + $0x50] sm:$0xff] %vm2077, %v2050
        %2089 = vst.msk [vmem:[#allocation3 + $0x58] sm:$0xff] %vm2077, %v2052
        %2090 = vst.msk [vmem:[#allocation3 + $0x60] sm:$0xff] %vm2077, %v2054
        %2091 = vst.msk [vmem:[#allocation3 + $0x68] sm:$0xff] %vm2077, %v2056
        %2092 = vst.msk [vmem:[#allocation3 + $0x70] sm:$0xff] %vm2077, %v2058
        %2093 = vst.msk [vmem:[#allocation3 + $0x78] sm:$0xff] %vm2077, %v2060
        %v2126 = vunpack.c.l.b16 %v653
        %v2127 = vunpack.c.l.b16 %v654
        %v2128 = vunpack.c.l.b16 %v656
        %v2129 = vunpack.c.l.b16 %v657
        %v2130 = vunpack.c.l.b16 %v659
        %v2131 = vunpack.c.l.b16 %v660
        %v2132 = vunpack.c.l.b16 %v662
        %v2133 = vunpack.c.l.b16 %v663
        %v2134 = vunpack.c.l.b16 %v665
        %v2135 = vunpack.c.l.b16 %v666
        %v2136 = vunpack.c.l.b16 %v668
        %v2137 = vunpack.c.l.b16 %v669
        %v2138 = vunpack.c.l.b16 %v671
        %v2139 = vunpack.c.l.b16 %v672
        %v2140 = vunpack.c.l.b16 %v674
        %v2141 = vunpack.c.l.b16 %v675
        %v2142 = vunpack.c.l.b16 %v677
        %v2143 = vunpack.c.l.b16 %v678
        %v2144 = vunpack.c.l.b16 %v680
        %v2145 = vunpack.c.l.b16 %v681
        %v2146 = vunpack.c.l.b16 %v683
        %v2147 = vunpack.c.l.b16 %v684
        %v2148 = vunpack.c.l.b16 %v686
        %v2149 = vunpack.c.l.b16 %v687
        %v2150 = vunpack.c.l.b16 %v689
        %v2151 = vunpack.c.l.b16 %v690
        %v2152 = vunpack.c.l.b16 %v692
        %v2153 = vunpack.c.l.b16 %v693
        %v2154 = vunpack.c.l.b16 %v695
        %v2155 = vunpack.c.l.b16 %v696
        %v2156 = vunpack.c.l.b16 %v698
        %v2157 = vunpack.c.l.b16 %v699
        %v2158 = vpack.c.b16 %v2127, %v2126
        %v2159 = vpack.c.b16 %v2129, %v2128
        %v2160 = vpack.c.b16 %v2131, %v2130
        %v2161 = vpack.c.b16 %v2133, %v2132
        %v2162 = vpack.c.b16 %v2135, %v2134
        %v2163 = vpack.c.b16 %v2137, %v2136
        %v2164 = vpack.c.b16 %v2139, %v2138
        %v2165 = vpack.c.b16 %v2141, %v2140
        %v2166 = vpack.c.b16 %v2143, %v2142
        %v2167 = vpack.c.b16 %v2145, %v2144
        %v2168 = vpack.c.b16 %v2147, %v2146
        %v2169 = vpack.c.b16 %v2149, %v2148
        %v2170 = vpack.c.b16 %v2151, %v2150
        %v2171 = vpack.c.b16 %v2153, %v2152
        %v2172 = vpack.c.b16 %v2155, %v2154
        %v2173 = vpack.c.b16 %v2157, %v2156
        %2174 = vrot.lane.b32.xlu0 %v2158, 36
        %v2175 = vpop.permute.xlu0 %2174
        %2176 = vrot.lane.b32.xlu0 %v2159, 36
        %v2177 = vpop.permute.xlu0 %2176
        %2178 = vrot.lane.b32.xlu0 %v2160, 36
        %v2179 = vpop.permute.xlu0 %2178
        %2180 = vrot.lane.b32.xlu0 %v2161, 36
        %v2181 = vpop.permute.xlu0 %2180
        %2182 = vrot.lane.b32.xlu0 %v2162, 36
        %v2183 = vpop.permute.xlu0 %2182
        %2184 = vrot.lane.b32.xlu0 %v2163, 36
        %v2185 = vpop.permute.xlu0 %2184
        %2186 = vrot.lane.b32.xlu0 %v2164, 36
        %v2187 = vpop.permute.xlu0 %2186
        %2188 = vrot.lane.b32.xlu0 %v2165, 36
        %v2189 = vpop.permute.xlu0 %2188
        %2190 = vrot.lane.b32.xlu0 %v2166, 36
        %v2191 = vpop.permute.xlu0 %2190
        %2192 = vrot.lane.b32.xlu0 %v2167, 36
        %v2193 = vpop.permute.xlu0 %2192
        %2194 = vrot.lane.b32.xlu0 %v2168, 36
        %v2195 = vpop.permute.xlu0 %2194
        %2196 = vrot.lane.b32.xlu0 %v2169, 36
        %v2197 = vpop.permute.xlu0 %2196
        %2198 = vrot.lane.b32.xlu0 %v2170, 36
        %v2199 = vpop.permute.xlu0 %2198
        %2200 = vrot.lane.b32.xlu0 %v2171, 36
        %v2201 = vpop.permute.xlu0 %2200
        %2202 = vrot.lane.b32.xlu0 %v2172, 36
        %v2203 = vpop.permute.xlu0 %2202
        %2204 = vrot.lane.b32.xlu0 %v2173, 36
        %v2205 = vpop.permute.xlu0 %2204
        %vm2222 = vcmask 326944
        %2223 = vst.msk [vmem:[#allocation3] sm:$0xff] %vm2222, %v2175
        %2224 = vst.msk [vmem:[#allocation3 + $0x8] sm:$0xff] %vm2222, %v2177
        %2225 = vst.msk [vmem:[#allocation3 + $0x10] sm:$0xff] %vm2222, %v2179
        %2226 = vst.msk [vmem:[#allocation3 + $0x18] sm:$0xff] %vm2222, %v2181
        %2227 = vst.msk [vmem:[#allocation3 + $0x20] sm:$0xff] %vm2222, %v2183
        %2228 = vst.msk [vmem:[#allocation3 + $0x28] sm:$0xff] %vm2222, %v2185
        %2229 = vst.msk [vmem:[#allocation3 + $0x30] sm:$0xff] %vm2222, %v2187
        %2230 = vst.msk [vmem:[#allocation3 + $0x38] sm:$0xff] %vm2222, %v2189
        %2231 = vst.msk [vmem:[#allocation3 + $0x40] sm:$0xff] %vm2222, %v2191
        %2232 = vst.msk [vmem:[#allocation3 + $0x48] sm:$0xff] %vm2222, %v2193
        %2233 = vst.msk [vmem:[#allocation3 + $0x50] sm:$0xff] %vm2222, %v2195
        %2234 = vst.msk [vmem:[#allocation3 + $0x58] sm:$0xff] %vm2222, %v2197
        %2235 = vst.msk [vmem:[#allocation3 + $0x60] sm:$0xff] %vm2222, %v2199
        %2236 = vst.msk [vmem:[#allocation3 + $0x68] sm:$0xff] %vm2222, %v2201
        %2237 = vst.msk [vmem:[#allocation3 + $0x70] sm:$0xff] %vm2222, %v2203
        %2238 = vst.msk [vmem:[#allocation3 + $0x78] sm:$0xff] %vm2222, %v2205
        %v2240 = vshrl.u32 %v653, 16
        %v2242 = vrot.slane %v2240, 4
        %v2243 = vshll.u32 %v653, 16
        %v2245 = vrot.slane %v2243, 5
        %v2246 = vor.u32 %v2242, %v2245
        %v2247 = vrot.slane %v2246, 4
        %v2249 = vshll.u32 %v654, 16
        %v2251 = vrot.slane %v2249, 5
        %v2252 = vsel %vm876, %v2247, %v2251
        %v2253 = vshrl.u32 %v654, 16
        %v2255 = vrot.slane %v2253, 4
        %v2256 = vor.u32 %v2255, %v2251
        %v2257 = vrot.slane %v2256, 4
        %v2259 = vshll.u32 %v655, 16
        %v2261 = vrot.slane %v2259, 5
        %v2262 = vsel %vm876, %v2257, %v2261
        %v2264 = vshrl.u32 %v656, 16
        %v2266 = vrot.slane %v2264, 4
        %v2267 = vshll.u32 %v656, 16
        %v2269 = vrot.slane %v2267, 5
        %v2270 = vor.u32 %v2266, %v2269
        %v2271 = vrot.slane %v2270, 4
        %v2273 = vshll.u32 %v657, 16
        %v2275 = vrot.slane %v2273, 5
        %v2276 = vsel %vm876, %v2271, %v2275
        %v2277 = vshrl.u32 %v657, 16
        %v2279 = vrot.slane %v2277, 4
        %v2280 = vor.u32 %v2279, %v2275
        %v2281 = vrot.slane %v2280, 4
        %v2283 = vshll.u32 %v658, 16
        %v2285 = vrot.slane %v2283, 5
        %v2286 = vsel %vm876, %v2281, %v2285
        %v2288 = vshrl.u32 %v659, 16
        %v2290 = vrot.slane %v2288, 4
        %v2291 = vshll.u32 %v659, 16
        %v2293 = vrot.slane %v2291, 5
        %v2294 = vor.u32 %v2290, %v2293
        %v2295 = vrot.slane %v2294, 4
        %v2297 = vshll.u32 %v660, 16
        %v2299 = vrot.slane %v2297, 5
        %v2300 = vsel %vm876, %v2295, %v2299
        %v2301 = vshrl.u32 %v660, 16
        %v2303 = vrot.slane %v2301, 4
        %v2304 = vor.u32 %v2303, %v2299
        %v2305 = vrot.slane %v2304, 4
        %v2307 = vshll.u32 %v661, 16
        %v2309 = vrot.slane %v2307, 5
        %v2310 = vsel %vm876, %v2305, %v2309
        %v2312 = vshrl.u32 %v662, 16
        %v2314 = vrot.slane %v2312, 4
        %v2315 = vshll.u32 %v662, 16
        %v2317 = vrot.slane %v2315, 5
        %v2318 = vor.u32 %v2314, %v2317
        %v2319 = vrot.slane %v2318, 4
        %v2321 = vshll.u32 %v663, 16
        %v2323 = vrot.slane %v2321, 5
        %v2324 = vsel %vm876, %v2319, %v2323
        %v2325 = vshrl.u32 %v663, 16
        %v2327 = vrot.slane %v2325, 4
        %v2328 = vor.u32 %v2327, %v2323
        %v2329 = vrot.slane %v2328, 4
        %v2331 = vshll.u32 %v664, 16
        %v2333 = vrot.slane %v2331, 5
        %v2334 = vsel %vm876, %v2329, %v2333
        %v2336 = vshrl.u32 %v665, 16
        %v2338 = vrot.slane %v2336, 4
        %v2339 = vshll.u32 %v665, 16
        %v2341 = vrot.slane %v2339, 5
        %v2342 = vor.u32 %v2338, %v2341
        %v2343 = vrot.slane %v2342, 4
        %v2345 = vshll.u32 %v666, 16
        %v2347 = vrot.slane %v2345, 5
        %v2348 = vsel %vm876, %v2343, %v2347
        %v2349 = vshrl.u32 %v666, 16
        %v2351 = vrot.slane %v2349, 4
        %v2352 = vor.u32 %v2351, %v2347
        %v2353 = vrot.slane %v2352, 4
        %v2355 = vshll.u32 %v667, 16
        %v2357 = vrot.slane %v2355, 5
        %v2358 = vsel %vm876, %v2353, %v2357
        %v2360 = vshrl.u32 %v668, 16
        %v2362 = vrot.slane %v2360, 4
        %v2363 = vshll.u32 %v668, 16
        %v2365 = vrot.slane %v2363, 5
        %v2366 = vor.u32 %v2362, %v2365
        %v2367 = vrot.slane %v2366, 4
        %v2369 = vshll.u32 %v669, 16
        %v2371 = vrot.slane %v2369, 5
        %v2372 = vsel %vm876, %v2367, %v2371
        %v2373 = vshrl.u32 %v669, 16
        %v2375 = vrot.slane %v2373, 4
        %v2376 = vor.u32 %v2375, %v2371
        %v2377 = vrot.slane %v2376, 4
        %v2379 = vshll.u32 %v670, 16
        %v2381 = vrot.slane %v2379, 5
        %v2382 = vsel %vm876, %v2377, %v2381
        %v2384 = vshrl.u32 %v671, 16
        %v2386 = vrot.slane %v2384, 4
        %v2387 = vshll.u32 %v671, 16
        %v2389 = vrot.slane %v2387, 5
        %v2390 = vor.u32 %v2386, %v2389
        %v2391 = vrot.slane %v2390, 4
        %v2393 = vshll.u32 %v672, 16
        %v2395 = vrot.slane %v2393, 5
        %v2396 = vsel %vm876, %v2391, %v2395
        %v2397 = vshrl.u32 %v672, 16
        %v2399 = vrot.slane %v2397, 4
        %v2400 = vor.u32 %v2399, %v2395
        %v2401 = vrot.slane %v2400, 4
        %v2403 = vshll.u32 %v673, 16
        %v2405 = vrot.slane %v2403, 5
        %v2406 = vsel %vm876, %v2401, %v2405
        %v2408 = vshrl.u32 %v674, 16
        %v2410 = vrot.slane %v2408, 4
        %v2411 = vshll.u32 %v674, 16
        %v2413 = vrot.slane %v2411, 5
        %v2414 = vor.u32 %v2410, %v2413
        %v2415 = vrot.slane %v2414, 4
        %v2417 = vshll.u32 %v675, 16
        %v2419 = vrot.slane %v2417, 5
        %v2420 = vsel %vm876, %v2415, %v2419
        %v2421 = vshrl.u32 %v675, 16
        %v2423 = vrot.slane %v2421, 4
        %v2424 = vor.u32 %v2423, %v2419
        %v2425 = vrot.slane %v2424, 4
        %v2427 = vshll.u32 %v676, 16
        %v2429 = vrot.slane %v2427, 5
        %v2430 = vsel %vm876, %v2425, %v2429
        %v2432 = vshrl.u32 %v677, 16
        %v2434 = vrot.slane %v2432, 4
        %v2435 = vshll.u32 %v677, 16
        %v2437 = vrot.slane %v2435, 5
        %v2438 = vor.u32 %v2434, %v2437
        %v2439 = vrot.slane %v2438, 4
        %v2441 = vshll.u32 %v678, 16
        %v2443 = vrot.slane %v2441, 5
        %v2444 = vsel %vm876, %v2439, %v2443
        %v2445 = vshrl.u32 %v678, 16
        %v2447 = vrot.slane %v2445, 4
        %v2448 = vor.u32 %v2447, %v2443
        %v2449 = vrot.slane %v2448, 4
        %v2451 = vshll.u32 %v679, 16
        %v2453 = vrot.slane %v2451, 5
        %v2454 = vsel %vm876, %v2449, %v2453
        %v2456 = vshrl.u32 %v680, 16
        %v2458 = vrot.slane %v2456, 4
        %v2459 = vshll.u32 %v680, 16
        %v2461 = vrot.slane %v2459, 5
        %v2462 = vor.u32 %v2458, %v2461
        %v2463 = vrot.slane %v2462, 4
        %v2465 = vshll.u32 %v681, 16
        %v2467 = vrot.slane %v2465, 5
        %v2468 = vsel %vm876, %v2463, %v2467
        %v2469 = vshrl.u32 %v681, 16
        %v2471 = vrot.slane %v2469, 4
        %v2472 = vor.u32 %v2471, %v2467
        %v2473 = vrot.slane %v2472, 4
        %v2475 = vshll.u32 %v682, 16
        %v2477 = vrot.slane %v2475, 5
        %v2478 = vsel %vm876, %v2473, %v2477
        %v2480 = vshrl.u32 %v683, 16
        %v2482 = vrot.slane %v2480, 4
        %v2483 = vshll.u32 %v683, 16
        %v2485 = vrot.slane %v2483, 5
        %v2486 = vor.u32 %v2482, %v2485
        %v2487 = vrot.slane %v2486, 4
        %v2489 = vshll.u32 %v684, 16
        %v2491 = vrot.slane %v2489, 5
        %v2492 = vsel %vm876, %v2487, %v2491
        %v2493 = vshrl.u32 %v684, 16
        %v2495 = vrot.slane %v2493, 4
        %v2496 = vor.u32 %v2495, %v2491
        %v2497 = vrot.slane %v2496, 4
        %v2499 = vshll.u32 %v685, 16
        %v2501 = vrot.slane %v2499, 5
        %v2502 = vsel %vm876, %v2497, %v2501
        %v2504 = vshrl.u32 %v686, 16
        %v2506 = vrot.slane %v2504, 4
        %v2507 = vshll.u32 %v686, 16
        %v2509 = vrot.slane %v2507, 5
        %v2510 = vor.u32 %v2506, %v2509
        %v2511 = vrot.slane %v2510, 4
        %v2513 = vshll.u32 %v687, 16
        %v2515 = vrot.slane %v2513, 5
        %v2516 = vsel %vm876, %v2511, %v2515
        %v2517 = vshrl.u32 %v687, 16
        %v2519 = vrot.slane %v2517, 4
        %v2520 = vor.u32 %v2519, %v2515
        %v2521 = vrot.slane %v2520, 4
        %v2523 = vshll.u32 %v688, 16
        %v2525 = vrot.slane %v2523, 5
        %v2526 = vsel %vm876, %v2521, %v2525
        %v2528 = vshrl.u32 %v689, 16
        %v2530 = vrot.slane %v2528, 4
        %v2531 = vshll.u32 %v689, 16
        %v2533 = vrot.slane %v2531, 5
        %v2534 = vor.u32 %v2530, %v2533
        %v2535 = vrot.slane %v2534, 4
        %v2537 = vshll.u32 %v690, 16
        %v2539 = vrot.slane %v2537, 5
        %v2540 = vsel %vm876, %v2535, %v2539
        %v2541 = vshrl.u32 %v690, 16
        %v2543 = vrot.slane %v2541, 4
        %v2544 = vor.u32 %v2543, %v2539
        %v2545 = vrot.slane %v2544, 4
        %v2547 = vshll.u32 %v691, 16
        %v2549 = vrot.slane %v2547, 5
        %v2550 = vsel %vm876, %v2545, %v2549
        %v2552 = vshrl.u32 %v692, 16
        %v2554 = vrot.slane %v2552, 4
        %v2555 = vshll.u32 %v692, 16
        %v2557 = vrot.slane %v2555, 5
        %v2558 = vor.u32 %v2554, %v2557
        %v2559 = vrot.slane %v2558, 4
        %v2561 = vshll.u32 %v693, 16
        %v2563 = vrot.slane %v2561, 5
        %v2564 = vsel %vm876, %v2559, %v2563
        %v2565 = vshrl.u32 %v693, 16
        %v2567 = vrot.slane %v2565, 4
        %v2568 = vor.u32 %v2567, %v2563
        %v2569 = vrot.slane %v2568, 4
        %v2571 = vshll.u32 %v694, 16
        %v2573 = vrot.slane %v2571, 5
        %v2574 = vsel %vm876, %v2569, %v2573
        %v2576 = vshrl.u32 %v695, 16
        %v2578 = vrot.slane %v2576, 4
        %v2579 = vshll.u32 %v695, 16
        %v2581 = vrot.slane %v2579, 5
        %v2582 = vor.u32 %v2578, %v2581
        %v2583 = vrot.slane %v2582, 4
        %v2585 = vshll.u32 %v696, 16
        %v2587 = vrot.slane %v2585, 5
        %v2588 = vsel %vm876, %v2583, %v2587
        %v2589 = vshrl.u32 %v696, 16
        %v2591 = vrot.slane %v2589, 4
        %v2592 = vor.u32 %v2591, %v2587
        %v2593 = vrot.slane %v2592, 4
        %v2595 = vshll.u32 %v697, 16
        %v2597 = vrot.slane %v2595, 5
        %v2598 = vsel %vm876, %v2593, %v2597
        %v2600 = vshrl.u32 %v698, 16
        %v2602 = vrot.slane %v2600, 4
        %v2603 = vshll.u32 %v698, 16
        %v2605 = vrot.slane %v2603, 5
        %v2606 = vor.u32 %v2602, %v2605
        %v2607 = vrot.slane %v2606, 4
        %v2609 = vshll.u32 %v699, 16
        %v2611 = vrot.slane %v2609, 5
        %v2612 = vsel %vm876, %v2607, %v2611
        %v2613 = vshrl.u32 %v699, 16
        %v2615 = vrot.slane %v2613, 4
        %v2616 = vor.u32 %v2615, %v2611
        %v2617 = vrot.slane %v2616, 4
        %v2619 = vshll.u32 %v700, 16
        %v2621 = vrot.slane %v2619, 5
        %v2622 = vsel %vm876, %v2617, %v2621
        %v2623 = vunpack.c.l.b16 %v2252
        %v2624 = vunpack.c.l.b16 %v2262
        %v2625 = vunpack.c.l.b16 %v2276
        %v2626 = vunpack.c.l.b16 %v2286
        %v2627 = vunpack.c.l.b16 %v2300
        %v2628 = vunpack.c.l.b16 %v2310
        %v2629 = vunpack.c.l.b16 %v2324
        %v2630 = vunpack.c.l.b16 %v2334
        %v2631 = vunpack.c.l.b16 %v2348
        %v2632 = vunpack.c.l.b16 %v2358
        %v2633 = vunpack.c.l.b16 %v2372
        %v2634 = vunpack.c.l.b16 %v2382
        %v2635 = vunpack.c.l.b16 %v2396
        %v2636 = vunpack.c.l.b16 %v2406
        %v2637 = vunpack.c.l.b16 %v2420
        %v2638 = vunpack.c.l.b16 %v2430
        %v2639 = vunpack.c.l.b16 %v2444
        %v2640 = vunpack.c.l.b16 %v2454
        %v2641 = vunpack.c.l.b16 %v2468
        %v2642 = vunpack.c.l.b16 %v2478
        %v2643 = vunpack.c.l.b16 %v2492
        %v2644 = vunpack.c.l.b16 %v2502
        %v2645 = vunpack.c.l.b16 %v2516
        %v2646 = vunpack.c.l.b16 %v2526
        %v2647 = vunpack.c.l.b16 %v2540
        %v2648 = vunpack.c.l.b16 %v2550
        %v2649 = vunpack.c.l.b16 %v2564
        %v2650 = vunpack.c.l.b16 %v2574
        %v2651 = vunpack.c.l.b16 %v2588
        %v2652 = vunpack.c.l.b16 %v2598
        %v2653 = vunpack.c.l.b16 %v2612
        %v2654 = vunpack.c.l.b16 %v2622
        %v2655 = vpack.c.b16 %v2624, %v2623
        %v2656 = vpack.c.b16 %v2626, %v2625
        %v2657 = vpack.c.b16 %v2628, %v2627
        %v2658 = vpack.c.b16 %v2630, %v2629
        %v2659 = vpack.c.b16 %v2632, %v2631
        %v2660 = vpack.c.b16 %v2634, %v2633
        %v2661 = vpack.c.b16 %v2636, %v2635
        %v2662 = vpack.c.b16 %v2638, %v2637
        %v2663 = vpack.c.b16 %v2640, %v2639
        %v2664 = vpack.c.b16 %v2642, %v2641
        %v2665 = vpack.c.b16 %v2644, %v2643
        %v2666 = vpack.c.b16 %v2646, %v2645
        %v2667 = vpack.c.b16 %v2648, %v2647
        %v2668 = vpack.c.b16 %v2650, %v2649
        %v2669 = vpack.c.b16 %v2652, %v2651
        %v2670 = vpack.c.b16 %v2654, %v2653
        %2671 = vrot.lane.b32.xlu0 %v2655, 40
        %v2672 = vpop.permute.xlu0 %2671
        %2673 = vrot.lane.b32.xlu0 %v2656, 40
        %v2674 = vpop.permute.xlu0 %2673
        %2675 = vrot.lane.b32.xlu0 %v2657, 40
        %v2676 = vpop.permute.xlu0 %2675
        %2677 = vrot.lane.b32.xlu0 %v2658, 40
        %v2678 = vpop.permute.xlu0 %2677
        %2679 = vrot.lane.b32.xlu0 %v2659, 40
        %v2680 = vpop.permute.xlu0 %2679
        %2681 = vrot.lane.b32.xlu0 %v2660, 40
        %v2682 = vpop.permute.xlu0 %2681
        %2683 = vrot.lane.b32.xlu0 %v2661, 40
        %v2684 = vpop.permute.xlu0 %2683
        %2685 = vrot.lane.b32.xlu0 %v2662, 40
        %v2686 = vpop.permute.xlu0 %2685
        %2687 = vrot.lane.b32.xlu0 %v2663, 40
        %v2688 = vpop.permute.xlu0 %2687
        %2689 = vrot.lane.b32.xlu0 %v2664, 40
        %v2690 = vpop.permute.xlu0 %2689
        %2691 = vrot.lane.b32.xlu0 %v2665, 40
        %v2692 = vpop.permute.xlu0 %2691
        %2693 = vrot.lane.b32.xlu0 %v2666, 40
        %v2694 = vpop.permute.xlu0 %2693
        %2695 = vrot.lane.b32.xlu0 %v2667, 40
        %v2696 = vpop.permute.xlu0 %2695
        %2697 = vrot.lane.b32.xlu0 %v2668, 40
        %v2698 = vpop.permute.xlu0 %2697
        %2699 = vrot.lane.b32.xlu0 %v2669, 40
        %v2700 = vpop.permute.xlu0 %2699
        %2701 = vrot.lane.b32.xlu0 %v2670, 40
        %v2702 = vpop.permute.xlu0 %2701
        %vm2719 = vcmask 359744
        %2720 = vst.msk [vmem:[#allocation3] sm:$0xff] %vm2719, %v2672
        %2721 = vst.msk [vmem:[#allocation3 + $0x8] sm:$0xff] %vm2719, %v2674
        %2722 = vst.msk [vmem:[#allocation3 + $0x10] sm:$0xff] %vm2719, %v2676
        %2723 = vst.msk [vmem:[#allocation3 + $0x18] sm:$0xff] %vm2719, %v2678
        %2724 = vst.msk [vmem:[#allocation3 + $0x20] sm:$0xff] %vm2719, %v2680
        %2725 = vst.msk [vmem:[#allocation3 + $0x28] sm:$0xff] %vm2719, %v2682
        %2726 = vst.msk [vmem:[#allocation3 + $0x30] sm:$0xff] %vm2719, %v2684
        %2727 = vst.msk [vmem:[#allocation3 + $0x38] sm:$0xff] %vm2719, %v2686
        %2728 = vst.msk [vmem:[#allocation3 + $0x40] sm:$0xff] %vm2719, %v2688
        %2729 = vst.msk [vmem:[#allocation3 + $0x48] sm:$0xff] %vm2719, %v2690
        %2730 = vst.msk [vmem:[#allocation3 + $0x50] sm:$0xff] %vm2719, %v2692
        %2731 = vst.msk [vmem:[#allocation3 + $0x58] sm:$0xff] %vm2719, %v2694
        %2732 = vst.msk [vmem:[#allocation3 + $0x60] sm:$0xff] %vm2719, %v2696
        %2733 = vst.msk [vmem:[#allocation3 + $0x68] sm:$0xff] %vm2719, %v2698
        %2734 = vst.msk [vmem:[#allocation3 + $0x70] sm:$0xff] %vm2719, %v2700
        %2735 = vst.msk [vmem:[#allocation3 + $0x78] sm:$0xff] %vm2719, %v2702
        %v2752 = vrot.slane %v653, 5
        %v2753 = vrot.slane %v2752, 4
        %v2754 = vrot.slane %v654, 5
        %v2755 = vsel %vm1392, %v2753, %v2754
        %v2756 = vrot.slane %v2754, 4
        %v2757 = vrot.slane %v655, 5
        %v2758 = vsel %vm1392, %v2756, %v2757
        %v2759 = vrot.slane %v656, 5
        %v2760 = vrot.slane %v2759, 4
        %v2761 = vrot.slane %v657, 5
        %v2762 = vsel %vm1392, %v2760, %v2761
        %v2763 = vrot.slane %v2761, 4
        %v2764 = vrot.slane %v658, 5
        %v2765 = vsel %vm1392, %v2763, %v2764
        %v2766 = vrot.slane %v659, 5
        %v2767 = vrot.slane %v2766, 4
        %v2768 = vrot.slane %v660, 5
        %v2769 = vsel %vm1392, %v2767, %v2768
        %v2770 = vrot.slane %v2768, 4
        %v2771 = vrot.slane %v661, 5
        %v2772 = vsel %vm1392, %v2770, %v2771
        %v2773 = vrot.slane %v662, 5
        %v2774 = vrot.slane %v2773, 4
        %v2775 = vrot.slane %v663, 5
        %v2776 = vsel %vm1392, %v2774, %v2775
        %v2777 = vrot.slane %v2775, 4
        %v2778 = vrot.slane %v664, 5
        %v2779 = vsel %vm1392, %v2777, %v2778
        %v2780 = vrot.slane %v665, 5
        %v2781 = vrot.slane %v2780, 4
        %v2782 = vrot.slane %v666, 5
        %v2783 = vsel %vm1392, %v2781, %v2782
        %v2784 = vrot.slane %v2782, 4
        %v2785 = vrot.slane %v667, 5
        %v2786 = vsel %vm1392, %v2784, %v2785
        %v2787 = vrot.slane %v668, 5
        %v2788 = vrot.slane %v2787, 4
        %v2789 = vrot.slane %v669, 5
        %v2790 = vsel %vm1392, %v2788, %v2789
        %v2791 = vrot.slane %v2789, 4
        %v2792 = vrot.slane %v670, 5
        %v2793 = vsel %vm1392, %v2791, %v2792
        %v2794 = vrot.slane %v671, 5
        %v2795 = vrot.slane %v2794, 4
        %v2796 = vrot.slane %v672, 5
        %v2797 = vsel %vm1392, %v2795, %v2796
        %v2798 = vrot.slane %v2796, 4
        %v2799 = vrot.slane %v673, 5
        %v2800 = vsel %vm1392, %v2798, %v2799
        %v2801 = vrot.slane %v674, 5
        %v2802 = vrot.slane %v2801, 4
        %v2803 = vrot.slane %v675, 5
        %v2804 = vsel %vm1392, %v2802, %v2803
        %v2805 = vrot.slane %v2803, 4
        %v2806 = vrot.slane %v676, 5
        %v2807 = vsel %vm1392, %v2805, %v2806
        %v2808 = vrot.slane %v677, 5
        %v2809 = vrot.slane %v2808, 4
        %v2810 = vrot.slane %v678, 5
        %v2811 = vsel %vm1392, %v2809, %v2810
        %v2812 = vrot.slane %v2810, 4
        %v2813 = vrot.slane %v679, 5
        %v2814 = vsel %vm1392, %v2812, %v2813
        %v2815 = vrot.slane %v680, 5
        %v2816 = vrot.slane %v2815, 4
        %v2817 = vrot.slane %v681, 5
        %v2818 = vsel %vm1392, %v2816, %v2817
        %v2819 = vrot.slane %v2817, 4
        %v2820 = vrot.slane %v682, 5
        %v2821 = vsel %vm1392, %v2819, %v2820
        %v2822 = vrot.slane %v683, 5
        %v2823 = vrot.slane %v2822, 4
        %v2824 = vrot.slane %v684, 5
        %v2825 = vsel %vm1392, %v2823, %v2824
        %v2826 = vrot.slane %v2824, 4
        %v2827 = vrot.slane %v685, 5
        %v2828 = vsel %vm1392, %v2826, %v2827
        %v2829 = vrot.slane %v686, 5
        %v2830 = vrot.slane %v2829, 4
        %v2831 = vrot.slane %v687, 5
        %v2832 = vsel %vm1392, %v2830, %v2831
        %v2833 = vrot.slane %v2831, 4
        %v2834 = vrot.slane %v688, 5
        %v2835 = vsel %vm1392, %v2833, %v2834
        %v2836 = vrot.slane %v689, 5
        %v2837 = vrot.slane %v2836, 4
        %v2838 = vrot.slane %v690, 5
        %v2839 = vsel %vm1392, %v2837, %v2838
        %v2840 = vrot.slane %v2838, 4
        %v2841 = vrot.slane %v691, 5
        %v2842 = vsel %vm1392, %v2840, %v2841
        %v2843 = vrot.slane %v692, 5
        %v2844 = vrot.slane %v2843, 4
        %v2845 = vrot.slane %v693, 5
        %v2846 = vsel %vm1392, %v2844, %v2845
        %v2847 = vrot.slane %v2845, 4
        %v2848 = vrot.slane %v694, 5
        %v2849 = vsel %vm1392, %v2847, %v2848
        %v2850 = vrot.slane %v695, 5
        %v2851 = vrot.slane %v2850, 4
        %v2852 = vrot.slane %v696, 5
        %v2853 = vsel %vm1392, %v2851, %v2852
        %v2854 = vrot.slane %v2852, 4
        %v2855 = vrot.slane %v697, 5
        %v2856 = vsel %vm1392, %v2854, %v2855
        %v2857 = vrot.slane %v698, 5
        %v2858 = vrot.slane %v2857, 4
        %v2859 = vrot.slane %v699, 5
        %v2860 = vsel %vm1392, %v2858, %v2859
        %v2861 = vrot.slane %v2859, 4
        %v2862 = vrot.slane %v700, 5
        %v2863 = vsel %vm1392, %v2861, %v2862
        %v2864 = vunpack.c.l.b16 %v2755
        %v2865 = vunpack.c.l.b16 %v2758
        %v2866 = vunpack.c.l.b16 %v2762
        %v2867 = vunpack.c.l.b16 %v2765
        %v2868 = vunpack.c.l.b16 %v2769
        %v2869 = vunpack.c.l.b16 %v2772
        %v2870 = vunpack.c.l.b16 %v2776
        %v2871 = vunpack.c.l.b16 %v2779
        %v2872 = vunpack.c.l.b16 %v2783
        %v2873 = vunpack.c.l.b16 %v2786
        %v2874 = vunpack.c.l.b16 %v2790
        %v2875 = vunpack.c.l.b16 %v2793
        %v2876 = vunpack.c.l.b16 %v2797
        %v2877 = vunpack.c.l.b16 %v2800
        %v2878 = vunpack.c.l.b16 %v2804
        %v2879 = vunpack.c.l.b16 %v2807
        %v2880 = vunpack.c.l.b16 %v2811
        %v2881 = vunpack.c.l.b16 %v2814
        %v2882 = vunpack.c.l.b16 %v2818
        %v2883 = vunpack.c.l.b16 %v2821
        %v2884 = vunpack.c.l.b16 %v2825
        %v2885 = vunpack.c.l.b16 %v2828
        %v2886 = vunpack.c.l.b16 %v2832
        %v2887 = vunpack.c.l.b16 %v2835
        %v2888 = vunpack.c.l.b16 %v2839
        %v2889 = vunpack.c.l.b16 %v2842
        %v2890 = vunpack.c.l.b16 %v2846
        %v2891 = vunpack.c.l.b16 %v2849
        %v2892 = vunpack.c.l.b16 %v2853
        %v2893 = vunpack.c.l.b16 %v2856
        %v2894 = vunpack.c.l.b16 %v2860
        %v2895 = vunpack.c.l.b16 %v2863
        %v2896 = vpack.c.b16 %v2865, %v2864
        %v2897 = vpack.c.b16 %v2867, %v2866
        %v2898 = vpack.c.b16 %v2869, %v2868
        %v2899 = vpack.c.b16 %v2871, %v2870
        %v2900 = vpack.c.b16 %v2873, %v2872
        %v2901 = vpack.c.b16 %v2875, %v2874
        %v2902 = vpack.c.b16 %v2877, %v2876
        %v2903 = vpack.c.b16 %v2879, %v2878
        %v2904 = vpack.c.b16 %v2881, %v2880
        %v2905 = vpack.c.b16 %v2883, %v2882
        %v2906 = vpack.c.b16 %v2885, %v2884
        %v2907 = vpack.c.b16 %v2887, %v2886
        %v2908 = vpack.c.b16 %v2889, %v2888
        %v2909 = vpack.c.b16 %v2891, %v2890
        %v2910 = vpack.c.b16 %v2893, %v2892
        %v2911 = vpack.c.b16 %v2895, %v2894
        %2912 = vrot.lane.b32.xlu0 %v2896, 44
        %v2913 = vpop.permute.xlu0 %2912
        %2914 = vrot.lane.b32.xlu0 %v2897, 44
        %v2915 = vpop.permute.xlu0 %2914
        %2916 = vrot.lane.b32.xlu0 %v2898, 44
        %v2917 = vpop.permute.xlu0 %2916
        %2918 = vrot.lane.b32.xlu0 %v2899, 44
        %v2919 = vpop.permute.xlu0 %2918
        %2920 = vrot.lane.b32.xlu0 %v2900, 44
        %v2921 = vpop.permute.xlu0 %2920
        %2922 = vrot.lane.b32.xlu0 %v2901, 44
        %v2923 = vpop.permute.xlu0 %2922
        %2924 = vrot.lane.b32.xlu0 %v2902, 44
        %v2925 = vpop.permute.xlu0 %2924
        %2926 = vrot.lane.b32.xlu0 %v2903, 44
        %v2927 = vpop.permute.xlu0 %2926
        %2928 = vrot.lane.b32.xlu0 %v2904, 44
        %v2929 = vpop.permute.xlu0 %2928
        %2930 = vrot.lane.b32.xlu0 %v2905, 44
        %v2931 = vpop.permute.xlu0 %2930
        %2932 = vrot.lane.b32.xlu0 %v2906, 44
        %v2933 = vpop.permute.xlu0 %2932
        %2934 = vrot.lane.b32.xlu0 %v2907, 44
        %v2935 = vpop.permute.xlu0 %2934
        %2936 = vrot.lane.b32.xlu0 %v2908, 44
        %v2937 = vpop.permute.xlu0 %2936
        %2938 = vrot.lane.b32.xlu0 %v2909, 44
        %v2939 = vpop.permute.xlu0 %2938
        %2940 = vrot.lane.b32.xlu0 %v2910, 44
        %v2941 = vpop.permute.xlu0 %2940
        %2942 = vrot.lane.b32.xlu0 %v2911, 44
        %v2943 = vpop.permute.xlu0 %2942
        %vm2960 = vcmask 392544
        %2961 = vst.msk [vmem:[#allocation3] sm:$0xff] %vm2960, %v2913
        %2962 = vst.msk [vmem:[#allocation3 + $0x8] sm:$0xff] %vm2960, %v2915
        %2963 = vst.msk [vmem:[#allocation3 + $0x10] sm:$0xff] %vm2960, %v2917
        %2964 = vst.msk [vmem:[#allocation3 + $0x18] sm:$0xff] %vm2960, %v2919
        %2965 = vst.msk [vmem:[#allocation3 + $0x20] sm:$0xff] %vm2960, %v2921
        %2966 = vst.msk [vmem:[#allocation3 + $0x28] sm:$0xff] %vm2960, %v2923
        %2967 = vst.msk [vmem:[#allocation3 + $0x30] sm:$0xff] %vm2960, %v2925
        %2968 = vst.msk [vmem:[#allocation3 + $0x38] sm:$0xff] %vm2960, %v2927
        %2969 = vst.msk [vmem:[#allocation3 + $0x40] sm:$0xff] %vm2960, %v2929
        %2970 = vst.msk [vmem:[#allocation3 + $0x48] sm:$0xff] %vm2960, %v2931
        %2971 = vst.msk [vmem:[#allocation3 + $0x50] sm:$0xff] %vm2960, %v2933
        %2972 = vst.msk [vmem:[#allocation3 + $0x58] sm:$0xff] %vm2960, %v2935
        %2973 = vst.msk [vmem:[#allocation3 + $0x60] sm:$0xff] %vm2960, %v2937
        %2974 = vst.msk [vmem:[#allocation3 + $0x68] sm:$0xff] %vm2960, %v2939
        %2975 = vst.msk [vmem:[#allocation3 + $0x70] sm:$0xff] %vm2960, %v2941
        %2976 = vst.msk [vmem:[#allocation3 + $0x78] sm:$0xff] %vm2960, %v2943
        %v2979 = vunpack.c.l.b16 %v701
        %v2980 = vunpack.c.l.b16 %v702
        %v2981 = vpack.c.b16 %v2980, %v2979
        %2982 = vrot.lane.b32.xlu0 %v2159, 48
        %v2983 = vpop.permute.xlu0 %2982
        %2984 = vrot.lane.b32.xlu0 %v2160, 48
        %v2985 = vpop.permute.xlu0 %2984
        %2986 = vrot.lane.b32.xlu0 %v2161, 48
        %v2987 = vpop.permute.xlu0 %2986
        %2988 = vrot.lane.b32.xlu0 %v2162, 48
        %v2989 = vpop.permute.xlu0 %2988
        %2990 = vrot.lane.b32.xlu0 %v2163, 48
        %v2991 = vpop.permute.xlu0 %2990
        %2992 = vrot.lane.b32.xlu0 %v2164, 48
        %v2993 = vpop.permute.xlu0 %2992
        %2994 = vrot.lane.b32.xlu0 %v2165, 48
        %v2995 = vpop.permute.xlu0 %2994
        %2996 = vrot.lane.b32.xlu0 %v2166, 48
        %v2997 = vpop.permute.xlu0 %2996
        %2998 = vrot.lane.b32.xlu0 %v2167, 48
        %v2999 = vpop.permute.xlu0 %2998
        %3000 = vrot.lane.b32.xlu0 %v2168, 48
        %v3001 = vpop.permute.xlu0 %3000
        %3002 = vrot.lane.b32.xlu0 %v2169, 48
        %v3003 = vpop.permute.xlu0 %3002
        %3004 = vrot.lane.b32.xlu0 %v2170, 48
        %v3005 = vpop.permute.xlu0 %3004
        %3006 = vrot.lane.b32.xlu0 %v2171, 48
        %v3007 = vpop.permute.xlu0 %3006
        %3008 = vrot.lane.b32.xlu0 %v2172, 48
        %v3009 = vpop.permute.xlu0 %3008
        %3010 = vrot.lane.b32.xlu0 %v2173, 48
        %v3011 = vpop.permute.xlu0 %3010
        %3012 = vrot.lane.b32.xlu0 %v2981, 48
        %v3013 = vpop.permute.xlu0 %3012
        %vm3030 = vcmask 425344
        %3031 = vst.msk [vmem:[#allocation3] sm:$0xff] %vm3030, %v2983
        %3032 = vst.msk [vmem:[#allocation3 + $0x8] sm:$0xff] %vm3030, %v2985
        %3033 = vst.msk [vmem:[#allocation3 + $0x10] sm:$0xff] %vm3030, %v2987
        %3034 = vst.msk [vmem:[#allocation3 + $0x18] sm:$0xff] %vm3030, %v2989
        %3035 = vst.msk [vmem:[#allocation3 + $0x20] sm:$0xff] %vm3030, %v2991
        %3036 = vst.msk [vmem:[#allocation3 + $0x28] sm:$0xff] %vm3030, %v2993
        %3037 = vst.msk [vmem:[#allocation3 + $0x30] sm:$0xff] %vm3030, %v2995
        %3038 = vst.msk [vmem:[#allocation3 + $0x38] sm:$0xff] %vm3030, %v2997
        %3039 = vst.msk [vmem:[#allocation3 + $0x40] sm:$0xff] %vm3030, %v2999
        %3040 = vst.msk [vmem:[#allocation3 + $0x48] sm:$0xff] %vm3030, %v3001
        %3041 = vst.msk [vmem:[#allocation3 + $0x50] sm:$0xff] %vm3030, %v3003
        %3042 = vst.msk [vmem:[#allocation3 + $0x58] sm:$0xff] %vm3030, %v3005
        %3043 = vst.msk [vmem:[#allocation3 + $0x60] sm:$0xff] %vm3030, %v3007
        %3044 = vst.msk [vmem:[#allocation3 + $0x68] sm:$0xff] %vm3030, %v3009
        %3045 = vst.msk [vmem:[#allocation3 + $0x70] sm:$0xff] %vm3030, %v3011
        %3046 = vst.msk [vmem:[#allocation3 + $0x78] sm:$0xff] %vm3030, %v3013
        %v3048 = vshrl.u32 %v701, 16
        %v3050 = vrot.slane %v3048, 4
        %v3051 = vshll.u32 %v701, 16
        %v3053 = vrot.slane %v3051, 5
        %v3054 = vor.u32 %v3050, %v3053
        %v3055 = vrot.slane %v3054, 4
        %v3057 = vshll.u32 %v702, 16
        %v3059 = vrot.slane %v3057, 5
        %v3060 = vsel %vm876, %v3055, %v3059
        %v3061 = vshrl.u32 %v702, 16
        %v3063 = vrot.slane %v3061, 4
        %v3064 = vor.u32 %v3063, %v3059
        %v3065 = vrot.slane %v3064, 4
        %v3067 = vshll.u32 %v703, 16
        %v3069 = vrot.slane %v3067, 5
        %v3070 = vsel %vm876, %v3065, %v3069
        %v3071 = vunpack.c.l.b16 %v3060
        %v3072 = vunpack.c.l.b16 %v3070
        %v3073 = vpack.c.b16 %v3072, %v3071
        %3074 = vrot.lane.b32.xlu0 %v2656, 52
        %v3075 = vpop.permute.xlu0 %3074
        %3076 = vrot.lane.b32.xlu0 %v2657, 52
        %v3077 = vpop.permute.xlu0 %3076
        %3078 = vrot.lane.b32.xlu0 %v2658, 52
        %v3079 = vpop.permute.xlu0 %3078
        %3080 = vrot.lane.b32.xlu0 %v2659, 52
        %v3081 = vpop.permute.xlu0 %3080
        %3082 = vrot.lane.b32.xlu0 %v2660, 52
        %v3083 = vpop.permute.xlu0 %3082
        %3084 = vrot.lane.b32.xlu0 %v2661, 52
        %v3085 = vpop.permute.xlu0 %3084
        %3086 = vrot.lane.b32.xlu0 %v2662, 52
        %v3087 = vpop.permute.xlu0 %3086
        %3088 = vrot.lane.b32.xlu0 %v2663, 52
        %v3089 = vpop.permute.xlu0 %3088
        %3090 = vrot.lane.b32.xlu0 %v2664, 52
        %v3091 = vpop.permute.xlu0 %3090
        %3092 = vrot.lane.b32.xlu0 %v2665, 52
        %v3093 = vpop.permute.xlu0 %3092
        %3094 = vrot.lane.b32.xlu0 %v2666, 52
        %v3095 = vpop.permute.xlu0 %3094
        %3096 = vrot.lane.b32.xlu0 %v2667, 52
        %v3097 = vpop.permute.xlu0 %3096
        %3098 = vrot.lane.b32.xlu0 %v2668, 52
        %v3099 = vpop.permute.xlu0 %3098
        %3100 = vrot.lane.b32.xlu0 %v2669, 52
        %v3101 = vpop.permute.xlu0 %3100
        %3102 = vrot.lane.b32.xlu0 %v2670, 52
        %v3103 = vpop.permute.xlu0 %3102
        %3104 = vrot.lane.b32.xlu0 %v3073, 52
        %v3105 = vpop.permute.xlu0 %3104
        %vm3122 = vcmask 458144
        %3123 = vst.msk [vmem:[#allocation3] sm:$0xff] %vm3122, %v3075
        %3124 = vst.msk [vmem:[#allocation3 + $0x8] sm:$0xff] %vm3122, %v3077
        %3125 = vst.msk [vmem:[#allocation3 + $0x10] sm:$0xff] %vm3122, %v3079
        %3126 = vst.msk [vmem:[#allocation3 + $0x18] sm:$0xff] %vm3122, %v3081
        %3127 = vst.msk [vmem:[#allocation3 + $0x20] sm:$0xff] %vm3122, %v3083
        %3128 = vst.msk [vmem:[#allocation3 + $0x28] sm:$0xff] %vm3122, %v3085
        %3129 = vst.msk [vmem:[#allocation3 + $0x30] sm:$0xff] %vm3122, %v3087
        %3130 = vst.msk [vmem:[#allocation3 + $0x38] sm:$0xff] %vm3122, %v3089
        %3131 = vst.msk [vmem:[#allocation3 + $0x40] sm:$0xff] %vm3122, %v3091
        %3132 = vst.msk [vmem:[#allocation3 + $0x48] sm:$0xff] %vm3122, %v3093
        %3133 = vst.msk [vmem:[#allocation3 + $0x50] sm:$0xff] %vm3122, %v3095
        %3134 = vst.msk [vmem:[#allocation3 + $0x58] sm:$0xff] %vm3122, %v3097
        %3135 = vst.msk [vmem:[#allocation3 + $0x60] sm:$0xff] %vm3122, %v3099
        %3136 = vst.msk [vmem:[#allocation3 + $0x68] sm:$0xff] %vm3122, %v3101
        %3137 = vst.msk [vmem:[#allocation3 + $0x70] sm:$0xff] %vm3122, %v3103
        %3138 = vst.msk [vmem:[#allocation3 + $0x78] sm:$0xff] %vm3122, %v3105
        %v3140 = vrot.slane %v701, 5
        %v3141 = vrot.slane %v3140, 4
        %v3142 = vrot.slane %v702, 5
        %v3143 = vsel %vm1392, %v3141, %v3142
        %v3144 = vrot.slane %v3142, 4
        %v3145 = vrot.slane %v703, 5
        %v3146 = vsel %vm1392, %v3144, %v3145
        %v3147 = vunpack.c.l.b16 %v3143
        %v3148 = vunpack.c.l.b16 %v3146
        %v3149 = vpack.c.b16 %v3148, %v3147
        %3150 = vrot.lane.b32.xlu0 %v2897, 56
        %v3151 = vpop.permute.xlu0 %3150
        %3152 = vrot.lane.b32.xlu0 %v2898, 56
        %v3153 = vpop.permute.xlu0 %3152
        %3154 = vrot.lane.b32.xlu0 %v2899, 56
        %v3155 = vpop.permute.xlu0 %3154
        %3156 = vrot.lane.b32.xlu0 %v2900, 56
        %v3157 = vpop.permute.xlu0 %3156
        %3158 = vrot.lane.b32.xlu0 %v2901, 56
        %v3159 = vpop.permute.xlu0 %3158
        %3160 = vrot.lane.b32.xlu0 %v2902, 56
        %v3161 = vpop.permute.xlu0 %3160
        %3162 = vrot.lane.b32.xlu0 %v2903, 56
        %v3163 = vpop.permute.xlu0 %3162
        %3164 = vrot.lane.b32.xlu0 %v2904, 56
        %v3165 = vpop.permute.xlu0 %3164
        %3166 = vrot.lane.b32.xlu0 %v2905, 56
        %v3167 = vpop.permute.xlu0 %3166
        %3168 = vrot.lane.b32.xlu0 %v2906, 56
        %v3169 = vpop.permute.xlu0 %3168
        %3170 = vrot.lane.b32.xlu0 %v2907, 56
        %v3171 = vpop.permute.xlu0 %3170
        %3172 = vrot.lane.b32.xlu0 %v2908, 56
        %v3173 = vpop.permute.xlu0 %3172
        %3174 = vrot.lane.b32.xlu0 %v2909, 56
        %v3175 = vpop.permute.xlu0 %3174
        %3176 = vrot.lane.b32.xlu0 %v2910, 56
        %v3177 = vpop.permute.xlu0 %3176
        %3178 = vrot.lane.b32.xlu0 %v2911, 56
        %v3179 = vpop.permute.xlu0 %3178
        %3180 = vrot.lane.b32.xlu0 %v3149, 56
        %v3181 = vpop.permute.xlu0 %3180
        %vm3198 = vcmask 490944
        %3199 = vst.msk [vmem:[#allocation3] sm:$0xff] %vm3198, %v3151
        %3200 = vst.msk [vmem:[#allocation3 + $0x8] sm:$0xff] %vm3198, %v3153
        %3201 = vst.msk [vmem:[#allocation3 + $0x10] sm:$0xff] %vm3198, %v3155
        %3202 = vst.msk [vmem:[#allocation3 + $0x18] sm:$0xff] %vm3198, %v3157
        %3203 = vst.msk [vmem:[#allocation3 + $0x20] sm:$0xff] %vm3198, %v3159
        %3204 = vst.msk [vmem:[#allocation3 + $0x28] sm:$0xff] %vm3198, %v3161
        %3205 = vst.msk [vmem:[#allocation3 + $0x30] sm:$0xff] %vm3198, %v3163
        %3206 = vst.msk [vmem:[#allocation3 + $0x38] sm:$0xff] %vm3198, %v3165
        %3207 = vst.msk [vmem:[#allocation3 + $0x40] sm:$0xff] %vm3198, %v3167
        %3208 = vst.msk [vmem:[#allocation3 + $0x48] sm:$0xff] %vm3198, %v3169
        %3209 = vst.msk [vmem:[#allocation3 + $0x50] sm:$0xff] %vm3198, %v3171
        %3210 = vst.msk [vmem:[#allocation3 + $0x58] sm:$0xff] %vm3198, %v3173
        %3211 = vst.msk [vmem:[#allocation3 + $0x60] sm:$0xff] %vm3198, %v3175
        %3212 = vst.msk [vmem:[#allocation3 + $0x68] sm:$0xff] %vm3198, %v3177
        %3213 = vst.msk [vmem:[#allocation3 + $0x70] sm:$0xff] %vm3198, %v3179
        %3214 = vst.msk [vmem:[#allocation3 + $0x78] sm:$0xff] %vm3198, %v3181
        %v3217 = vunpack.c.l.b16 %v704
        %v3218 = vunpack.c.l.b16 %v705
        %v3219 = vpack.c.b16 %v3218, %v3217
        %3220 = vrot.lane.b32.xlu0 %v2160, 60
        %v3221 = vpop.permute.xlu0 %3220
        %3222 = vrot.lane.b32.xlu0 %v2161, 60
        %v3223 = vpop.permute.xlu0 %3222
        %3224 = vrot.lane.b32.xlu0 %v2162, 60
        %v3225 = vpop.permute.xlu0 %3224
        %3226 = vrot.lane.b32.xlu0 %v2163, 60
        %v3227 = vpop.permute.xlu0 %3226
        %3228 = vrot.lane.b32.xlu0 %v2164, 60
        %v3229 = vpop.permute.xlu0 %3228
        %3230 = vrot.lane.b32.xlu0 %v2165, 60
        %v3231 = vpop.permute.xlu0 %3230
        %3232 = vrot.lane.b32.xlu0 %v2166, 60
        %v3233 = vpop.permute.xlu0 %3232
        %3234 = vrot.lane.b32.xlu0 %v2167, 60
        %v3235 = vpop.permute.xlu0 %3234
        %3236 = vrot.lane.b32.xlu0 %v2168, 60
        %v3237 = vpop.permute.xlu0 %3236
        %3238 = vrot.lane.b32.xlu0 %v2169, 60
        %v3239 = vpop.permute.xlu0 %3238
        %3240 = vrot.lane.b32.xlu0 %v2170, 60
        %v3241 = vpop.permute.xlu0 %3240
        %3242 = vrot.lane.b32.xlu0 %v2171, 60
        %v3243 = vpop.permute.xlu0 %3242
        %3244 = vrot.lane.b32.xlu0 %v2172, 60
        %v3245 = vpop.permute.xlu0 %3244
        %3246 = vrot.lane.b32.xlu0 %v2173, 60
        %v3247 = vpop.permute.xlu0 %3246
        %3248 = vrot.lane.b32.xlu0 %v2981, 60
        %v3249 = vpop.permute.xlu0 %3248
        %3250 = vrot.lane.b32.xlu0 %v3219, 60
        %v3251 = vpop.permute.xlu0 %3250
        %vm3268 = vcmask 523744
        %3269 = vst.msk [vmem:[#allocation3] sm:$0xff] %vm3268, %v3221
        %3270 = vst.msk [vmem:[#allocation3 + $0x8] sm:$0xff] %vm3268, %v3223
        %3271 = vst.msk [vmem:[#allocation3 + $0x10] sm:$0xff] %vm3268, %v3225
        %3272 = vst.msk [vmem:[#allocation3 + $0x18] sm:$0xff] %vm3268, %v3227
        %3273 = vst.msk [vmem:[#allocation3 + $0x20] sm:$0xff] %vm3268, %v3229
        %3274 = vst.msk [vmem:[#allocation3 + $0x28] sm:$0xff] %vm3268, %v3231
        %3275 = vst.msk [vmem:[#allocation3 + $0x30] sm:$0xff] %vm3268, %v3233
        %3276 = vst.msk [vmem:[#allocation3 + $0x38] sm:$0xff] %vm3268, %v3235
        %3277 = vst.msk [vmem:[#allocation3 + $0x40] sm:$0xff] %vm3268, %v3237
        %3278 = vst.msk [vmem:[#allocation3 + $0x48] sm:$0xff] %vm3268, %v3239
        %3279 = vst.msk [vmem:[#allocation3 + $0x50] sm:$0xff] %vm3268, %v3241
        %3280 = vst.msk [vmem:[#allocation3 + $0x58] sm:$0xff] %vm3268, %v3243
        %3281 = vst.msk [vmem:[#allocation3 + $0x60] sm:$0xff] %vm3268, %v3245
        %3282 = vst.msk [vmem:[#allocation3 + $0x68] sm:$0xff] %vm3268, %v3247
        %3283 = vst.msk [vmem:[#allocation3 + $0x70] sm:$0xff] %vm3268, %v3249
        %3284 = vst.msk [vmem:[#allocation3 + $0x78] sm:$0xff] %vm3268, %v3251
        %v3286 = vshrl.u32 %v704, 16
        %v3288 = vrot.slane %v3286, 4
        %v3289 = vshll.u32 %v704, 16
        %v3291 = vrot.slane %v3289, 5
        %v3292 = vor.u32 %v3288, %v3291
        %v3293 = vrot.slane %v3292, 4
        %v3295 = vshll.u32 %v705, 16
        %v3297 = vrot.slane %v3295, 5
        %v3298 = vsel %vm876, %v3293, %v3297
        %v3299 = vshrl.u32 %v705, 16
        %v3301 = vrot.slane %v3299, 4
        %v3302 = vor.u32 %v3301, %v3297
        %v3303 = vrot.slane %v3302, 4
        %v3305 = vshll.u32 %v706, 16
        %v3307 = vrot.slane %v3305, 5
        %v3308 = vsel %vm876, %v3303, %v3307
        %v3309 = vunpack.c.l.b16 %v3298
        %v3310 = vunpack.c.l.b16 %v3308
        %v3311 = vpack.c.b16 %v3310, %v3309
        %3312 = vrot.lane.b32.xlu0 %v2657, 64
        %v3313 = vpop.permute.xlu0 %3312
        %3314 = vrot.lane.b32.xlu0 %v2658, 64
        %v3315 = vpop.permute.xlu0 %3314
        %3316 = vrot.lane.b32.xlu0 %v2659, 64
        %v3317 = vpop.permute.xlu0 %3316
        %3318 = vrot.lane.b32.xlu0 %v2660, 64
        %v3319 = vpop.permute.xlu0 %3318
        %3320 = vrot.lane.b32.xlu0 %v2661, 64
        %v3321 = vpop.permute.xlu0 %3320
        %3322 = vrot.lane.b32.xlu0 %v2662, 64
        %v3323 = vpop.permute.xlu0 %3322
        %3324 = vrot.lane.b32.xlu0 %v2663, 64
        %v3325 = vpop.permute.xlu0 %3324
        %3326 = vrot.lane.b32.xlu0 %v2664, 64
        %v3327 = vpop.permute.xlu0 %3326
        %3328 = vrot.lane.b32.xlu0 %v2665, 64
        %v3329 = vpop.permute.xlu0 %3328
        %3330 = vrot.lane.b32.xlu0 %v2666, 64
        %v3331 = vpop.permute.xlu0 %3330
        %3332 = vrot.lane.b32.xlu0 %v2667, 64
        %v3333 = vpop.permute.xlu0 %3332
        %3334 = vrot.lane.b32.xlu0 %v2668, 64
        %v3335 = vpop.permute.xlu0 %3334
        %3336 = vrot.lane.b32.xlu0 %v2669, 64
        %v3337 = vpop.permute.xlu0 %3336
        %3338 = vrot.lane.b32.xlu0 %v2670, 64
        %v3339 = vpop.permute.xlu0 %3338
        %3340 = vrot.lane.b32.xlu0 %v3073, 64
        %v3341 = vpop.permute.xlu0 %3340
        %3342 = vrot.lane.b32.xlu0 %v3311, 64
        %v3343 = vpop.permute.xlu0 %3342
        %vm3360 = vcmask 556544
        %3361 = vst.msk [vmem:[#allocation3] sm:$0xff] %vm3360, %v3313
        %3362 = vst.msk [vmem:[#allocation3 + $0x8] sm:$0xff] %vm3360, %v3315
        %3363 = vst.msk [vmem:[#allocation3 + $0x10] sm:$0xff] %vm3360, %v3317
        %3364 = vst.msk [vmem:[#allocation3 + $0x18] sm:$0xff] %vm3360, %v3319
        %3365 = vst.msk [vmem:[#allocation3 + $0x20] sm:$0xff] %vm3360, %v3321
        %3366 = vst.msk [vmem:[#allocation3 + $0x28] sm:$0xff] %vm3360, %v3323
        %3367 = vst.msk [vmem:[#allocation3 + $0x30] sm:$0xff] %vm3360, %v3325
        %3368 = vst.msk [vmem:[#allocation3 + $0x38] sm:$0xff] %vm3360, %v3327
        %3369 = vst.msk [vmem:[#allocation3 + $0x40] sm:$0xff] %vm3360, %v3329
        %3370 = vst.msk [vmem:[#allocation3 + $0x48] sm:$0xff] %vm3360, %v3331
        %3371 = vst.msk [vmem:[#allocation3 + $0x50] sm:$0xff] %vm3360, %v3333
        %3372 = vst.msk [vmem:[#allocation3 + $0x58] sm:$0xff] %vm3360, %v3335
        %3373 = vst.msk [vmem:[#allocation3 + $0x60] sm:$0xff] %vm3360, %v3337
        %3374 = vst.msk [vmem:[#allocation3 + $0x68] sm:$0xff] %vm3360, %v3339
        %3375 = vst.msk [vmem:[#allocation3 + $0x70] sm:$0xff] %vm3360, %v3341
        %3376 = vst.msk [vmem:[#allocation3 + $0x78] sm:$0xff] %vm3360, %v3343
        %v3378 = vrot.slane %v704, 5
        %v3379 = vrot.slane %v3378, 4
        %v3380 = vrot.slane %v705, 5
        %v3381 = vsel %vm1392, %v3379, %v3380
        %v3382 = vrot.slane %v3380, 4
        %v3383 = vrot.slane %v706, 5
        %v3384 = vsel %vm1392, %v3382, %v3383
        %v3385 = vunpack.c.l.b16 %v3381
        %v3386 = vunpack.c.l.b16 %v3384
        %v3387 = vpack.c.b16 %v3386, %v3385
        %3388 = vrot.lane.b32.xlu0 %v2898, 68
        %v3389 = vpop.permute.xlu0 %3388
        %3390 = vrot.lane.b32.xlu0 %v2899, 68
        %v3391 = vpop.permute.xlu0 %3390
        %3392 = vrot.lane.b32.xlu0 %v2900, 68
        %v3393 = vpop.permute.xlu0 %3392
        %3394 = vrot.lane.b32.xlu0 %v2901, 68
        %v3395 = vpop.permute.xlu0 %3394
        %3396 = vrot.lane.b32.xlu0 %v2902, 68
        %v3397 = vpop.permute.xlu0 %3396
        %3398 = vrot.lane.b32.xlu0 %v2903, 68
        %v3399 = vpop.permute.xlu0 %3398
        %3400 = vrot.lane.b32.xlu0 %v2904, 68
        %v3401 = vpop.permute.xlu0 %3400
        %3402 = vrot.lane.b32.xlu0 %v2905, 68
        %v3403 = vpop.permute.xlu0 %3402
        %3404 = vrot.lane.b32.xlu0 %v2906, 68
        %v3405 = vpop.permute.xlu0 %3404
        %3406 = vrot.lane.b32.xlu0 %v2907, 68
        %v3407 = vpop.permute.xlu0 %3406
        %3408 = vrot.lane.b32.xlu0 %v2908, 68
        %v3409 = vpop.permute.xlu0 %3408
        %3410 = vrot.lane.b32.xlu0 %v2909, 68
        %v3411 = vpop.permute.xlu0 %3410
        %3412 = vrot.lane.b32.xlu0 %v2910, 68
        %v3413 = vpop.permute.xlu0 %3412
        %3414 = vrot.lane.b32.xlu0 %v2911, 68
        %v3415 = vpop.permute.xlu0 %3414
        %3416 = vrot.lane.b32.xlu0 %v3149, 68
        %v3417 = vpop.permute.xlu0 %3416
        %3418 = vrot.lane.b32.xlu0 %v3387, 68
        %v3419 = vpop.permute.xlu0 %3418
        %vm3436 = vcmask 589344
        %3437 = vst.msk [vmem:[#allocation3] sm:$0xff] %vm3436, %v3389
        %3438 = vst.msk [vmem:[#allocation3 + $0x8] sm:$0xff] %vm3436, %v3391
        %3439 = vst.msk [vmem:[#allocation3 + $0x10] sm:$0xff] %vm3436, %v3393
        %3440 = vst.msk [vmem:[#allocation3 + $0x18] sm:$0xff] %vm3436, %v3395
        %3441 = vst.msk [vmem:[#allocation3 + $0x20] sm:$0xff] %vm3436, %v3397
        %3442 = vst.msk [vmem:[#allocation3 + $0x28] sm:$0xff] %vm3436, %v3399
        %3443 = vst.msk [vmem:[#allocation3 + $0x30] sm:$0xff] %vm3436, %v3401
        %3444 = vst.msk [vmem:[#allocation3 + $0x38] sm:$0xff] %vm3436, %v3403
        %3445 = vst.msk [vmem:[#allocation3 + $0x40] sm:$0xff] %vm3436, %v3405
        %3446 = vst.msk [vmem:[#allocation3 + $0x48] sm:$0xff] %vm3436, %v3407
        %3447 = vst.msk [vmem:[#allocation3 + $0x50] sm:$0xff] %vm3436, %v3409
        %3448 = vst.msk [vmem:[#allocation3 + $0x58] sm:$0xff] %vm3436, %v3411
        %3449 = vst.msk [vmem:[#allocation3 + $0x60] sm:$0xff] %vm3436, %v3413
        %3450 = vst.msk [vmem:[#allocation3 + $0x68] sm:$0xff] %vm3436, %v3415
        %3451 = vst.msk [vmem:[#allocation3 + $0x70] sm:$0xff] %vm3436, %v3417
        %3452 = vst.msk [vmem:[#allocation3 + $0x78] sm:$0xff] %vm3436, %v3419
        %v3485 = vunpack.c.l.b16 %v707
        %v3486 = vunpack.c.l.b16 %v708
        %v3487 = vunpack.c.l.b16 %v710
        %v3488 = vunpack.c.l.b16 %v711
        %v3489 = vunpack.c.l.b16 %v713
        %v3490 = vunpack.c.l.b16 %v714
        %v3491 = vunpack.c.l.b16 %v716
        %v3492 = vunpack.c.l.b16 %v717
        %v3493 = vunpack.c.l.b16 %v719
        %v3494 = vunpack.c.l.b16 %v720
        %v3495 = vunpack.c.l.b16 %v722
        %v3496 = vunpack.c.l.b16 %v723
        %v3497 = vunpack.c.l.b16 %v725
        %v3498 = vunpack.c.l.b16 %v726
        %v3499 = vunpack.c.l.b16 %v728
        %v3500 = vunpack.c.l.b16 %v729
        %v3501 = vunpack.c.l.b16 %v731
        %v3502 = vunpack.c.l.b16 %v732
        %v3503 = vunpack.c.l.b16 %v734
        %v3504 = vunpack.c.l.b16 %v735
        %v3505 = vunpack.c.l.b16 %v737
        %v3506 = vunpack.c.l.b16 %v738
        %v3507 = vunpack.c.l.b16 %v740
        %v3508 = vunpack.c.l.b16 %v741
        %v3509 = vunpack.c.l.b16 %v743
        %v3510 = vunpack.c.l.b16 %v744
        %v3511 = vunpack.c.l.b16 %v746
        %v3512 = vunpack.c.l.b16 %v747
        %v3513 = vunpack.c.l.b16 %v749
        %v3514 = vunpack.c.l.b16 %v750
        %v3515 = vunpack.c.l.b16 %v752
        %v3516 = vunpack.c.l.b16 %v753
        %v3517 = vpack.c.b16 %v3486, %v3485
        %v3518 = vpack.c.b16 %v3488, %v3487
        %v3519 = vpack.c.b16 %v3490, %v3489
        %v3520 = vpack.c.b16 %v3492, %v3491
        %v3521 = vpack.c.b16 %v3494, %v3493
        %v3522 = vpack.c.b16 %v3496, %v3495
        %v3523 = vpack.c.b16 %v3498, %v3497
        %v3524 = vpack.c.b16 %v3500, %v3499
        %v3525 = vpack.c.b16 %v3502, %v3501
        %v3526 = vpack.c.b16 %v3504, %v3503
        %v3527 = vpack.c.b16 %v3506, %v3505
        %v3528 = vpack.c.b16 %v3508, %v3507
        %v3529 = vpack.c.b16 %v3510, %v3509
        %v3530 = vpack.c.b16 %v3512, %v3511
        %v3531 = vpack.c.b16 %v3514, %v3513
        %v3532 = vpack.c.b16 %v3516, %v3515
        %3533 = vrot.lane.b32.xlu0 %v3517, 72
        %v3534 = vpop.permute.xlu0 %3533
        %3535 = vrot.lane.b32.xlu0 %v3518, 72
        %v3536 = vpop.permute.xlu0 %3535
        %3537 = vrot.lane.b32.xlu0 %v3519, 72
        %v3538 = vpop.permute.xlu0 %3537
        %3539 = vrot.lane.b32.xlu0 %v3520, 72
        %v3540 = vpop.permute.xlu0 %3539
        %3541 = vrot.lane.b32.xlu0 %v3521, 72
        %v3542 = vpop.permute.xlu0 %3541
        %3543 = vrot.lane.b32.xlu0 %v3522, 72
        %v3544 = vpop.permute.xlu0 %3543
        %3545 = vrot.lane.b32.xlu0 %v3523, 72
        %v3546 = vpop.permute.xlu0 %3545
        %3547 = vrot.lane.b32.xlu0 %v3524, 72
        %v3548 = vpop.permute.xlu0 %3547
        %3549 = vrot.lane.b32.xlu0 %v3525, 72
        %v3550 = vpop.permute.xlu0 %3549
        %3551 = vrot.lane.b32.xlu0 %v3526, 72
        %v3552 = vpop.permute.xlu0 %3551
        %3553 = vrot.lane.b32.xlu0 %v3527, 72
        %v3554 = vpop.permute.xlu0 %3553
        %3555 = vrot.lane.b32.xlu0 %v3528, 72
        %v3556 = vpop.permute.xlu0 %3555
        %3557 = vrot.lane.b32.xlu0 %v3529, 72
        %v3558 = vpop.permute.xlu0 %3557
        %3559 = vrot.lane.b32.xlu0 %v3530, 72
        %v3560 = vpop.permute.xlu0 %3559
        %3561 = vrot.lane.b32.xlu0 %v3531, 72
        %v3562 = vpop.permute.xlu0 %3561
        %3563 = vrot.lane.b32.xlu0 %v3532, 72
        %v3564 = vpop.permute.xlu0 %3563
        %vm3581 = vcmask 622144
        %3582 = vst.msk [vmem:[#allocation3] sm:$0xff] %vm3581, %v3534
        %3583 = vst.msk [vmem:[#allocation3 + $0x8] sm:$0xff] %vm3581, %v3536
        %3584 = vst.msk [vmem:[#allocation3 + $0x10] sm:$0xff] %vm3581, %v3538
        %3585 = vst.msk [vmem:[#allocation3 + $0x18] sm:$0xff] %vm3581, %v3540
        %3586 = vst.msk [vmem:[#allocation3 + $0x20] sm:$0xff] %vm3581, %v3542
        %3587 = vst.msk [vmem:[#allocation3 + $0x28] sm:$0xff] %vm3581, %v3544
        %3588 = vst.msk [vmem:[#allocation3 + $0x30] sm:$0xff] %vm3581, %v3546
        %3589 = vst.msk [vmem:[#allocation3 + $0x38] sm:$0xff] %vm3581, %v3548
        %3590 = vst.msk [vmem:[#allocation3 + $0x40] sm:$0xff] %vm3581, %v3550
        %3591 = vst.msk [vmem:[#allocation3 + $0x48] sm:$0xff] %vm3581, %v3552
        %3592 = vst.msk [vmem:[#allocation3 + $0x50] sm:$0xff] %vm3581, %v3554
        %3593 = vst.msk [vmem:[#allocation3 + $0x58] sm:$0xff] %vm3581, %v3556
        %3594 = vst.msk [vmem:[#allocation3 + $0x60] sm:$0xff] %vm3581, %v3558
        %3595 = vst.msk [vmem:[#allocation3 + $0x68] sm:$0xff] %vm3581, %v3560
        %3596 = vst.msk [vmem:[#allocation3 + $0x70] sm:$0xff] %vm3581, %v3562
        %3597 = vst.msk [vmem:[#allocation3 + $0x78] sm:$0xff] %vm3581, %v3564
        %v3599 = vshrl.u32 %v707, 16
        %v3601 = vrot.slane %v3599, 4
        %v3602 = vshll.u32 %v707, 16
        %v3604 = vrot.slane %v3602, 5
        %v3605 = vor.u32 %v3601, %v3604
        %v3606 = vrot.slane %v3605, 4
        %v3608 = vshll.u32 %v708, 16
        %v3610 = vrot.slane %v3608, 5
        %v3611 = vsel %vm876, %v3606, %v3610
        %v3612 = vshrl.u32 %v708, 16
        %v3614 = vrot.slane %v3612, 4
        %v3615 = vor.u32 %v3614, %v3610
        %v3616 = vrot.slane %v3615, 4
        %v3618 = vshll.u32 %v709, 16
        %v3620 = vrot.slane %v3618, 5
        %v3621 = vsel %vm876, %v3616, %v3620
        %v3623 = vshrl.u32 %v710, 16
        %v3625 = vrot.slane %v3623, 4
        %v3626 = vshll.u32 %v710, 16
        %v3628 = vrot.slane %v3626, 5
        %v3629 = vor.u32 %v3625, %v3628
        %v3630 = vrot.slane %v3629, 4
        %v3632 = vshll.u32 %v711, 16
        %v3634 = vrot.slane %v3632, 5
        %v3635 = vsel %vm876, %v3630, %v3634
        %v3636 = vshrl.u32 %v711, 16
        %v3638 = vrot.slane %v3636, 4
        %v3639 = vor.u32 %v3638, %v3634
        %v3640 = vrot.slane %v3639, 4
        %v3642 = vshll.u32 %v712, 16
        %v3644 = vrot.slane %v3642, 5
        %v3645 = vsel %vm876, %v3640, %v3644
        %v3647 = vshrl.u32 %v713, 16
        %v3649 = vrot.slane %v3647, 4
        %v3650 = vshll.u32 %v713, 16
        %v3652 = vrot.slane %v3650, 5
        %v3653 = vor.u32 %v3649, %v3652
        %v3654 = vrot.slane %v3653, 4
        %v3656 = vshll.u32 %v714, 16
        %v3658 = vrot.slane %v3656, 5
        %v3659 = vsel %vm876, %v3654, %v3658
        %v3660 = vshrl.u32 %v714, 16
        %v3662 = vrot.slane %v3660, 4
        %v3663 = vor.u32 %v3662, %v3658
        %v3664 = vrot.slane %v3663, 4
        %v3666 = vshll.u32 %v715, 16
        %v3668 = vrot.slane %v3666, 5
        %v3669 = vsel %vm876, %v3664, %v3668
        %v3671 = vshrl.u32 %v716, 16
        %v3673 = vrot.slane %v3671, 4
        %v3674 = vshll.u32 %v716, 16
        %v3676 = vrot.slane %v3674, 5
        %v3677 = vor.u32 %v3673, %v3676
        %v3678 = vrot.slane %v3677, 4
        %v3680 = vshll.u32 %v717, 16
        %v3682 = vrot.slane %v3680, 5
        %v3683 = vsel %vm876, %v3678, %v3682
        %v3684 = vshrl.u32 %v717, 16
        %v3686 = vrot.slane %v3684, 4
        %v3687 = vor.u32 %v3686, %v3682
        %v3688 = vrot.slane %v3687, 4
        %v3690 = vshll.u32 %v718, 16
        %v3692 = vrot.slane %v3690, 5
        %v3693 = vsel %vm876, %v3688, %v3692
        %v3695 = vshrl.u32 %v719, 16
        %v3697 = vrot.slane %v3695, 4
        %v3698 = vshll.u32 %v719, 16
        %v3700 = vrot.slane %v3698, 5
        %v3701 = vor.u32 %v3697, %v3700
        %v3702 = vrot.slane %v3701, 4
        %v3704 = vshll.u32 %v720, 16
        %v3706 = vrot.slane %v3704, 5
        %v3707 = vsel %vm876, %v3702, %v3706
        %v3708 = vshrl.u32 %v720, 16
        %v3710 = vrot.slane %v3708, 4
        %v3711 = vor.u32 %v3710, %v3706
        %v3712 = vrot.slane %v3711, 4
        %v3714 = vshll.u32 %v721, 16
        %v3716 = vrot.slane %v3714, 5
        %v3717 = vsel %vm876, %v3712, %v3716
        %v3719 = vshrl.u32 %v722, 16
        %v3721 = vrot.slane %v3719, 4
        %v3722 = vshll.u32 %v722, 16
        %v3724 = vrot.slane %v3722, 5
        %v3725 = vor.u32 %v3721, %v3724
        %v3726 = vrot.slane %v3725, 4
        %v3728 = vshll.u32 %v723, 16
        %v3730 = vrot.slane %v3728, 5
        %v3731 = vsel %vm876, %v3726, %v3730
        %v3732 = vshrl.u32 %v723, 16
        %v3734 = vrot.slane %v3732, 4
        %v3735 = vor.u32 %v3734, %v3730
        %v3736 = vrot.slane %v3735, 4
        %v3738 = vshll.u32 %v724, 16
        %v3740 = vrot.slane %v3738, 5
        %v3741 = vsel %vm876, %v3736, %v3740
        %v3743 = vshrl.u32 %v725, 16
        %v3745 = vrot.slane %v3743, 4
        %v3746 = vshll.u32 %v725, 16
        %v3748 = vrot.slane %v3746, 5
        %v3749 = vor.u32 %v3745, %v3748
        %v3750 = vrot.slane %v3749, 4
        %v3752 = vshll.u32 %v726, 16
        %v3754 = vrot.slane %v3752, 5
        %v3755 = vsel %vm876, %v3750, %v3754
        %v3756 = vshrl.u32 %v726, 16
        %v3758 = vrot.slane %v3756, 4
        %v3759 = vor.u32 %v3758, %v3754
        %v3760 = vrot.slane %v3759, 4
        %v3762 = vshll.u32 %v727, 16
        %v3764 = vrot.slane %v3762, 5
        %v3765 = vsel %vm876, %v3760, %v3764
        %v3767 = vshrl.u32 %v728, 16
        %v3769 = vrot.slane %v3767, 4
        %v3770 = vshll.u32 %v728, 16
        %v3772 = vrot.slane %v3770, 5
        %v3773 = vor.u32 %v3769, %v3772
        %v3774 = vrot.slane %v3773, 4
        %v3776 = vshll.u32 %v729, 16
        %v3778 = vrot.slane %v3776, 5
        %v3779 = vsel %vm876, %v3774, %v3778
        %v3780 = vshrl.u32 %v729, 16
        %v3782 = vrot.slane %v3780, 4
        %v3783 = vor.u32 %v3782, %v3778
        %v3784 = vrot.slane %v3783, 4
        %v3786 = vshll.u32 %v730, 16
        %v3788 = vrot.slane %v3786, 5
        %v3789 = vsel %vm876, %v3784, %v3788
        %v3791 = vshrl.u32 %v731, 16
        %v3793 = vrot.slane %v3791, 4
        %v3794 = vshll.u32 %v731, 16
        %v3796 = vrot.slane %v3794, 5
        %v3797 = vor.u32 %v3793, %v3796
        %v3798 = vrot.slane %v3797, 4
        %v3800 = vshll.u32 %v732, 16
        %v3802 = vrot.slane %v3800, 5
        %v3803 = vsel %vm876, %v3798, %v3802
        %v3804 = vshrl.u32 %v732, 16
        %v3806 = vrot.slane %v3804, 4
        %v3807 = vor.u32 %v3806, %v3802
        %v3808 = vrot.slane %v3807, 4
        %v3810 = vshll.u32 %v733, 16
        %v3812 = vrot.slane %v3810, 5
        %v3813 = vsel %vm876, %v3808, %v3812
        %v3815 = vshrl.u32 %v734, 16
        %v3817 = vrot.slane %v3815, 4
        %v3818 = vshll.u32 %v734, 16
        %v3820 = vrot.slane %v3818, 5
        %v3821 = vor.u32 %v3817, %v3820
        %v3822 = vrot.slane %v3821, 4
        %v3824 = vshll.u32 %v735, 16
        %v3826 = vrot.slane %v3824, 5
        %v3827 = vsel %vm876, %v3822, %v3826
        %v3828 = vshrl.u32 %v735, 16
        %v3830 = vrot.slane %v3828, 4
        %v3831 = vor.u32 %v3830, %v3826
        %v3832 = vrot.slane %v3831, 4
        %v3834 = vshll.u32 %v736, 16
        %v3836 = vrot.slane %v3834, 5
        %v3837 = vsel %vm876, %v3832, %v3836
        %v3839 = vshrl.u32 %v737, 16
        %v3841 = vrot.slane %v3839, 4
        %v3842 = vshll.u32 %v737, 16
        %v3844 = vrot.slane %v3842, 5
        %v3845 = vor.u32 %v3841, %v3844
        %v3846 = vrot.slane %v3845, 4
        %v3848 = vshll.u32 %v738, 16
        %v3850 = vrot.slane %v3848, 5
        %v3851 = vsel %vm876, %v3846, %v3850
        %v3852 = vshrl.u32 %v738, 16
        %v3854 = vrot.slane %v3852, 4
        %v3855 = vor.u32 %v3854, %v3850
        %v3856 = vrot.slane %v3855, 4
        %v3858 = vshll.u32 %v739, 16
        %v3860 = vrot.slane %v3858, 5
        %v3861 = vsel %vm876, %v3856, %v3860
        %v3863 = vshrl.u32 %v740, 16
        %v3865 = vrot.slane %v3863, 4
        %v3866 = vshll.u32 %v740, 16
        %v3868 = vrot.slane %v3866, 5
        %v3869 = vor.u32 %v3865, %v3868
        %v3870 = vrot.slane %v3869, 4
        %v3872 = vshll.u32 %v741, 16
        %v3874 = vrot.slane %v3872, 5
        %v3875 = vsel %vm876, %v3870, %v3874
        %v3876 = vshrl.u32 %v741, 16
        %v3878 = vrot.slane %v3876, 4
        %v3879 = vor.u32 %v3878, %v3874
        %v3880 = vrot.slane %v3879, 4
        %v3882 = vshll.u32 %v742, 16
        %v3884 = vrot.slane %v3882, 5
        %v3885 = vsel %vm876, %v3880, %v3884
        %v3887 = vshrl.u32 %v743, 16
        %v3889 = vrot.slane %v3887, 4
        %v3890 = vshll.u32 %v743, 16
        %v3892 = vrot.slane %v3890, 5
        %v3893 = vor.u32 %v3889, %v3892
        %v3894 = vrot.slane %v3893, 4
        %v3896 = vshll.u32 %v744, 16
        %v3898 = vrot.slane %v3896, 5
        %v3899 = vsel %vm876, %v3894, %v3898
        %v3900 = vshrl.u32 %v744, 16
        %v3902 = vrot.slane %v3900, 4
        %v3903 = vor.u32 %v3902, %v3898
        %v3904 = vrot.slane %v3903, 4
        %v3906 = vshll.u32 %v745, 16
        %v3908 = vrot.slane %v3906, 5
        %v3909 = vsel %vm876, %v3904, %v3908
        %v3911 = vshrl.u32 %v746, 16
        %v3913 = vrot.slane %v3911, 4
        %v3914 = vshll.u32 %v746, 16
        %v3916 = vrot.slane %v3914, 5
        %v3917 = vor.u32 %v3913, %v3916
        %v3918 = vrot.slane %v3917, 4
        %v3920 = vshll.u32 %v747, 16
        %v3922 = vrot.slane %v3920, 5
        %v3923 = vsel %vm876, %v3918, %v3922
        %v3924 = vshrl.u32 %v747, 16
        %v3926 = vrot.slane %v3924, 4
        %v3927 = vor.u32 %v3926, %v3922
        %v3928 = vrot.slane %v3927, 4
        %v3930 = vshll.u32 %v748, 16
        %v3932 = vrot.slane %v3930, 5
        %v3933 = vsel %vm876, %v3928, %v3932
        %v3935 = vshrl.u32 %v749, 16
        %v3937 = vrot.slane %v3935, 4
        %v3938 = vshll.u32 %v749, 16
        %v3940 = vrot.slane %v3938, 5
        %v3941 = vor.u32 %v3937, %v3940
        %v3942 = vrot.slane %v3941, 4
        %v3944 = vshll.u32 %v750, 16
        %v3946 = vrot.slane %v3944, 5
        %v3947 = vsel %vm876, %v3942, %v3946
        %v3948 = vshrl.u32 %v750, 16
        %v3950 = vrot.slane %v3948, 4
        %v3951 = vor.u32 %v3950, %v3946
        %v3952 = vrot.slane %v3951, 4
        %v3954 = vshll.u32 %v751, 16
        %v3956 = vrot.slane %v3954, 5
        %v3957 = vsel %vm876, %v3952, %v3956
        %v3959 = vshrl.u32 %v752, 16
        %v3961 = vrot.slane %v3959, 4
        %v3962 = vshll.u32 %v752, 16
        %v3964 = vrot.slane %v3962, 5
        %v3965 = vor.u32 %v3961, %v3964
        %v3966 = vrot.slane %v3965, 4
        %v3968 = vshll.u32 %v753, 16
        %v3970 = vrot.slane %v3968, 5
        %v3971 = vsel %vm876, %v3966, %v3970
        %v3972 = vshrl.u32 %v753, 16
        %v3974 = vrot.slane %v3972, 4
        %v3975 = vor.u32 %v3974, %v3970
        %v3976 = vrot.slane %v3975, 4
        %v3978 = vshll.u32 %v754, 16
        %v3980 = vrot.slane %v3978, 5
        %v3981 = vsel %vm876, %v3976, %v3980
        %v3982 = vunpack.c.l.b16 %v3611
        %v3983 = vunpack.c.l.b16 %v3621
        %v3984 = vunpack.c.l.b16 %v3635
        %v3985 = vunpack.c.l.b16 %v3645
        %v3986 = vunpack.c.l.b16 %v3659
        %v3987 = vunpack.c.l.b16 %v3669
        %v3988 = vunpack.c.l.b16 %v3683
        %v3989 = vunpack.c.l.b16 %v3693
        %v3990 = vunpack.c.l.b16 %v3707
        %v3991 = vunpack.c.l.b16 %v3717
        %v3992 = vunpack.c.l.b16 %v3731
        %v3993 = vunpack.c.l.b16 %v3741
        %v3994 = vunpack.c.l.b16 %v3755
        %v3995 = vunpack.c.l.b16 %v3765
        %v3996 = vunpack.c.l.b16 %v3779
        %v3997 = vunpack.c.l.b16 %v3789
        %v3998 = vunpack.c.l.b16 %v3803
        %v3999 = vunpack.c.l.b16 %v3813
        %v4000 = vunpack.c.l.b16 %v3827
        %v4001 = vunpack.c.l.b16 %v3837
        %v4002 = vunpack.c.l.b16 %v3851
        %v4003 = vunpack.c.l.b16 %v3861
        %v4004 = vunpack.c.l.b16 %v3875
        %v4005 = vunpack.c.l.b16 %v3885
        %v4006 = vunpack.c.l.b16 %v3899
        %v4007 = vunpack.c.l.b16 %v3909
        %v4008 = vunpack.c.l.b16 %v3923
        %v4009 = vunpack.c.l.b16 %v3933
        %v4010 = vunpack.c.l.b16 %v3947
        %v4011 = vunpack.c.l.b16 %v3957
        %v4012 = vunpack.c.l.b16 %v3971
        %v4013 = vunpack.c.l.b16 %v3981
        %v4014 = vpack.c.b16 %v3983, %v3982
        %v4015 = vpack.c.b16 %v3985, %v3984
        %v4016 = vpack.c.b16 %v3987, %v3986
        %v4017 = vpack.c.b16 %v3989, %v3988
        %v4018 = vpack.c.b16 %v3991, %v3990
        %v4019 = vpack.c.b16 %v3993, %v3992
        %v4020 = vpack.c.b16 %v3995, %v3994
        %v4021 = vpack.c.b16 %v3997, %v3996
        %v4022 = vpack.c.b16 %v3999, %v3998
        %v4023 = vpack.c.b16 %v4001, %v4000
        %v4024 = vpack.c.b16 %v4003, %v4002
        %v4025 = vpack.c.b16 %v4005, %v4004
        %v4026 = vpack.c.b16 %v4007, %v4006
        %v4027 = vpack.c.b16 %v4009, %v4008
        %v4028 = vpack.c.b16 %v4011, %v4010
        %v4029 = vpack.c.b16 %v4013, %v4012
        %4030 = vrot.lane.b32.xlu0 %v4014, 76
        %v4031 = vpop.permute.xlu0 %4030
        %4032 = vrot.lane.b32.xlu0 %v4015, 76
        %v4033 = vpop.permute.xlu0 %4032
        %4034 = vrot.lane.b32.xlu0 %v4016, 76
        %v4035 = vpop.permute.xlu0 %4034
        %4036 = vrot.lane.b32.xlu0 %v4017, 76
        %v4037 = vpop.permute.xlu0 %4036
        %4038 = vrot.lane.b32.xlu0 %v4018, 76
        %v4039 = vpop.permute.xlu0 %4038
        %4040 = vrot.lane.b32.xlu0 %v4019, 76
        %v4041 = vpop.permute.xlu0 %4040
        %4042 = vrot.lane.b32.xlu0 %v4020, 76
        %v4043 = vpop.permute.xlu0 %4042
        %4044 = vrot.lane.b32.xlu0 %v4021, 76
        %v4045 = vpop.permute.xlu0 %4044
        %4046 = vrot.lane.b32.xlu0 %v4022, 76
        %v4047 = vpop.permute.xlu0 %4046
        %4048 = vrot.lane.b32.xlu0 %v4023, 76
        %v4049 = vpop.permute.xlu0 %4048
        %4050 = vrot.lane.b32.xlu0 %v4024, 76
        %v4051 = vpop.permute.xlu0 %4050
        %4052 = vrot.lane.b32.xlu0 %v4025, 76
        %v4053 = vpop.permute.xlu0 %4052
        %4054 = vrot.lane.b32.xlu0 %v4026, 76
        %v4055 = vpop.permute.xlu0 %4054
        %4056 = vrot.lane.b32.xlu0 %v4027, 76
        %v4057 = vpop.permute.xlu0 %4056
        %4058 = vrot.lane.b32.xlu0 %v4028, 76
        %v4059 = vpop.permute.xlu0 %4058
        %4060 = vrot.lane.b32.xlu0 %v4029, 76
        %v4061 = vpop.permute.xlu0 %4060
        %vm4078 = vcmask 654944
        %4079 = vst.msk [vmem:[#allocation3] sm:$0xff] %vm4078, %v4031
        %4080 = vst.msk [vmem:[#allocation3 + $0x8] sm:$0xff] %vm4078, %v4033
        %4081 = vst.msk [vmem:[#allocation3 + $0x10] sm:$0xff] %vm4078, %v4035
        %4082 = vst.msk [vmem:[#allocation3 + $0x18] sm:$0xff] %vm4078, %v4037
        %4083 = vst.msk [vmem:[#allocation3 + $0x20] sm:$0xff] %vm4078, %v4039
        %4084 = vst.msk [vmem:[#allocation3 + $0x28] sm:$0xff] %vm4078, %v4041
        %4085 = vst.msk [vmem:[#allocation3 + $0x30] sm:$0xff] %vm4078, %v4043
        %4086 = vst.msk [vmem:[#allocation3 + $0x38] sm:$0xff] %vm4078, %v4045
        %4087 = vst.msk [vmem:[#allocation3 + $0x40] sm:$0xff] %vm4078, %v4047
        %4088 = vst.msk [vmem:[#allocation3 + $0x48] sm:$0xff] %vm4078, %v4049
        %4089 = vst.msk [vmem:[#allocation3 + $0x50] sm:$0xff] %vm4078, %v4051
        %4090 = vst.msk [vmem:[#allocation3 + $0x58] sm:$0xff] %vm4078, %v4053
        %4091 = vst.msk [vmem:[#allocation3 + $0x60] sm:$0xff] %vm4078, %v4055
        %4092 = vst.msk [vmem:[#allocation3 + $0x68] sm:$0xff] %vm4078, %v4057
        %4093 = vst.msk [vmem:[#allocation3 + $0x70] sm:$0xff] %vm4078, %v4059
        %4094 = vst.msk [vmem:[#allocation3 + $0x78] sm:$0xff] %vm4078, %v4061
        %v4111 = vrot.slane %v707, 5
        %v4112 = vrot.slane %v4111, 4
        %v4113 = vrot.slane %v708, 5
        %v4114 = vsel %vm1392, %v4112, %v4113
        %v4115 = vrot.slane %v4113, 4
        %v4116 = vrot.slane %v709, 5
        %v4117 = vsel %vm1392, %v4115, %v4116
        %v4118 = vrot.slane %v710, 5
        %v4119 = vrot.slane %v4118, 4
        %v4120 = vrot.slane %v711, 5
        %v4121 = vsel %vm1392, %v4119, %v4120
        %v4122 = vrot.slane %v4120, 4
        %v4123 = vrot.slane %v712, 5
        %v4124 = vsel %vm1392, %v4122, %v4123
        %v4125 = vrot.slane %v713, 5
        %v4126 = vrot.slane %v4125, 4
        %v4127 = vrot.slane %v714, 5
        %v4128 = vsel %vm1392, %v4126, %v4127
        %v4129 = vrot.slane %v4127, 4
        %v4130 = vrot.slane %v715, 5
        %v4131 = vsel %vm1392, %v4129, %v4130
        %v4132 = vrot.slane %v716, 5
        %v4133 = vrot.slane %v4132, 4
        %v4134 = vrot.slane %v717, 5
        %v4135 = vsel %vm1392, %v4133, %v4134
        %v4136 = vrot.slane %v4134, 4
        %v4137 = vrot.slane %v718, 5
        %v4138 = vsel %vm1392, %v4136, %v4137
        %v4139 = vrot.slane %v719, 5
        %v4140 = vrot.slane %v4139, 4
        %v4141 = vrot.slane %v720, 5
        %v4142 = vsel %vm1392, %v4140, %v4141
        %v4143 = vrot.slane %v4141, 4
        %v4144 = vrot.slane %v721, 5
        %v4145 = vsel %vm1392, %v4143, %v4144
        %v4146 = vrot.slane %v722, 5
        %v4147 = vrot.slane %v4146, 4
        %v4148 = vrot.slane %v723, 5
        %v4149 = vsel %vm1392, %v4147, %v4148
        %v4150 = vrot.slane %v4148, 4
        %v4151 = vrot.slane %v724, 5
        %v4152 = vsel %vm1392, %v4150, %v4151
        %v4153 = vrot.slane %v725, 5
        %v4154 = vrot.slane %v4153, 4
        %v4155 = vrot.slane %v726, 5
        %v4156 = vsel %vm1392, %v4154, %v4155
        %v4157 = vrot.slane %v4155, 4
        %v4158 = vrot.slane %v727, 5
        %v4159 = vsel %vm1392, %v4157, %v4158
        %v4160 = vrot.slane %v728, 5
        %v4161 = vrot.slane %v4160, 4
        %v4162 = vrot.slane %v729, 5
        %v4163 = vsel %vm1392, %v4161, %v4162
        %v4164 = vrot.slane %v4162, 4
        %v4165 = vrot.slane %v730, 5
        %v4166 = vsel %vm1392, %v4164, %v4165
        %v4167 = vrot.slane %v731, 5
        %v4168 = vrot.slane %v4167, 4
        %v4169 = vrot.slane %v732, 5
        %v4170 = vsel %vm1392, %v4168, %v4169
        %v4171 = vrot.slane %v4169, 4
        %v4172 = vrot.slane %v733, 5
        %v4173 = vsel %vm1392, %v4171, %v4172
        %v4174 = vrot.slane %v734, 5
        %v4175 = vrot.slane %v4174, 4
        %v4176 = vrot.slane %v735, 5
        %v4177 = vsel %vm1392, %v4175, %v4176
        %v4178 = vrot.slane %v4176, 4
        %v4179 = vrot.slane %v736, 5
        %v4180 = vsel %vm1392, %v4178, %v4179
        %v4181 = vrot.slane %v737, 5
        %v4182 = vrot.slane %v4181, 4
        %v4183 = vrot.slane %v738, 5
        %v4184 = vsel %vm1392, %v4182, %v4183
        %v4185 = vrot.slane %v4183, 4
        %v4186 = vrot.slane %v739, 5
        %v4187 = vsel %vm1392, %v4185, %v4186
        %v4188 = vrot.slane %v740, 5
        %v4189 = vrot.slane %v4188, 4
        %v4190 = vrot.slane %v741, 5
        %v4191 = vsel %vm1392, %v4189, %v4190
        %v4192 = vrot.slane %v4190, 4
        %v4193 = vrot.slane %v742, 5
        %v4194 = vsel %vm1392, %v4192, %v4193
        %v4195 = vrot.slane %v743, 5
        %v4196 = vrot.slane %v4195, 4
        %v4197 = vrot.slane %v744, 5
        %v4198 = vsel %vm1392, %v4196, %v4197
        %v4199 = vrot.slane %v4197, 4
        %v4200 = vrot.slane %v745, 5
        %v4201 = vsel %vm1392, %v4199, %v4200
        %v4202 = vrot.slane %v746, 5
        %v4203 = vrot.slane %v4202, 4
        %v4204 = vrot.slane %v747, 5
        %v4205 = vsel %vm1392, %v4203, %v4204
        %v4206 = vrot.slane %v4204, 4
        %v4207 = vrot.slane %v748, 5
        %v4208 = vsel %vm1392, %v4206, %v4207
        %v4209 = vrot.slane %v749, 5
        %v4210 = vrot.slane %v4209, 4
        %v4211 = vrot.slane %v750, 5
        %v4212 = vsel %vm1392, %v4210, %v4211
        %v4213 = vrot.slane %v4211, 4
        %v4214 = vrot.slane %v751, 5
        %v4215 = vsel %vm1392, %v4213, %v4214
        %v4216 = vrot.slane %v752, 5
        %v4217 = vrot.slane %v4216, 4
        %v4218 = vrot.slane %v753, 5
        %v4219 = vsel %vm1392, %v4217, %v4218
        %v4220 = vrot.slane %v4218, 4
        %v4221 = vrot.slane %v754, 5
        %v4222 = vsel %vm1392, %v4220, %v4221
        %v4223 = vunpack.c.l.b16 %v4114
        %v4224 = vunpack.c.l.b16 %v4117
        %v4225 = vunpack.c.l.b16 %v4121
        %v4226 = vunpack.c.l.b16 %v4124
        %v4227 = vunpack.c.l.b16 %v4128
        %v4228 = vunpack.c.l.b16 %v4131
        %v4229 = vunpack.c.l.b16 %v4135
        %v4230 = vunpack.c.l.b16 %v4138
        %v4231 = vunpack.c.l.b16 %v4142
        %v4232 = vunpack.c.l.b16 %v4145
        %v4233 = vunpack.c.l.b16 %v4149
        %v4234 = vunpack.c.l.b16 %v4152
        %v4235 = vunpack.c.l.b16 %v4156
        %v4236 = vunpack.c.l.b16 %v4159
        %v4237 = vunpack.c.l.b16 %v4163
        %v4238 = vunpack.c.l.b16 %v4166
        %v4239 = vunpack.c.l.b16 %v4170
        %v4240 = vunpack.c.l.b16 %v4173
        %v4241 = vunpack.c.l.b16 %v4177
        %v4242 = vunpack.c.l.b16 %v4180
        %v4243 = vunpack.c.l.b16 %v4184
        %v4244 = vunpack.c.l.b16 %v4187
        %v4245 = vunpack.c.l.b16 %v4191
        %v4246 = vunpack.c.l.b16 %v4194
        %v4247 = vunpack.c.l.b16 %v4198
        %v4248 = vunpack.c.l.b16 %v4201
        %v4249 = vunpack.c.l.b16 %v4205
        %v4250 = vunpack.c.l.b16 %v4208
        %v4251 = vunpack.c.l.b16 %v4212
        %v4252 = vunpack.c.l.b16 %v4215
        %v4253 = vunpack.c.l.b16 %v4219
        %v4254 = vunpack.c.l.b16 %v4222
        %v4255 = vpack.c.b16 %v4224, %v4223
        %v4256 = vpack.c.b16 %v4226, %v4225
        %v4257 = vpack.c.b16 %v4228, %v4227
        %v4258 = vpack.c.b16 %v4230, %v4229
        %v4259 = vpack.c.b16 %v4232, %v4231
        %v4260 = vpack.c.b16 %v4234, %v4233
        %v4261 = vpack.c.b16 %v4236, %v4235
        %v4262 = vpack.c.b16 %v4238, %v4237
        %v4263 = vpack.c.b16 %v4240, %v4239
        %v4264 = vpack.c.b16 %v4242, %v4241
        %v4265 = vpack.c.b16 %v4244, %v4243
        %v4266 = vpack.c.b16 %v4246, %v4245
        %v4267 = vpack.c.b16 %v4248, %v4247
        %v4268 = vpack.c.b16 %v4250, %v4249
        %v4269 = vpack.c.b16 %v4252, %v4251
        %v4270 = vpack.c.b16 %v4254, %v4253
        %4271 = vrot.lane.b32.xlu0 %v4255, 80
        %v4272 = vpop.permute.xlu0 %4271
        %4273 = vrot.lane.b32.xlu0 %v4256, 80
        %v4274 = vpop.permute.xlu0 %4273
        %4275 = vrot.lane.b32.xlu0 %v4257, 80
        %v4276 = vpop.permute.xlu0 %4275
        %4277 = vrot.lane.b32.xlu0 %v4258, 80
        %v4278 = vpop.permute.xlu0 %4277
        %4279 = vrot.lane.b32.xlu0 %v4259, 80
        %v4280 = vpop.permute.xlu0 %4279
        %4281 = vrot.lane.b32.xlu0 %v4260, 80
        %v4282 = vpop.permute.xlu0 %4281
        %4283 = vrot.lane.b32.xlu0 %v4261, 80
        %v4284 = vpop.permute.xlu0 %4283
        %4285 = vrot.lane.b32.xlu0 %v4262, 80
        %v4286 = vpop.permute.xlu0 %4285
        %4287 = vrot.lane.b32.xlu0 %v4263, 80
        %v4288 = vpop.permute.xlu0 %4287
        %4289 = vrot.lane.b32.xlu0 %v4264, 80
        %v4290 = vpop.permute.xlu0 %4289
        %4291 = vrot.lane.b32.xlu0 %v4265, 80
        %v4292 = vpop.permute.xlu0 %4291
        %4293 = vrot.lane.b32.xlu0 %v4266, 80
        %v4294 = vpop.permute.xlu0 %4293
        %4295 = vrot.lane.b32.xlu0 %v4267, 80
        %v4296 = vpop.permute.xlu0 %4295
        %4297 = vrot.lane.b32.xlu0 %v4268, 80
        %v4298 = vpop.permute.xlu0 %4297
        %4299 = vrot.lane.b32.xlu0 %v4269, 80
        %v4300 = vpop.permute.xlu0 %4299
        %4301 = vrot.lane.b32.xlu0 %v4270, 80
        %v4302 = vpop.permute.xlu0 %4301
        %vm4319 = vcmask 687744
        %4320 = vst.msk [vmem:[#allocation3] sm:$0xff] %vm4319, %v4272
        %4321 = vst.msk [vmem:[#allocation3 + $0x8] sm:$0xff] %vm4319, %v4274
        %4322 = vst.msk [vmem:[#allocation3 + $0x10] sm:$0xff] %vm4319, %v4276
        %4323 = vst.msk [vmem:[#allocation3 + $0x18] sm:$0xff] %vm4319, %v4278
        %4324 = vst.msk [vmem:[#allocation3 + $0x20] sm:$0xff] %vm4319, %v4280
        %4325 = vst.msk [vmem:[#allocation3 + $0x28] sm:$0xff] %vm4319, %v4282
        %4326 = vst.msk [vmem:[#allocation3 + $0x30] sm:$0xff] %vm4319, %v4284
        %4327 = vst.msk [vmem:[#allocation3 + $0x38] sm:$0xff] %vm4319, %v4286
        %4328 = vst.msk [vmem:[#allocation3 + $0x40] sm:$0xff] %vm4319, %v4288
        %4329 = vst.msk [vmem:[#allocation3 + $0x48] sm:$0xff] %vm4319, %v4290
        %4330 = vst.msk [vmem:[#allocation3 + $0x50] sm:$0xff] %vm4319, %v4292
        %4331 = vst.msk [vmem:[#allocation3 + $0x58] sm:$0xff] %vm4319, %v4294
        %4332 = vst.msk [vmem:[#allocation3 + $0x60] sm:$0xff] %vm4319, %v4296
        %4333 = vst.msk [vmem:[#allocation3 + $0x68] sm:$0xff] %vm4319, %v4298
        %4334 = vst.msk [vmem:[#allocation3 + $0x70] sm:$0xff] %vm4319, %v4300
        %4335 = vst.msk [vmem:[#allocation3 + $0x78] sm:$0xff] %vm4319, %v4302
        %v4338 = vunpack.c.l.b16 %v755
        %v4339 = vunpack.c.l.b16 %v756
        %v4340 = vpack.c.b16 %v4339, %v4338
        %4341 = vrot.lane.b32.xlu0 %v3518, 84
        %v4342 = vpop.permute.xlu0 %4341
        %4343 = vrot.lane.b32.xlu0 %v3519, 84
        %v4344 = vpop.permute.xlu0 %4343
        %4345 = vrot.lane.b32.xlu0 %v3520, 84
        %v4346 = vpop.permute.xlu0 %4345
        %4347 = vrot.lane.b32.xlu0 %v3521, 84
        %v4348 = vpop.permute.xlu0 %4347
        %4349 = vrot.lane.b32.xlu0 %v3522, 84
        %v4350 = vpop.permute.xlu0 %4349
        %4351 = vrot.lane.b32.xlu0 %v3523, 84
        %v4352 = vpop.permute.xlu0 %4351
        %4353 = vrot.lane.b32.xlu0 %v3524, 84
        %v4354 = vpop.permute.xlu0 %4353
        %4355 = vrot.lane.b32.xlu0 %v3525, 84
        %v4356 = vpop.permute.xlu0 %4355
        %4357 = vrot.lane.b32.xlu0 %v3526, 84
        %v4358 = vpop.permute.xlu0 %4357
        %4359 = vrot.lane.b32.xlu0 %v3527, 84
        %v4360 = vpop.permute.xlu0 %4359
        %4361 = vrot.lane.b32.xlu0 %v3528, 84
        %v4362 = vpop.permute.xlu0 %4361
        %4363 = vrot.lane.b32.xlu0 %v3529, 84
        %v4364 = vpop.permute.xlu0 %4363
        %4365 = vrot.lane.b32.xlu0 %v3530, 84
        %v4366 = vpop.permute.xlu0 %4365
        %4367 = vrot.lane.b32.xlu0 %v3531, 84
        %v4368 = vpop.permute.xlu0 %4367
        %4369 = vrot.lane.b32.xlu0 %v3532, 84
        %v4370 = vpop.permute.xlu0 %4369
        %4371 = vrot.lane.b32.xlu0 %v4340, 84
        %v4372 = vpop.permute.xlu0 %4371
        %vm4389 = vcmask 720544
        %4390 = vst.msk [vmem:[#allocation3] sm:$0xff] %vm4389, %v4342
        %4391 = vst.msk [vmem:[#allocation3 + $0x8] sm:$0xff] %vm4389, %v4344
        %4392 = vst.msk [vmem:[#allocation3 + $0x10] sm:$0xff] %vm4389, %v4346
        %4393 = vst.msk [vmem:[#allocation3 + $0x18] sm:$0xff] %vm4389, %v4348
        %4394 = vst.msk [vmem:[#allocation3 + $0x20] sm:$0xff] %vm4389, %v4350
        %4395 = vst.msk [vmem:[#allocation3 + $0x28] sm:$0xff] %vm4389, %v4352
        %4396 = vst.msk [vmem:[#allocation3 + $0x30] sm:$0xff] %vm4389, %v4354
        %4397 = vst.msk [vmem:[#allocation3 + $0x38] sm:$0xff] %vm4389, %v4356
        %4398 = vst.msk [vmem:[#allocation3 + $0x40] sm:$0xff] %vm4389, %v4358
        %4399 = vst.msk [vmem:[#allocation3 + $0x48] sm:$0xff] %vm4389, %v4360
        %4400 = vst.msk [vmem:[#allocation3 + $0x50] sm:$0xff] %vm4389, %v4362
        %4401 = vst.msk [vmem:[#allocation3 + $0x58] sm:$0xff] %vm4389, %v4364
        %4402 = vst.msk [vmem:[#allocation3 + $0x60] sm:$0xff] %vm4389, %v4366
        %4403 = vst.msk [vmem:[#allocation3 + $0x68] sm:$0xff] %vm4389, %v4368
        %4404 = vst.msk [vmem:[#allocation3 + $0x70] sm:$0xff] %vm4389, %v4370
        %4405 = vst.msk [vmem:[#allocation3 + $0x78] sm:$0xff] %vm4389, %v4372
        %v4407 = vshrl.u32 %v755, 16
        %v4409 = vrot.slane %v4407, 4
        %v4410 = vshll.u32 %v755, 16
        %v4412 = vrot.slane %v4410, 5
        %v4413 = vor.u32 %v4409, %v4412
        %v4414 = vrot.slane %v4413, 4
        %v4416 = vshll.u32 %v756, 16
        %v4418 = vrot.slane %v4416, 5
        %v4419 = vsel %vm876, %v4414, %v4418
        %v4420 = vshrl.u32 %v756, 16
        %v4422 = vrot.slane %v4420, 4
        %v4423 = vor.u32 %v4422, %v4418
        %v4424 = vrot.slane %v4423, 4
        %v4426 = vshll.u32 %v757, 16
        %v4428 = vrot.slane %v4426, 5
        %v4429 = vsel %vm876, %v4424, %v4428
        %v4430 = vunpack.c.l.b16 %v4419
        %v4431 = vunpack.c.l.b16 %v4429
        %v4432 = vpack.c.b16 %v4431, %v4430
        %4433 = vrot.lane.b32.xlu0 %v4015, 88
        %v4434 = vpop.permute.xlu0 %4433
        %4435 = vrot.lane.b32.xlu0 %v4016, 88
        %v4436 = vpop.permute.xlu0 %4435
        %4437 = vrot.lane.b32.xlu0 %v4017, 88
        %v4438 = vpop.permute.xlu0 %4437
        %4439 = vrot.lane.b32.xlu0 %v4018, 88
        %v4440 = vpop.permute.xlu0 %4439
        %4441 = vrot.lane.b32.xlu0 %v4019, 88
        %v4442 = vpop.permute.xlu0 %4441
        %4443 = vrot.lane.b32.xlu0 %v4020, 88
        %v4444 = vpop.permute.xlu0 %4443
        %4445 = vrot.lane.b32.xlu0 %v4021, 88
        %v4446 = vpop.permute.xlu0 %4445
        %4447 = vrot.lane.b32.xlu0 %v4022, 88
        %v4448 = vpop.permute.xlu0 %4447
        %4449 = vrot.lane.b32.xlu0 %v4023, 88
        %v4450 = vpop.permute.xlu0 %4449
        %4451 = vrot.lane.b32.xlu0 %v4024, 88
        %v4452 = vpop.permute.xlu0 %4451
        %4453 = vrot.lane.b32.xlu0 %v4025, 88
        %v4454 = vpop.permute.xlu0 %4453
        %4455 = vrot.lane.b32.xlu0 %v4026, 88
        %v4456 = vpop.permute.xlu0 %4455
        %4457 = vrot.lane.b32.xlu0 %v4027, 88
        %v4458 = vpop.permute.xlu0 %4457
        %4459 = vrot.lane.b32.xlu0 %v4028, 88
        %v4460 = vpop.permute.xlu0 %4459
        %4461 = vrot.lane.b32.xlu0 %v4029, 88
        %v4462 = vpop.permute.xlu0 %4461
        %4463 = vrot.lane.b32.xlu0 %v4432, 88
        %v4464 = vpop.permute.xlu0 %4463
        %vm4481 = vcmask 753344
        %4482 = vst.msk [vmem:[#allocation3] sm:$0xff] %vm4481, %v4434
        %4483 = vst.msk [vmem:[#allocation3 + $0x8] sm:$0xff] %vm4481, %v4436
        %4484 = vst.msk [vmem:[#allocation3 + $0x10] sm:$0xff] %vm4481, %v4438
        %4485 = vst.msk [vmem:[#allocation3 + $0x18] sm:$0xff] %vm4481, %v4440
        %4486 = vst.msk [vmem:[#allocation3 + $0x20] sm:$0xff] %vm4481, %v4442
        %4487 = vst.msk [vmem:[#allocation3 + $0x28] sm:$0xff] %vm4481, %v4444
        %4488 = vst.msk [vmem:[#allocation3 + $0x30] sm:$0xff] %vm4481, %v4446
        %4489 = vst.msk [vmem:[#allocation3 + $0x38] sm:$0xff] %vm4481, %v4448
        %4490 = vst.msk [vmem:[#allocation3 + $0x40] sm:$0xff] %vm4481, %v4450
        %4491 = vst.msk [vmem:[#allocation3 + $0x48] sm:$0xff] %vm4481, %v4452
        %4492 = vst.msk [vmem:[#allocation3 + $0x50] sm:$0xff] %vm4481, %v4454
        %4493 = vst.msk [vmem:[#allocation3 + $0x58] sm:$0xff] %vm4481, %v4456
        %4494 = vst.msk [vmem:[#allocation3 + $0x60] sm:$0xff] %vm4481, %v4458
        %4495 = vst.msk [vmem:[#allocation3 + $0x68] sm:$0xff] %vm4481, %v4460
        %4496 = vst.msk [vmem:[#allocation3 + $0x70] sm:$0xff] %vm4481, %v4462
        %4497 = vst.msk [vmem:[#allocation3 + $0x78] sm:$0xff] %vm4481, %v4464
        %v4499 = vrot.slane %v755, 5
        %v4500 = vrot.slane %v4499, 4
        %v4501 = vrot.slane %v756, 5
        %v4502 = vsel %vm1392, %v4500, %v4501
        %v4503 = vrot.slane %v4501, 4
        %v4504 = vrot.slane %v757, 5
        %v4505 = vsel %vm1392, %v4503, %v4504
        %v4506 = vunpack.c.l.b16 %v4502
        %v4507 = vunpack.c.l.b16 %v4505
        %v4508 = vpack.c.b16 %v4507, %v4506
        %4509 = vrot.lane.b32.xlu0 %v4256, 92
        %v4510 = vpop.permute.xlu0 %4509
        %4511 = vrot.lane.b32.xlu0 %v4257, 92
        %v4512 = vpop.permute.xlu0 %4511
        %4513 = vrot.lane.b32.xlu0 %v4258, 92
        %v4514 = vpop.permute.xlu0 %4513
        %4515 = vrot.lane.b32.xlu0 %v4259, 92
        %v4516 = vpop.permute.xlu0 %4515
        %4517 = vrot.lane.b32.xlu0 %v4260, 92
        %v4518 = vpop.permute.xlu0 %4517
        %4519 = vrot.lane.b32.xlu0 %v4261, 92
        %v4520 = vpop.permute.xlu0 %4519
        %4521 = vrot.lane.b32.xlu0 %v4262, 92
        %v4522 = vpop.permute.xlu0 %4521
        %4523 = vrot.lane.b32.xlu0 %v4263, 92
        %v4524 = vpop.permute.xlu0 %4523
        %4525 = vrot.lane.b32.xlu0 %v4264, 92
        %v4526 = vpop.permute.xlu0 %4525
        %4527 = vrot.lane.b32.xlu0 %v4265, 92
        %v4528 = vpop.permute.xlu0 %4527
        %4529 = vrot.lane.b32.xlu0 %v4266, 92
        %v4530 = vpop.permute.xlu0 %4529
        %4531 = vrot.lane.b32.xlu0 %v4267, 92
        %v4532 = vpop.permute.xlu0 %4531
        %4533 = vrot.lane.b32.xlu0 %v4268, 92
        %v4534 = vpop.permute.xlu0 %4533
        %4535 = vrot.lane.b32.xlu0 %v4269, 92
        %v4536 = vpop.permute.xlu0 %4535
        %4537 = vrot.lane.b32.xlu0 %v4270, 92
        %v4538 = vpop.permute.xlu0 %4537
        %4539 = vrot.lane.b32.xlu0 %v4508, 92
        %v4540 = vpop.permute.xlu0 %4539
        %vm4557 = vcmask 786144
        %4558 = vst.msk [vmem:[#allocation3] sm:$0xff] %vm4557, %v4510
        %4559 = vst.msk [vmem:[#allocation3 + $0x8] sm:$0xff] %vm4557, %v4512
        %4560 = vst.msk [vmem:[#allocation3 + $0x10] sm:$0xff] %vm4557, %v4514
        %4561 = vst.msk [vmem:[#allocation3 + $0x18] sm:$0xff] %vm4557, %v4516
        %4562 = vst.msk [vmem:[#allocation3 + $0x20] sm:$0xff] %vm4557, %v4518
        %4563 = vst.msk [vmem:[#allocation3 + $0x28] sm:$0xff] %vm4557, %v4520
        %4564 = vst.msk [vmem:[#allocation3 + $0x30] sm:$0xff] %vm4557, %v4522
        %4565 = vst.msk [vmem:[#allocation3 + $0x38] sm:$0xff] %vm4557, %v4524
        %4566 = vst.msk [vmem:[#allocation3 + $0x40] sm:$0xff] %vm4557, %v4526
        %4567 = vst.msk [vmem:[#allocation3 + $0x48] sm:$0xff] %vm4557, %v4528
        %4568 = vst.msk [vmem:[#allocation3 + $0x50] sm:$0xff] %vm4557, %v4530
        %4569 = vst.msk [vmem:[#allocation3 + $0x58] sm:$0xff] %vm4557, %v4532
        %4570 = vst.msk [vmem:[#allocation3 + $0x60] sm:$0xff] %vm4557, %v4534
        %4571 = vst.msk [vmem:[#allocation3 + $0x68] sm:$0xff] %vm4557, %v4536
        %4572 = vst.msk [vmem:[#allocation3 + $0x70] sm:$0xff] %vm4557, %v4538
        %4573 = vst.msk [vmem:[#allocation3 + $0x78] sm:$0xff] %vm4557, %v4540
        %v4576 = vunpack.c.l.b16 %v758
        %v4577 = vunpack.c.l.b16 %v759
        %v4578 = vpack.c.b16 %v4577, %v4576
        %4579 = vrot.lane.b32.xlu0 %v3519, 96
        %v4580 = vpop.permute.xlu0 %4579
        %4581 = vrot.lane.b32.xlu0 %v3520, 96
        %v4582 = vpop.permute.xlu0 %4581
        %4583 = vrot.lane.b32.xlu0 %v3521, 96
        %v4584 = vpop.permute.xlu0 %4583
        %4585 = vrot.lane.b32.xlu0 %v3522, 96
        %v4586 = vpop.permute.xlu0 %4585
        %4587 = vrot.lane.b32.xlu0 %v3523, 96
        %v4588 = vpop.permute.xlu0 %4587
        %4589 = vrot.lane.b32.xlu0 %v3524, 96
        %v4590 = vpop.permute.xlu0 %4589
        %4591 = vrot.lane.b32.xlu0 %v3525, 96
        %v4592 = vpop.permute.xlu0 %4591
        %4593 = vrot.lane.b32.xlu0 %v3526, 96
        %v4594 = vpop.permute.xlu0 %4593
        %4595 = vrot.lane.b32.xlu0 %v3527, 96
        %v4596 = vpop.permute.xlu0 %4595
        %4597 = vrot.lane.b32.xlu0 %v3528, 96
        %v4598 = vpop.permute.xlu0 %4597
        %4599 = vrot.lane.b32.xlu0 %v3529, 96
        %v4600 = vpop.permute.xlu0 %4599
        %4601 = vrot.lane.b32.xlu0 %v3530, 96
        %v4602 = vpop.permute.xlu0 %4601
        %4603 = vrot.lane.b32.xlu0 %v3531, 96
        %v4604 = vpop.permute.xlu0 %4603
        %4605 = vrot.lane.b32.xlu0 %v3532, 96
        %v4606 = vpop.permute.xlu0 %4605
        %4607 = vrot.lane.b32.xlu0 %v4340, 96
        %v4608 = vpop.permute.xlu0 %4607
        %4609 = vrot.lane.b32.xlu0 %v4578, 96
        %v4610 = vpop.permute.xlu0 %4609
        %vm4627 = vcmask 818944
        %4628 = vst.msk [vmem:[#allocation3] sm:$0xff] %vm4627, %v4580
        %4629 = vst.msk [vmem:[#allocation3 + $0x8] sm:$0xff] %vm4627, %v4582
        %4630 = vst.msk [vmem:[#allocation3 + $0x10] sm:$0xff] %vm4627, %v4584
        %4631 = vst.msk [vmem:[#allocation3 + $0x18] sm:$0xff] %vm4627, %v4586
        %4632 = vst.msk [vmem:[#allocation3 + $0x20] sm:$0xff] %vm4627, %v4588
        %4633 = vst.msk [vmem:[#allocation3 + $0x28] sm:$0xff] %vm4627, %v4590
        %4634 = vst.msk [vmem:[#allocation3 + $0x30] sm:$0xff] %vm4627, %v4592
        %4635 = vst.msk [vmem:[#allocation3 + $0x38] sm:$0xff] %vm4627, %v4594
        %4636 = vst.msk [vmem:[#allocation3 + $0x40] sm:$0xff] %vm4627, %v4596
        %4637 = vst.msk [vmem:[#allocation3 + $0x48] sm:$0xff] %vm4627, %v4598
        %4638 = vst.msk [vmem:[#allocation3 + $0x50] sm:$0xff] %vm4627, %v4600
        %4639 = vst.msk [vmem:[#allocation3 + $0x58] sm:$0xff] %vm4627, %v4602
        %4640 = vst.msk [vmem:[#allocation3 + $0x60] sm:$0xff] %vm4627, %v4604
        %4641 = vst.msk [vmem:[#allocation3 + $0x68] sm:$0xff] %vm4627, %v4606
        %4642 = vst.msk [vmem:[#allocation3 + $0x70] sm:$0xff] %vm4627, %v4608
        %4643 = vst.msk [vmem:[#allocation3 + $0x78] sm:$0xff] %vm4627, %v4610
        %v4645 = vshrl.u32 %v758, 16
        %v4647 = vrot.slane %v4645, 4
        %v4648 = vshll.u32 %v758, 16
        %v4650 = vrot.slane %v4648, 5
        %v4651 = vor.u32 %v4647, %v4650
        %v4652 = vrot.slane %v4651, 4
        %v4654 = vshll.u32 %v759, 16
        %v4656 = vrot.slane %v4654, 5
        %v4657 = vsel %vm876, %v4652, %v4656
        %v4658 = vshrl.u32 %v759, 16
        %v4660 = vrot.slane %v4658, 4
        %v4661 = vor.u32 %v4660, %v4656
        %v4662 = vrot.slane %v4661, 4
        %v4664 = vshll.u32 %v760, 16
        %v4666 = vrot.slane %v4664, 5
        %v4667 = vsel %vm876, %v4662, %v4666
        %v4668 = vunpack.c.l.b16 %v4657
        %v4669 = vunpack.c.l.b16 %v4667
        %v4670 = vpack.c.b16 %v4669, %v4668
        %4671 = vrot.lane.b32.xlu0 %v4016, 100
        %v4672 = vpop.permute.xlu0 %4671
        %4673 = vrot.lane.b32.xlu0 %v4017, 100
        %v4674 = vpop.permute.xlu0 %4673
        %4675 = vrot.lane.b32.xlu0 %v4018, 100
        %v4676 = vpop.permute.xlu0 %4675
        %4677 = vrot.lane.b32.xlu0 %v4019, 100
        %v4678 = vpop.permute.xlu0 %4677
        %4679 = vrot.lane.b32.xlu0 %v4020, 100
        %v4680 = vpop.permute.xlu0 %4679
        %4681 = vrot.lane.b32.xlu0 %v4021, 100
        %v4682 = vpop.permute.xlu0 %4681
        %4683 = vrot.lane.b32.xlu0 %v4022, 100
        %v4684 = vpop.permute.xlu0 %4683
        %4685 = vrot.lane.b32.xlu0 %v4023, 100
        %v4686 = vpop.permute.xlu0 %4685
        %4687 = vrot.lane.b32.xlu0 %v4024, 100
        %v4688 = vpop.permute.xlu0 %4687
        %4689 = vrot.lane.b32.xlu0 %v4025, 100
        %v4690 = vpop.permute.xlu0 %4689
        %4691 = vrot.lane.b32.xlu0 %v4026, 100
        %v4692 = vpop.permute.xlu0 %4691
        %4693 = vrot.lane.b32.xlu0 %v4027, 100
        %v4694 = vpop.permute.xlu0 %4693
        %4695 = vrot.lane.b32.xlu0 %v4028, 100
        %v4696 = vpop.permute.xlu0 %4695
        %4697 = vrot.lane.b32.xlu0 %v4029, 100
        %v4698 = vpop.permute.xlu0 %4697
        %4699 = vrot.lane.b32.xlu0 %v4432, 100
        %v4700 = vpop.permute.xlu0 %4699
        %4701 = vrot.lane.b32.xlu0 %v4670, 100
        %v4702 = vpop.permute.xlu0 %4701
        %vm4719 = vcmask 851744
        %4720 = vst.msk [vmem:[#allocation3] sm:$0xff] %vm4719, %v4672
        %4721 = vst.msk [vmem:[#allocation3 + $0x8] sm:$0xff] %vm4719, %v4674
        %4722 = vst.msk [vmem:[#allocation3 + $0x10] sm:$0xff] %vm4719, %v4676
        %4723 = vst.msk [vmem:[#allocation3 + $0x18] sm:$0xff] %vm4719, %v4678
        %4724 = vst.msk [vmem:[#allocation3 + $0x20] sm:$0xff] %vm4719, %v4680
        %4725 = vst.msk [vmem:[#allocation3 + $0x28] sm:$0xff] %vm4719, %v4682
        %4726 = vst.msk [vmem:[#allocation3 + $0x30] sm:$0xff] %vm4719, %v4684
        %4727 = vst.msk [vmem:[#allocation3 + $0x38] sm:$0xff] %vm4719, %v4686
        %4728 = vst.msk [vmem:[#allocation3 + $0x40] sm:$0xff] %vm4719, %v4688
        %4729 = vst.msk [vmem:[#allocation3 + $0x48] sm:$0xff] %vm4719, %v4690
        %4730 = vst.msk [vmem:[#allocation3 + $0x50] sm:$0xff] %vm4719, %v4692
        %4731 = vst.msk [vmem:[#allocation3 + $0x58] sm:$0xff] %vm4719, %v4694
        %4732 = vst.msk [vmem:[#allocation3 + $0x60] sm:$0xff] %vm4719, %v4696
        %4733 = vst.msk [vmem:[#allocation3 + $0x68] sm:$0xff] %vm4719, %v4698
        %4734 = vst.msk [vmem:[#allocation3 + $0x70] sm:$0xff] %vm4719, %v4700
        %4735 = vst.msk [vmem:[#allocation3 + $0x78] sm:$0xff] %vm4719, %v4702
        %v4737 = vrot.slane %v758, 5
        %v4738 = vrot.slane %v4737, 4
        %v4739 = vrot.slane %v759, 5
        %v4740 = vsel %vm1392, %v4738, %v4739
        %v4741 = vrot.slane %v4739, 4
        %v4742 = vrot.slane %v760, 5
        %v4743 = vsel %vm1392, %v4741, %v4742
        %v4744 = vunpack.c.l.b16 %v4740
        %v4745 = vunpack.c.l.b16 %v4743
        %v4746 = vpack.c.b16 %v4745, %v4744
        %4747 = vrot.lane.b32.xlu0 %v4257, 104
        %v4748 = vpop.permute.xlu0 %4747
        %4749 = vrot.lane.b32.xlu0 %v4258, 104
        %v4750 = vpop.permute.xlu0 %4749
        %4751 = vrot.lane.b32.xlu0 %v4259, 104
        %v4752 = vpop.permute.xlu0 %4751
        %4753 = vrot.lane.b32.xlu0 %v4260, 104
        %v4754 = vpop.permute.xlu0 %4753
        %4755 = vrot.lane.b32.xlu0 %v4261, 104
        %v4756 = vpop.permute.xlu0 %4755
        %4757 = vrot.lane.b32.xlu0 %v4262, 104
        %v4758 = vpop.permute.xlu0 %4757
        %4759 = vrot.lane.b32.xlu0 %v4263, 104
        %v4760 = vpop.permute.xlu0 %4759
        %4761 = vrot.lane.b32.xlu0 %v4264, 104
        %v4762 = vpop.permute.xlu0 %4761
        %4763 = vrot.lane.b32.xlu0 %v4265, 104
        %v4764 = vpop.permute.xlu0 %4763
        %4765 = vrot.lane.b32.xlu0 %v4266, 104
        %v4766 = vpop.permute.xlu0 %4765
        %4767 = vrot.lane.b32.xlu0 %v4267, 104
        %v4768 = vpop.permute.xlu0 %4767
        %4769 = vrot.lane.b32.xlu0 %v4268, 104
        %v4770 = vpop.permute.xlu0 %4769
        %4771 = vrot.lane.b32.xlu0 %v4269, 104
        %v4772 = vpop.permute.xlu0 %4771
        %4773 = vrot.lane.b32.xlu0 %v4270, 104
        %v4774 = vpop.permute.xlu0 %4773
        %4775 = vrot.lane.b32.xlu0 %v4508, 104
        %v4776 = vpop.permute.xlu0 %4775
        %4777 = vrot.lane.b32.xlu0 %v4746, 104
        %v4778 = vpop.permute.xlu0 %4777
        %vm4795 = vcmask 884544
        %4796 = vst.msk [vmem:[#allocation3] sm:$0xff] %vm4795, %v4748
        %4797 = vst.msk [vmem:[#allocation3 + $0x8] sm:$0xff] %vm4795, %v4750
        %4798 = vst.msk [vmem:[#allocation3 + $0x10] sm:$0xff] %vm4795, %v4752
        %4799 = vst.msk [vmem:[#allocation3 + $0x18] sm:$0xff] %vm4795, %v4754
        %4800 = vst.msk [vmem:[#allocation3 + $0x20] sm:$0xff] %vm4795, %v4756
        %4801 = vst.msk [vmem:[#allocation3 + $0x28] sm:$0xff] %vm4795, %v4758
        %4802 = vst.msk [vmem:[#allocation3 + $0x30] sm:$0xff] %vm4795, %v4760
        %4803 = vst.msk [vmem:[#allocation3 + $0x38] sm:$0xff] %vm4795, %v4762
        %4804 = vst.msk [vmem:[#allocation3 + $0x40] sm:$0xff] %vm4795, %v4764
        %4805 = vst.msk [vmem:[#allocation3 + $0x48] sm:$0xff] %vm4795, %v4766
        %4806 = vst.msk [vmem:[#allocation3 + $0x50] sm:$0xff] %vm4795, %v4768
        %4807 = vst.msk [vmem:[#allocation3 + $0x58] sm:$0xff] %vm4795, %v4770
        %4808 = vst.msk [vmem:[#allocation3 + $0x60] sm:$0xff] %vm4795, %v4772
        %4809 = vst.msk [vmem:[#allocation3 + $0x68] sm:$0xff] %vm4795, %v4774
        %4810 = vst.msk [vmem:[#allocation3 + $0x70] sm:$0xff] %vm4795, %v4776
        %4811 = vst.msk [vmem:[#allocation3 + $0x78] sm:$0xff] %vm4795, %v4778
        %v4812 = vld [vmem:[#allocation3] sm:$0xff]
        %v4813 = vld [vmem:[#allocation3 + $0x8] sm:$0xff]
        %v4814 = vld [vmem:[#allocation3 + $0x10] sm:$0xff]
        %v4815 = vld [vmem:[#allocation3 + $0x18] sm:$0xff]
        %v4816 = vld [vmem:[#allocation3 + $0x20] sm:$0xff]
        %v4817 = vld [vmem:[#allocation3 + $0x28] sm:$0xff]
        %v4818 = vld [vmem:[#allocation3 + $0x30] sm:$0xff]
        %v4819 = vld [vmem:[#allocation3 + $0x38] sm:$0xff]
        %v4820 = vld [vmem:[#allocation3 + $0x40] sm:$0xff]
        %v4821 = vld [vmem:[#allocation3 + $0x48] sm:$0xff]
        %v4822 = vld [vmem:[#allocation3 + $0x50] sm:$0xff]
        %v4823 = vld [vmem:[#allocation3 + $0x58] sm:$0xff]
        %v4824 = vld [vmem:[#allocation3 + $0x60] sm:$0xff]
        %v4825 = vld [vmem:[#allocation3 + $0x68] sm:$0xff]
        %v4826 = vld [vmem:[#allocation3 + $0x70] sm:$0xff]
        %v4827 = vld [vmem:[#allocation3 + $0x78] sm:$0xff]
        %v4828 = vld [vmem:[%s3] sm:$0xf]
        %v4829 = vld [vmem:[%s3 + $0x4] sm:$0xf]
        %v4830 = vld [vmem:[%s3 + $0x8] sm:$0xf]
        %v4831 = vld [vmem:[%s3 + $0xc] sm:$0xf]
        %v4832 = vld [vmem:[%s3 + $0x10] sm:$0xf]
        %v4833 = vld [vmem:[%s3 + $0x14] sm:$0xf]
        %v4834 = vld [vmem:[%s3 + $0x18] sm:$0xf]
        %v4835 = vld [vmem:[%s3 + $0x1c] sm:$0xf]
        %v4836 = vld [vmem:[%s3 + $0x20] sm:$0xf]
        %v4837 = vld [vmem:[%s3 + $0x24] sm:$0xf]
        %v4838 = vld [vmem:[%s3 + $0x28] sm:$0xf]
        %v4839 = vld [vmem:[%s3 + $0x2c] sm:$0xf]
        %v4840 = vld [vmem:[%s3 + $0x30] sm:$0xf]
        %v4841 = vld [vmem:[%s3 + $0x34] sm:$0xf]
        %v4842 = vld [vmem:[%s3 + $0x38] sm:$0xf]
        %v4843 = vld [vmem:[%s3 + $0x3c] sm:$0xf]
        %v4844 = vld [vmem:[%s4] sm:$0x1]
        %v4846 = vlaneseq
        %v4847 = vshrl.u32 %v4846, 7
        %v4848 = vsub.s32 0, %v4847
        %v4849 = vrot.slane %v4844, %v4848
        %v4867 = vunpack.c.l.b16 %v4828
        %v4868 = vunpack.c.l.b16 %v4829
        %v4869 = vunpack.c.l.b16 %v4830
        %v4870 = vunpack.c.l.b16 %v4831
        %v4871 = vunpack.c.l.b16 %v4832
        %v4872 = vunpack.c.l.b16 %v4833
        %v4873 = vunpack.c.l.b16 %v4834
        %v4874 = vunpack.c.l.b16 %v4835
        %v4875 = vunpack.c.l.b16 %v4836
        %v4876 = vunpack.c.l.b16 %v4837
        %v4877 = vunpack.c.l.b16 %v4838
        %v4878 = vunpack.c.l.b16 %v4839
        %v4879 = vunpack.c.l.b16 %v4840
        %v4880 = vunpack.c.l.b16 %v4841
        %v4881 = vunpack.c.l.b16 %v4842
        %v4882 = vunpack.c.l.b16 %v4843
        %v4883 = vpack.c.b16 %v4868, %v4867
        %v4884 = vpack.c.b16 %v4870, %v4869
        %v4885 = vpack.c.b16 %v4872, %v4871
        %v4886 = vpack.c.b16 %v4874, %v4873
        %v4887 = vpack.c.b16 %v4876, %v4875
        %v4888 = vpack.c.b16 %v4878, %v4877
        %v4889 = vpack.c.b16 %v4880, %v4879
        %v4890 = vpack.c.b16 %v4882, %v4881
        %4899 = vmatprep.subr.bf16.mxu0 0
        %4900 = vmatpush1.bf16.msra.mxu0 %v4883
        %4901 = vmatprep.subr.bf16.mxu0 0
        %4902 = vmatpush1.bf16.msra.mxu0 %v4884
        %4903 = vmatprep.subr.bf16.mxu0 0
        %4904 = vmatpush1.bf16.msra.mxu0 %v4885
        %4905 = vmatprep.subr.bf16.mxu0 0
        %4906 = vmatpush1.bf16.msra.mxu0 %v4886
        %4907 = vmatprep.subr.bf16.mxu0 0
        %4908 = vmatpush1.bf16.msra.mxu0 %v4887
        %4909 = vmatprep.subr.bf16.mxu0 0
        %4910 = vmatpush1.bf16.msra.mxu0 %v4888
        %4911 = vmatprep.subr.bf16.mxu0 0
        %4912 = vmatpush1.bf16.msra.mxu0 %v4889
        %4913 = vmatprep.subr.bf16.mxu0 0
        %4914 = vmatpush1.bf16.msra.mxu0 %v4890
        %4915 = vmatprep.subr.bf16.mxu0 0
        %4916 = vmatpush1.bf16.msra.mxu0 0
        %4917 = vmatprep.subr.bf16.mxu0 0
        %4918 = vmatpush1.bf16.msra.mxu0 0
        %4919 = vmatprep.subr.bf16.mxu0 0
        %4920 = vmatpush1.bf16.msra.mxu0 0
        %4921 = vmatprep.subr.bf16.mxu0 0
        %4922 = vmatpush1.bf16.msra.mxu0 0
        %4923 = vmatprep.subr.bf16.mxu0 0
        %4924 = vmatpush1.bf16.msra.mxu0 0
        %4925 = vmatprep.subr.bf16.mxu0 0
        %4926 = vmatpush1.bf16.msra.mxu0 0
        %4927 = vmatprep.subr.bf16.mxu0 0
        %4928 = vmatpush1.bf16.msra.mxu0 0
        %4929 = vmatprep.subr.bf16.mxu0 0
        %4930 = vmatpush1.bf16.msra.mxu0 0
        %4931 = vmatprep.mubr.bf16.mxu0 0
        %4932 = vmatmul.mubr.bf16.gmra.mrb[0].mxu0 %v4812
        %v4933 = vpop.f32.mrb[0].mxu0
        %v4934 = vadd.f32 %v4849, %v4933
        %v4935 = vpop.f32.mrb[0].mxu0
        %v4936 = vpop.f32.mrb[0].mxu0
        %v4937 = vadd.f32 %v4849, %v4936
        %v4938 = vpop.f32.mrb[0].mxu0
        %4939 = vmatprep.mubr.bf16.mxu0 0
        %4940 = vmatmul.mubr.bf16.gmra.mrb[0].mxu0 %v4813
        %v4941 = vpop.f32.mrb[0].mxu0
        %v4942 = vadd.f32 %v4849, %v4941
        %v4943 = vpop.f32.mrb[0].mxu0
        %v4944 = vpop.f32.mrb[0].mxu0
        %v4945 = vadd.f32 %v4849, %v4944
        %v4946 = vpop.f32.mrb[0].mxu0
        %4947 = vmatprep.mubr.bf16.mxu0 0
        %4948 = vmatmul.mubr.bf16.gmra.mrb[0].mxu0 %v4814
        %v4949 = vpop.f32.mrb[0].mxu0
        %v4950 = vadd.f32 %v4849, %v4949
        %v4951 = vpop.f32.mrb[0].mxu0
        %v4952 = vpop.f32.mrb[0].mxu0
        %v4953 = vadd.f32 %v4849, %v4952
        %v4954 = vpop.f32.mrb[0].mxu0
        %4955 = vmatprep.mubr.bf16.mxu0 0
        %4956 = vmatmul.mubr.bf16.gmra.mrb[0].mxu0 %v4815
        %v4957 = vpop.f32.mrb[0].mxu0
        %v4958 = vadd.f32 %v4849, %v4957
        %v4959 = vpop.f32.mrb[0].mxu0
        %v4960 = vpop.f32.mrb[0].mxu0
        %v4961 = vadd.f32 %v4849, %v4960
        %v4962 = vpop.f32.mrb[0].mxu0
        %4963 = vmatprep.mubr.bf16.mxu0 0
        %4964 = vmatmul.mubr.bf16.gmra.mrb[0].mxu0 %v4816
        %v4965 = vpop.f32.mrb[0].mxu0
        %v4966 = vadd.f32 %v4849, %v4965
        %v4967 = vpop.f32.mrb[0].mxu0
        %v4968 = vpop.f32.mrb[0].mxu0
        %v4969 = vadd.f32 %v4849, %v4968
        %v4970 = vpop.f32.mrb[0].mxu0
        %4971 = vmatprep.mubr.bf16.mxu0 0
        %4972 = vmatmul.mubr.bf16.gmra.mrb[0].mxu0 %v4817
        %v4973 = vpop.f32.mrb[0].mxu0
        %v4974 = vadd.f32 %v4849, %v4973
        %v4975 = vpop.f32.mrb[0].mxu0
        %v4976 = vpop.f32.mrb[0].mxu0
        %v4977 = vadd.f32 %v4849, %v4976
        %v4978 = vpop.f32.mrb[0].mxu0
        %4979 = vmatprep.mubr.bf16.mxu0 0
        %4980 = vmatmul.mubr.bf16.gmra.mrb[0].mxu0 %v4818
        %v4981 = vpop.f32.mrb[0].mxu0
        %v4982 = vadd.f32 %v4849, %v4981
        %v4983 = vpop.f32.mrb[0].mxu0
        %v4984 = vpop.f32.mrb[0].mxu0
        %v4985 = vadd.f32 %v4849, %v4984
        %v4986 = vpop.f32.mrb[0].mxu0
        %4987 = vmatprep.mubr.bf16.mxu0 0
        %4988 = vmatmul.mubr.bf16.gmra.mrb[0].mxu0 %v4819
        %v4989 = vpop.f32.mrb[0].mxu0
        %v4990 = vadd.f32 %v4849, %v4989
        %v4991 = vpop.f32.mrb[0].mxu0
        %v4992 = vpop.f32.mrb[0].mxu0
        %v4993 = vadd.f32 %v4849, %v4992
        %v4994 = vpop.f32.mrb[0].mxu0
        %4995 = vmatprep.mubr.bf16.mxu0 0
        %4996 = vmatmul.mubr.bf16.gmra.mrb[0].mxu0 %v4820
        %v4997 = vpop.f32.mrb[0].mxu0
        %v4998 = vadd.f32 %v4849, %v4997
        %v4999 = vpop.f32.mrb[0].mxu0
        %v5000 = vpop.f32.mrb[0].mxu0
        %v5001 = vadd.f32 %v4849, %v5000
        %v5002 = vpop.f32.mrb[0].mxu0
        %5003 = vmatprep.mubr.bf16.mxu0 0
        %5004 = vmatmul.mubr.bf16.gmra.mrb[0].mxu0 %v4821
        %v5005 = vpop.f32.mrb[0].mxu0
        %v5006 = vadd.f32 %v4849, %v5005
        %v5007 = vpop.f32.mrb[0].mxu0
        %v5008 = vpop.f32.mrb[0].mxu0
        %v5009 = vadd.f32 %v4849, %v5008
        %v5010 = vpop.f32.mrb[0].mxu0
        %5011 = vmatprep.mubr.bf16.mxu0 0
        %5012 = vmatmul.mubr.bf16.gmra.mrb[0].mxu0 %v4822
        %v5013 = vpop.f32.mrb[0].mxu0
        %v5014 = vadd.f32 %v4849, %v5013
        %v5015 = vpop.f32.mrb[0].mxu0
        %v5016 = vpop.f32.mrb[0].mxu0
        %v5017 = vadd.f32 %v4849, %v5016
        %v5018 = vpop.f32.mrb[0].mxu0
        %5019 = vmatprep.mubr.bf16.mxu0 0
        %5020 = vmatmul.mubr.bf16.gmra.mrb[0].mxu0 %v4823
        %v5021 = vpop.f32.mrb[0].mxu0
        %v5022 = vadd.f32 %v4849, %v5021
        %v5023 = vpop.f32.mrb[0].mxu0
        %v5024 = vpop.f32.mrb[0].mxu0
        %v5025 = vadd.f32 %v4849, %v5024
        %v5026 = vpop.f32.mrb[0].mxu0
        %5027 = vmatprep.mubr.bf16.mxu0 0
        %5028 = vmatmul.mubr.bf16.gmra.mrb[0].mxu0 %v4824
        %v5029 = vpop.f32.mrb[0].mxu0
        %v5030 = vadd.f32 %v4849, %v5029
        %v5031 = vpop.f32.mrb[0].mxu0
        %v5032 = vpop.f32.mrb[0].mxu0
        %v5033 = vadd.f32 %v4849, %v5032
        %v5034 = vpop.f32.mrb[0].mxu0
        %5035 = vmatprep.mubr.bf16.mxu0 0
        %5036 = vmatmul.mubr.bf16.gmra.mrb[0].mxu0 %v4825
        %v5037 = vpop.f32.mrb[0].mxu0
        %v5038 = vadd.f32 %v4849, %v5037
        %v5039 = vpop.f32.mrb[0].mxu0
        %v5040 = vpop.f32.mrb[0].mxu0
        %v5041 = vadd.f32 %v4849, %v5040
        %v5042 = vpop.f32.mrb[0].mxu0
        %5043 = vmatprep.mubr.bf16.mxu0 0
        %5044 = vmatmul.mubr.bf16.gmra.mrb[0].mxu0 %v4826
        %v5045 = vpop.f32.mrb[0].mxu0
        %v5046 = vadd.f32 %v4849, %v5045
        %v5047 = vpop.f32.mrb[0].mxu0
        %v5048 = vpop.f32.mrb[0].mxu0
        %v5049 = vadd.f32 %v4849, %v5048
        %v5050 = vpop.f32.mrb[0].mxu0
        %5051 = vmatprep.mubr.bf16.mxu0 0
        %5052 = vmatmul.mubr.bf16.gmra.mrb[0].mxu0 %v4827
        %v5053 = vpop.f32.mrb[0].mxu0
        %v5054 = vadd.f32 %v4849, %v5053
        %v5055 = vpop.f32.mrb[0].mxu0
        %v5056 = vpop.f32.mrb[0].mxu0
        %v5057 = vadd.f32 %v4849, %v5056
        %v5058 = vpop.f32.mrb[0].mxu0
        %5059 = vdwg.mxu0
        %v5060 = vmax.f32 %v4934, 0.0
        %v5061 = vmax.f32 %v4937, 0.0
        %v5062 = vmax.f32 %v4942, 0.0
        %v5063 = vmax.f32 %v4945, 0.0
        %v5064 = vmax.f32 %v4950, 0.0
        %v5065 = vmax.f32 %v4953, 0.0
        %v5066 = vmax.f32 %v4958, 0.0
        %v5067 = vmax.f32 %v4961, 0.0
        %v5068 = vmax.f32 %v4966, 0.0
        %v5069 = vmax.f32 %v4969, 0.0
        %v5070 = vmax.f32 %v4974, 0.0
        %v5071 = vmax.f32 %v4977, 0.0
        %v5072 = vmax.f32 %v4982, 0.0
        %v5073 = vmax.f32 %v4985, 0.0
        %v5074 = vmax.f32 %v4990, 0.0
        %v5075 = vmax.f32 %v4993, 0.0
        %v5076 = vmax.f32 %v4998, 0.0
        %v5077 = vmax.f32 %v5001, 0.0
        %v5078 = vmax.f32 %v5006, 0.0
        %v5079 = vmax.f32 %v5009, 0.0
        %v5080 = vmax.f32 %v5014, 0.0
        %v5081 = vmax.f32 %v5017, 0.0
        %v5082 = vmax.f32 %v5022, 0.0
        %v5083 = vmax.f32 %v5025, 0.0
        %v5084 = vmax.f32 %v5030, 0.0
        %v5085 = vmax.f32 %v5033, 0.0
        %v5086 = vmax.f32 %v5038, 0.0
        %v5087 = vmax.f32 %v5041, 0.0
        %v5088 = vmax.f32 %v5046, 0.0
        %v5089 = vmax.f32 %v5049, 0.0
        %v5090 = vmax.f32 %v5054, 0.0
        %v5091 = vmax.f32 %v5057, 0.0
        %v5092 = vld [vmem:[#allocation2] sm:$0x1]
        %v5093 = vadd.f32 %v5060, %v5061
        %v5094 = vadd.f32 %v5093, %v5062
        %v5095 = vadd.f32 %v5094, %v5063
        %v5096 = vadd.f32 %v5095, %v5064
        %v5097 = vadd.f32 %v5096, %v5065
        %v5098 = vadd.f32 %v5097, %v5066
        %v5099 = vadd.f32 %v5098, %v5067
        %v5100 = vadd.f32 %v5099, %v5068
        %v5101 = vadd.f32 %v5100, %v5069
        %v5102 = vadd.f32 %v5101, %v5070
        %v5103 = vadd.f32 %v5102, %v5071
        %v5104 = vadd.f32 %v5103, %v5072
        %v5105 = vadd.f32 %v5104, %v5073
        %v5106 = vadd.f32 %v5105, %v5074
        %v5107 = vadd.f32 %v5106, %v5075
        %v5108 = vadd.f32 %v5107, %v5076
        %v5109 = vadd.f32 %v5108, %v5077
        %v5110 = vadd.f32 %v5109, %v5078
        %v5111 = vadd.f32 %v5110, %v5079
        %v5112 = vadd.f32 %v5111, %v5080
        %v5113 = vadd.f32 %v5112, %v5081
        %v5114 = vadd.f32 %v5113, %v5082
        %v5115 = vadd.f32 %v5114, %v5083
        %v5116 = vadd.f32 %v5115, %v5084
        %v5117 = vadd.f32 %v5116, %v5085
        %v5118 = vadd.f32 %v5117, %v5086
        %v5119 = vadd.f32 %v5118, %v5087
        %v5120 = vadd.f32 %v5119, %v5088
        %v5121 = vadd.f32 %v5120, %v5089
        %v5122 = vadd.f32 %v5121, %v5090
        %v5123 = vadd.f32 %v5122, %v5091
        %v5124 = vrot.slane %v5123, 4
        %v5125 = vadd.f32 %v5123, %v5124
        %v5126 = vrot.slane %v5125, 2
        %v5127 = vadd.f32 %v5125, %v5126
        %v5128 = vrot.slane %v5127, 1
        %v5129 = vadd.f32 %v5127, %v5128
        %v5130 = vadd.f32 %v5092, %v5129
        %5131 = vst [vmem:[#allocation2] sm:$0x1] %v5130
        %p5132 = scmp.eq.s32.totalorder %s36, 3
        // Predicated region
        $region69: #{model_forward.1} parent=63 // pred_check
          %p5133 = pneg %p5132
        $region70: #{model_forward.1} parent=63 // pred_check_branch
          %5135 = sbr.rel (%p5133) target = $region72
        $region71: #{model_forward.1} parent=63 // pred_region
          %v5136 = vld [vmem:[#allocation2] sm:$0x1]
          %v5137 = vmul.f32 %v5136, 0.0009765625
          %5138 = vst [vmem:[%s529] sm:$0x1] %v5137
          %v5139 = vpack.c.bf16 %v5137, %v5137
          %v5140 = vld [vmem:[%s575] sm:$0x1]
          %v5141 = vld [vmem:[%s6] sm:$0xf]
          %v5142 = vld [vmem:[%s6 + $0x4] sm:$0xf]
          %v5143 = vld [vmem:[%s6 + $0x8] sm:$0xf]
          %v5144 = vld [vmem:[%s6 + $0xc] sm:$0xf]
          %v5145 = vld [vmem:[%s6 + $0x10] sm:$0xf]
          %v5146 = vld [vmem:[%s6 + $0x14] sm:$0xf]
          %v5147 = vld [vmem:[%s6 + $0x18] sm:$0xf]
          %v5148 = vld [vmem:[%s6 + $0x1c] sm:$0xf]
          %v5149 = vld [vmem:[%s6 + $0x20] sm:$0xf]
          %v5150 = vld [vmem:[%s6 + $0x24] sm:$0xf]
          %v5151 = vld [vmem:[%s6 + $0x28] sm:$0xf]
          %v5152 = vld [vmem:[%s6 + $0x2c] sm:$0xf]
          %v5153 = vld [vmem:[%s6 + $0x30] sm:$0xf]
          %v5154 = vld [vmem:[%s6 + $0x34] sm:$0xf]
          %v5155 = vld [vmem:[%s6 + $0x38] sm:$0xf]
          %v5156 = vld [vmem:[%s6 + $0x3c] sm:$0xf]
          %v5157 = vld [vmem:[%s7] sm:$0x1]
          %v5174 = vunpack.c.l.b16 %v5141
          %v5175 = vunpack.c.l.b16 %v5142
          %v5176 = vunpack.c.l.b16 %v5143
          %v5177 = vunpack.c.l.b16 %v5144
          %v5178 = vunpack.c.l.b16 %v5145
          %v5179 = vunpack.c.l.b16 %v5146
          %v5180 = vunpack.c.l.b16 %v5147
          %v5181 = vunpack.c.l.b16 %v5148
          %v5182 = vunpack.c.l.b16 %v5149
          %v5183 = vunpack.c.l.b16 %v5150
          %v5184 = vunpack.c.l.b16 %v5151
          %v5185 = vunpack.c.l.b16 %v5152
          %v5186 = vunpack.c.l.b16 %v5153
          %v5187 = vunpack.c.l.b16 %v5154
          %v5188 = vunpack.c.l.b16 %v5155
          %v5189 = vunpack.c.l.b16 %v5156
          %v5190 = vpack.c.b16 %v5175, %v5174
          %v5191 = vpack.c.b16 %v5177, %v5176
          %v5192 = vpack.c.b16 %v5179, %v5178
          %v5193 = vpack.c.b16 %v5181, %v5180
          %v5194 = vpack.c.b16 %v5183, %v5182
          %v5195 = vpack.c.b16 %v5185, %v5184
          %v5196 = vpack.c.b16 %v5187, %v5186
          %v5197 = vpack.c.b16 %v5189, %v5188
          %5206 = vmatprep.subr.bf16.mxu0 0
          %5207 = vmatpush1.bf16.msra.mxu0 %v5190
          %5208 = vmatprep.subr.bf16.mxu0 0
          %5209 = vmatpush1.bf16.msra.mxu0 %v5191
          %5210 = vmatprep.subr.bf16.mxu0 0
          %5211 = vmatpush1.bf16.msra.mxu0 %v5192
          %5212 = vmatprep.subr.bf16.mxu0 0
          %5213 = vmatpush1.bf16.msra.mxu0 %v5193
          %5214 = vmatprep.subr.bf16.mxu0 0
          %5215 = vmatpush1.bf16.msra.mxu0 %v5194
          %5216 = vmatprep.subr.bf16.mxu0 0
          %5217 = vmatpush1.bf16.msra.mxu0 %v5195
          %5218 = vmatprep.subr.bf16.mxu0 0
          %5219 = vmatpush1.bf16.msra.mxu0 %v5196
          %5220 = vmatprep.subr.bf16.mxu0 0
          %5221 = vmatpush1.bf16.msra.mxu0 %v5197
          %5222 = vmatprep.subr.bf16.mxu0 0
          %5223 = vmatpush1.bf16.msra.mxu0 0
          %5224 = vmatprep.subr.bf16.mxu0 0
          %5225 = vmatpush1.bf16.msra.mxu0 0
          %5226 = vmatprep.subr.bf16.mxu0 0
          %5227 = vmatpush1.bf16.msra.mxu0 0
          %5228 = vmatprep.subr.bf16.mxu0 0
          %5229 = vmatpush1.bf16.msra.mxu0 0
          %5230 = vmatprep.subr.bf16.mxu0 0
          %5231 = vmatpush1.bf16.msra.mxu0 0
          %5232 = vmatprep.subr.bf16.mxu0 0
          %5233 = vmatpush1.bf16.msra.mxu0 0
          %5234 = vmatprep.subr.bf16.mxu0 0
          %5235 = vmatpush1.bf16.msra.mxu0 0
          %5236 = vmatprep.subr.bf16.mxu0 0
          %5237 = vmatpush1.bf16.msra.mxu0 0
          %5238 = vmatprep.mubr.bf16.mxu0 0
          %5239 = vmatmul.mubr.bf16.gmra.mrb[0].mxu0 %v5139
          %v5240 = vpop.f32.mrb[0].mxu0
          %v5241 = vadd.f32 %v5157, %v5240
          %v5242 = vpop.f32.mrb[0].mxu0
          %v5243 = vpop.f32.mrb[0].mxu0
          %v5244 = vpop.f32.mrb[0].mxu0
          %5245 = vdwg.mxu0
          %5246 = vst [vmem:[%s535] sm:$0x1] %v5241
          %v5247 = vld [vmem:[%s8] sm:$0xf]
          %v5248 = vld [vmem:[%s8 + $0x4] sm:$0xf]
          %v5249 = vld [vmem:[%s8 + $0x8] sm:$0xf]
          %v5250 = vld [vmem:[%s8 + $0xc] sm:$0xf]
          %v5251 = vld [vmem:[%s8 + $0x10] sm:$0xf]
          %v5252 = vld [vmem:[%s8 + $0x14] sm:$0xf]
          %v5253 = vld [vmem:[%s8 + $0x18] sm:$0xf]
          %v5254 = vld [vmem:[%s8 + $0x1c] sm:$0xf]
          %v5255 = vld [vmem:[%s8 + $0x20] sm:$0xf]
          %v5256 = vld [vmem:[%s8 + $0x24] sm:$0xf]
          %v5257 = vld [vmem:[%s8 + $0x28] sm:$0xf]
          %v5258 = vld [vmem:[%s8 + $0x2c] sm:$0xf]
          %v5259 = vld [vmem:[%s8 + $0x30] sm:$0xf]
          %v5260 = vld [vmem:[%s8 + $0x34] sm:$0xf]
          %v5261 = vld [vmem:[%s8 + $0x38] sm:$0xf]
          %v5262 = vld [vmem:[%s8 + $0x3c] sm:$0xf]
          %v5263 = vld [vmem:[%s9] sm:$0xf]
          %v5264 = vld [vmem:[%s9 + $0x4] sm:$0xf]
          %v5265 = vld [vmem:[%s9 + $0x8] sm:$0xf]
          %v5266 = vld [vmem:[%s9 + $0xc] sm:$0xf]
          %v5267 = vld [vmem:[%s9 + $0x10] sm:$0xf]
          %v5268 = vld [vmem:[%s9 + $0x14] sm:$0xf]
          %v5269 = vld [vmem:[%s9 + $0x18] sm:$0xf]
          %v5270 = vld [vmem:[%s9 + $0x1c] sm:$0xf]
          %v5271 = vld [vmem:[%s9 + $0x20] sm:$0xf]
          %v5272 = vld [vmem:[%s9 + $0x24] sm:$0xf]
          %v5273 = vld [vmem:[%s9 + $0x28] sm:$0xf]
          %v5274 = vld [vmem:[%s9 + $0x2c] sm:$0xf]
          %v5275 = vld [vmem:[%s9 + $0x30] sm:$0xf]
          %v5276 = vld [vmem:[%s9 + $0x34] sm:$0xf]
          %v5277 = vld [vmem:[%s9 + $0x38] sm:$0xf]
          %v5278 = vld [vmem:[%s9 + $0x3c] sm:$0xf]
          %v5295 = vunpack.c.l.b16 %v5263
          %v5296 = vunpack.c.l.b16 %v5264
          %v5297 = vunpack.c.l.b16 %v5265
          %v5298 = vunpack.c.l.b16 %v5266
          %v5299 = vunpack.c.l.b16 %v5267
          %v5300 = vunpack.c.l.b16 %v5268
          %v5301 = vunpack.c.l.b16 %v5269
          %v5302 = vunpack.c.l.b16 %v5270
          %v5303 = vunpack.c.l.b16 %v5271
          %v5304 = vunpack.c.l.b16 %v5272
          %v5305 = vunpack.c.l.b16 %v5273
          %v5306 = vunpack.c.l.b16 %v5274
          %v5307 = vunpack.c.l.b16 %v5275
          %v5308 = vunpack.c.l.b16 %v5276
          %v5309 = vunpack.c.l.b16 %v5277
          %v5310 = vunpack.c.l.b16 %v5278
          %v5311 = vpack.c.b16 %v5296, %v5295
          %v5312 = vpack.c.b16 %v5298, %v5297
          %v5313 = vpack.c.b16 %v5300, %v5299
          %v5314 = vpack.c.b16 %v5302, %v5301
          %v5315 = vpack.c.b16 %v5304, %v5303
          %v5316 = vpack.c.b16 %v5306, %v5305
          %v5317 = vpack.c.b16 %v5308, %v5307
          %v5318 = vpack.c.b16 %v5310, %v5309
          %5327 = vmatprep.subr.bf16.mxu0 0
          %5328 = vmatpush1.bf16.msra.mxu0 %v5311
          %5329 = vmatprep.subr.bf16.mxu0 0
          %5330 = vmatpush1.bf16.msra.mxu0 %v5312
          %5331 = vmatprep.subr.bf16.mxu0 0
          %5332 = vmatpush1.bf16.msra.mxu0 %v5313
          %5333 = vmatprep.subr.bf16.mxu0 0
          %5334 = vmatpush1.bf16.msra.mxu0 %v5314
          %5335 = vmatprep.subr.bf16.mxu0 0
          %5336 = vmatpush1.bf16.msra.mxu0 %v5315
          %5337 = vmatprep.subr.bf16.mxu0 0
          %5338 = vmatpush1.bf16.msra.mxu0 %v5316
          %5339 = vmatprep.subr.bf16.mxu0 0
          %5340 = vmatpush1.bf16.msra.mxu0 %v5317
          %5341 = vmatprep.subr.bf16.mxu0 0
          %5342 = vmatpush1.bf16.msra.mxu0 %v5318
          %5343 = vmatprep.subr.bf16.mxu0 0
          %5344 = vmatpush1.bf16.msra.mxu0 0
          %5345 = vmatprep.subr.bf16.mxu0 0
          %5346 = vmatpush1.bf16.msra.mxu0 0
          %5347 = vmatprep.subr.bf16.mxu0 0
          %5348 = vmatpush1.bf16.msra.mxu0 0
          %5349 = vmatprep.subr.bf16.mxu0 0
          %5350 = vmatpush1.bf16.msra.mxu0 0
          %5351 = vmatprep.subr.bf16.mxu0 0
          %5352 = vmatpush1.bf16.msra.mxu0 0
          %5353 = vmatprep.subr.bf16.mxu0 0
          %5354 = vmatpush1.bf16.msra.mxu0 0
          %5355 = vmatprep.subr.bf16.mxu0 0
          %5356 = vmatpush1.bf16.msra.mxu0 0
          %5357 = vmatprep.subr.bf16.mxu0 0
          %5358 = vmatpush1.bf16.msra.mxu0 0
          %5359 = vmatprep.mubr.bf16.mxu0 0
          %5360 = vmatmul.mubr.bf16.gmra.mrb[0].mxu0 %v5140
          %v5361 = vpop.f32.mrb[0].mxu0
          %v5362 = vadd.f32 0.0, %v5361
          %v5363 = vpop.f32.mrb[0].mxu0
          %v5364 = vpop.f32.mrb[0].mxu0
          %v5365 = vpop.f32.mrb[0].mxu0
          %5366 = vdwg.mxu0
          %v5383 = vunpack.c.l.b16 %v5247
          %v5384 = vunpack.c.l.b16 %v5248
          %v5385 = vunpack.c.l.b16 %v5249
          %v5386 = vunpack.c.l.b16 %v5250
          %v5387 = vunpack.c.l.b16 %v5251
          %v5388 = vunpack.c.l.b16 %v5252
          %v5389 = vunpack.c.l.b16 %v5253
          %v5390 = vunpack.c.l.b16 %v5254
          %v5391 = vunpack.c.l.b16 %v5255
          %v5392 = vunpack.c.l.b16 %v5256
          %v5393 = vunpack.c.l.b16 %v5257
          %v5394 = vunpack.c.l.b16 %v5258
          %v5395 = vunpack.c.l.b16 %v5259
          %v5396 = vunpack.c.l.b16 %v5260
          %v5397 = vunpack.c.l.b16 %v5261
          %v5398 = vunpack.c.l.b16 %v5262
          %v5399 = vpack.c.b16 %v5384, %v5383
          %v5400 = vpack.c.b16 %v5386, %v5385
          %v5401 = vpack.c.b16 %v5388, %v5387
          %v5402 = vpack.c.b16 %v5390, %v5389
          %v5403 = vpack.c.b16 %v5392, %v5391
          %v5404 = vpack.c.b16 %v5394, %v5393
          %v5405 = vpack.c.b16 %v5396, %v5395
          %v5406 = vpack.c.b16 %v5398, %v5397
          %5415 = vmatprep.subr.bf16.mxu0 0
          %5416 = vmatpush1.bf16.msra.mxu0 %v5399
          %5417 = vmatprep.subr.bf16.mxu0 0
          %5418 = vmatpush1.bf16.msra.mxu0 %v5400
          %5419 = vmatprep.subr.bf16.mxu0 0
          %5420 = vmatpush1.bf16.msra.mxu0 %v5401
          %5421 = vmatprep.subr.bf16.mxu0 0
          %5422 = vmatpush1.bf16.msra.mxu0 %v5402
          %5423 = vmatprep.subr.bf16.mxu0 0
          %5424 = vmatpush1.bf16.msra.mxu0 %v5403
          %5425 = vmatprep.subr.bf16.mxu0 0
          %5426 = vmatpush1.bf16.msra.mxu0 %v5404
          %5427 = vmatprep.subr.bf16.mxu0 0
          %5428 = vmatpush1.bf16.msra.mxu0 %v5405
          %5429 = vmatprep.subr.bf16.mxu0 0
          %5430 = vmatpush1.bf16.msra.mxu0 %v5406
          %5431 = vmatprep.subr.bf16.mxu0 0
          %5432 = vmatpush1.bf16.msra.mxu0 0
          %5433 = vmatprep.subr.bf16.mxu0 0
          %5434 = vmatpush1.bf16.msra.mxu0 0
          %5435 = vmatprep.subr.bf16.mxu0 0
          %5436 = vmatpush1.bf16.msra.mxu0 0
          %5437 = vmatprep.subr.bf16.mxu0 0
          %5438 = vmatpush1.bf16.msra.mxu0 0
          %5439 = vmatprep.subr.bf16.mxu0 0
          %5440 = vmatpush1.bf16.msra.mxu0 0
          %5441 = vmatprep.subr.bf16.mxu0 0
          %5442 = vmatpush1.bf16.msra.mxu0 0
          %5443 = vmatprep.subr.bf16.mxu0 0
          %5444 = vmatpush1.bf16.msra.mxu0 0
          %5445 = vmatprep.subr.bf16.mxu0 0
          %5446 = vmatpush1.bf16.msra.mxu0 0
          %5447 = vmatprep.mubr.bf16.mxu0 0
          %5448 = vmatmul.mubr.bf16.gmra.mrb[0].mxu0 %v5139
          %v5449 = vpop.f32.mrb[0].mxu0
          %v5450 = vadd.f32 %v5362, %v5449
          %v5451 = vpop.f32.mrb[0].mxu0
          %v5452 = vpop.f32.mrb[0].mxu0
          %v5453 = vpop.f32.mrb[0].mxu0
          %5454 = vdwg.mxu0
          %v5455 = vld [vmem:[%s10] sm:$0x1]
          %v5456 = vadd.f32 %v5450, %v5455
          %5457 = vst [vmem:[%s541] sm:$0x1] %v5456
        $region72: #{model_forward.1} parent=63 // pred_fallthru
          _
        %s5458 = sand.u32 %s312, 1
        %s5459 = scalar_lea.sflag [#allocation5], %s5458
        %s5460 = sand.u32 %s312, 1
        %s5461 = scalar_lea.vmem [#allocation4], %s5460
        %s5462 = sand.u32 %s31, 1
        %s5463 = scalar_lea.sflag [#allocation7], %s5462
        %s5464 = sand.u32 %s338, 1
        %s5465 = scalar_lea.vmem [#allocation6], %s5464
        %s5466 = sand.u32 %s31, 1
        %s5467 = scalar_lea.sflag [#allocation7], %s5466
        %s5468 = sand.u32 %s364, 1
        %s5469 = scalar_lea.vmem [#allocation8], %s5468
        // Predicated region
        $region73: #{model_forward.1} parent=63 // pred_check
          %p5470 = pneg %p322
        $region74: #{model_forward.1} parent=63 // pred_check_branch
          %5472 = sbr.rel (%p5470) target = $region76
        $region75: #{model_forward.1} parent=63 // pred_region
          %s5474 = ssub.s32 16, 16
          %5475 = vsyncadd %s5459, %s5474
          %s5476 = smul.addr %s35, 16
          %s5477 = scalar_lea.hbm %s11, %s5476
          %s5479 = sshll.u32 %s5461, 4
          %s5480 = int_to_ptr.vmem [resolvable:$true] %s5479
          %5482 = dma.vmem_to_hbm [thread:$0]  %s5480, 16, %s5477, %s5459
        $region76: #{model_forward.1} parent=63 // pred_fallthru
          _
        // Predicated region
        $region77: #{model_forward.1} parent=63 // pred_check
          %p5483 = pneg %p348
        $region78: #{model_forward.1} parent=63 // pred_check_branch
          %5485 = sbr.rel (%p5483) target = $region80
        $region79: #{model_forward.1} parent=63 // pred_region
          %s5487 = ssub.s32 16, 16
          %5488 = vsyncadd %s5463, %s5487
          %s5489 = smul.addr %s35, 16
          %s5490 = scalar_lea.hbm %s12, %s5489
          %s5492 = sshll.u32 %s5465, 4
          %s5493 = int_to_ptr.vmem [resolvable:$true] %s5492
          %5495 = dma.vmem_to_hbm [thread:$0]  %s5493, 16, %s5490, %s5463
        $region80: #{model_forward.1} parent=63 // pred_fallthru
          _
        // Predicated region
        $region81: #{model_forward.1} parent=63 // pred_check
          %p5496 = pneg %p374
        $region82: #{model_forward.1} parent=63 // pred_check_branch
          %5498 = sbr.rel (%p5496) target = $region84
        $region83: #{model_forward.1} parent=63 // pred_region
          %s5500 = ssub.s32 16, 16
          %5501 = vsyncadd %s5467, %s5500
          %s5502 = smul.addr %s35, 16
          %s5503 = scalar_lea.hbm %s13, %s5502
          %s5505 = sshll.u32 %s5469, 4
          %s5506 = int_to_ptr.vmem [resolvable:$true] %s5505
          %5508 = dma.vmem_to_hbm [thread:$0]  %s5506, 16, %s5503, %s5467
        $region84: #{model_forward.1} parent=63 // pred_fallthru
          _
      $region64: #{model_forward.1} parent=5 // pred_fallthru
        _
      %p5509 = scmp.le.s32.totalorder 2, %s26
      // Predicated region
      $region85: #{model_forward.1} parent=5 // pred_check
        %p5510 = pneg %p5509
      $region86: #{model_forward.1} parent=5 // pred_check_branch
        %5512 = sbr.rel (%p5510) target = $region88
      $region87: #{model_forward.1} parent=5 // pred_region
        %s5513 = ssub.s32 %s26, 2
        // Predicated region
        $region89: #{model_forward.1} parent=87 // pred_check
          %p5514 = pneg %p328
        $region90: #{model_forward.1} parent=87 // pred_check_branch
          %5516 = sbr.rel (%p5514) target = $region92
        $region91: #{model_forward.1} parent=87 // pred_region
          %s5517 = sand.u32 %s313, 1
          %s5518 = scalar_lea.sflag [#allocation5], %s5517
          %s5519 = sand.u32 %s313, 1
          %s5520 = scalar_lea.vmem [#allocation4], %s5519
          %5521 = dma.done %s5518, 16
        $region92: #{model_forward.1} parent=87 // pred_fallthru
          _
        // Predicated region
        $region93: #{model_forward.1} parent=87 // pred_check
          %p5522 = pneg %p354
        $region94: #{model_forward.1} parent=87 // pred_check_branch
          %5524 = sbr.rel (%p5522) target = $region96
        $region95: #{model_forward.1} parent=87 // pred_region
          %s5525 = sand.u32 %s32, 1
          %s5526 = scalar_lea.sflag [#allocation7], %s5525
          %s5527 = sand.u32 %s339, 1
          %s5528 = scalar_lea.vmem [#allocation6], %s5527
          %5529 = dma.done %s5526, 16
        $region96: #{model_forward.1} parent=87 // pred_fallthru
          _
        // Predicated region
        $region97: #{model_forward.1} parent=87 // pred_check
          %p5530 = pneg %p380
        $region98: #{model_forward.1} parent=87 // pred_check_branch
          %5532 = sbr.rel (%p5530) target = $region100
        $region99: #{model_forward.1} parent=87 // pred_region
          %s5533 = sand.u32 %s32, 1
          %s5534 = scalar_lea.sflag [#allocation7], %s5533
          %s5535 = sand.u32 %s365, 1
          %s5536 = scalar_lea.vmem [#allocation8], %s5535
          %5537 = dma.done %s5534, 16
        $region100: #{model_forward.1} parent=87 // pred_fallthru
          _
      $region88: #{model_forward.1} parent=5 // pred_fallthru
        _
    $region6: #{model_forward.1} parent=1 // loop_footer
      %s30 = sadd.s32 1, %s26
    $region7: #{model_forward.1} parent=1 // loop_footer_branch
      %25 = sbr.rel target = $region3
    $region8: #{model_forward.1} parent=1 // loop_exit
      _
    %5538 = vsyncpa [#allocation5], 1
    %s5539 = scalar_lea.sflag [#allocation5], 1
    %5540 = vsyncpa %s5539, 1
    %5541 = vsyncpa [#allocation7], 1
    %s5542 = scalar_lea.sflag [#allocation7], 1
    %5543 = vsyncpa %s5542, 1

</llo_original>
